<compile_context>
chip_gen: v5e
topology: v5e:2x2
jax: 0.10.0
libtpu: 0.0.40
codegen_flags: <defaults>
</compile_context>

<pallas_src>
import functools

import jax
import jax.numpy as jnp
from jax import lax
from jax.experimental import pallas as pl
from jax.experimental.pallas import tpu as pltpu


def _vmem_limit_bytes():
    # ~3/4 of physical VMEM: v5e/v6e (128 MiB) -> 96 MiB, v7x (64 MiB) -> 48 MiB.
    try:
        cap = int(pltpu.get_tpu_info().vmem_capacity_bytes)
    except Exception:
        cap = 64 * 1024 * 1024
    return int(min(max(cap * 3 // 4, 32 * 1024 * 1024), 100 * 1024 * 1024))


# ----------------------------------------------------------------------------
# Kernel 1: direct conv (shifted-matmul) + masked per-channel partial sum/ssq.
# ----------------------------------------------------------------------------
def _make_conv_stats_kernel(tap_offsets, n_rows, cin_p, fold):
    n_taps = len(tap_offsets)

    def kernel(xh_ref, w_ref, mask_ref, y_ref, bsum_ref, bssq_ref):
        if fold:
            # Fold KH*KW taps into the contraction dim: one deep-K bf16 matmul
            # (K = n_taps*cin_p) with f32 accumulation on the MXU.
            lhs = jnp.concatenate(
                [xh_ref[pl.ds(off, n_rows), :] for off in tap_offsets], axis=-1)
            acc = jnp.dot(lhs, w_ref[...], preferred_element_type=jnp.float32)
        else:
            # Large-Cin path: per-tap matmuls already have K = cin_p >= 72.
            acc = jnp.dot(xh_ref[pl.ds(tap_offsets[0], n_rows), :],
                          w_ref[0:cin_p, :], preferred_element_type=jnp.float32)
            for t in range(1, n_taps):
                acc += jnp.dot(xh_ref[pl.ds(tap_offsets[t], n_rows), :],
                               w_ref[t * cin_p:(t + 1) * cin_p, :],
                               preferred_element_type=jnp.float32)

        y_ref[...] = acc.astype(y_ref.dtype)

        # Per-grid-step partial BN statistics; each (row-block, batch, cout-tile)
        # output block is written exactly once -> safe under any parallel split.
        mk = mask_ref[...]                           # (n_rows, 1) f32 in {0, 1}
        masked = acc * mk
        bsum_ref[...] = jnp.sum(masked, axis=0, keepdims=True)
        bssq_ref[...] = jnp.sum(masked * acc, axis=0, keepdims=True)

    return kernel


# ----------------------------------------------------------------------------
# Kernel 2: fused BN apply (pre-folded scale/bias) + Mish.
# ----------------------------------------------------------------------------
def _bn_mish_kernel(y_ref, scale_ref, bias_ref, o_ref):
    x = y_ref[...].astype(jnp.float32) * scale_ref[...] + bias_ref[...]
    # mish(x) = x * tanh(softplus(x));  with t = exp(x):
    #   tanh(log1p(t)) = (t^2 + 2t) / (t^2 + 2t + 2)
    t = jnp.exp(jnp.minimum(x, 20.0))                # F.softplus threshold = 20
    num = t * (t + 2.0)
    den = num + 2.0
    r = pl.reciprocal(den, approx=True)
    r = r * (2.0 - den * r)                          # one Newton step (VPU only)
    o_ref[...] = jnp.where(x > 20.0, x, x * num * r).astype(o_ref.dtype)


# ----------------------------------------------------------------------------
# Wrapper reproducing BasicConv.forward semantics (NCHW in / NCHW out, f32).
# ----------------------------------------------------------------------------
@functools.partial(jax.jit, static_argnames=("stride", "eps"))
def basic_conv_forward(x_nchw, conv_w, gamma, beta, *, stride=1, eps=1e-5):
    N, Cin, H, W = x_nchw.shape
    Cout, _, KH, KW = conv_w.shape
    assert KH == KW and KH % 2 == 1, "BasicConv uses odd square kernels"
    s = stride
    pad = KH // 2
    OH = (H + 2 * pad - KH) // s + 1
    OW = (W + 2 * pad - KW) // s + 1
    Wp = W + 2 * pad                               # padded width (stride-1 row width)
    Cin_p = max(8, -(-Cin // 8) * 8)               # channels -> sublane multiple
    Cout_pad = max(128, -(-Cout // 128) * 128)     # lane-dense output channels

    # --- row-block tiling of the stride-1 output rows ---
    target_rows = 1024
    rh = max(8, (target_rows // Wp) // 8 * 8)
    rh = min(rh, -(-H // 8) * 8)
    nbh = -(-H // rh)
    Hpo = nbh * rh                                 # padded stride-1 output rows
    tm = rh * Wp                                   # conv rows computed per grid step

    # --- Cout tiling: fold small-Cin taps into K; tile Cout only when Cin large ---
    fold = Cin_p <= 64
    if fold or Cout_pad <= 256:
        tc = Cout_pad
    elif Cout_pad % 256 == 0:
        tc = 256
    else:
        tc = 128
    nc = Cout_pad // tc

    # --- glue: NCHW -> NHWC bf16, channel + spatial zero-pad, halo row-blocks ---
    x = jnp.transpose(x_nchw, (0, 2, 3, 1)).astype(jnp.bfloat16)
    x = jnp.pad(x, ((0, 0), (0, 0), (0, 0), (0, Cin_p - Cin)))
    xp = jnp.pad(x, ((0, 0), (pad, Hpo - H + pad + 1), (pad, pad), (0, 0)))
    # row window m covers padded rows [m*rh, m*rh + rh + KH)
    row_idx = jnp.arange(nbh)[:, None] * rh + jnp.arange(rh + KH)[None, :]
    xh = jnp.take(xp, row_idx, axis=1)             # (N, nbh, rh+KH, Wp, Cin_p)
    xh = xh.reshape(N * nbh, (rh + KH) * Wp, Cin_p)

    # weights: (Cout, Cin, KH, KW) -> (KH*KW*Cin_p, Cout_pad), bf16, tap-major
    w = jnp.transpose(conv_w, (2, 3, 1, 0)).reshape(KH * KW, Cin, Cout)
    w = jnp.pad(w.astype(jnp.bfloat16),
                ((0, 0), (0, Cin_p - Cin), (0, Cout_pad - Cout)))
    w = w.reshape(KH * KW * Cin_p, Cout_pad)

    # validity mask over the stride-1 grid (selects strided outputs, drops the
    # Wp-W wrap-around columns and the bottom padding rows -> exact BN stats)
    r = jnp.arange(Hpo)
    c = jnp.arange(Wp)
    if s == 1:
        rv, cv = r < OH, c < OW
    else:
        rv = (r % s == 0) & (r < OH * s)
        cv = (c % s == 0) & (c < OW * s)
    mask = (rv[:, None] & cv[None, :]).astype(jnp.float32).reshape(nbh, tm, 1)

    tap_offsets = tuple(kh * Wp + kw for kh in range(KH) for kw in range(KW))
    vmem_limit = _vmem_limit_bytes()

    # invariant weight block -> single-buffer it; streamed (Cout-tiled) -> default
    w_spec_kwargs = dict(pipeline_mode=pl.Buffered(1)) if nc == 1 else {}

    # --- Pallas kernel 1: conv + per-block BN partial statistics ---
    y, bsum, bssq = pl.pallas_call(
        _make_conv_stats_kernel(tap_offsets, tm, Cin_p, fold),
        out_shape=(
            jax.ShapeDtypeStruct((N, nbh * tm, Cout_pad), jnp.bfloat16),
            jax.ShapeDtypeStruct((N * nbh, 1, Cout_pad), jnp.float32),
            jax.ShapeDtypeStruct((N * nbh, 1, Cout_pad), jnp.float32),
        ),
        grid=(nbh, N, nc),
        in_specs=[
            pl.BlockSpec((None, (rh + KH) * Wp, Cin_p),
                         lambda m, n, c: (n * nbh + m, 0, 0)),
            pl.BlockSpec((KH * KW * Cin_p, tc), lambda m, n, c: (0, c),
                         **w_spec_kwargs),
            pl.BlockSpec((None, tm, 1), lambda m, n, c: (m, 0, 0)),
        ],
        out_specs=(
            pl.BlockSpec((None, tm, tc), lambda m, n, c: (n, m, c)),
            pl.BlockSpec((None, 1, tc), lambda m, n, c: (n * nbh + m, 0, c)),
            pl.BlockSpec((None, 1, tc), lambda m, n, c: (n * nbh + m, 0, c)),
        ),
        compiler_params=pltpu.CompilerParams(
            dimension_semantics=("parallel", "parallel", "arbitrary"),
            vmem_limit_bytes=vmem_limit),
    )(xh, w, mask)

    # --- glue: fold training-mode BN (batch mean, biased var) into scale/bias ---
    count = jnp.float32(N * OH * OW)
    tot = jnp.sum(bsum, axis=0)                    # (1, Cout_pad)
    tot2 = jnp.sum(bssq, axis=0)
    mean = tot / count
    var = jnp.maximum(tot2 / count - mean * mean, 0.0)
    g = jnp.pad(gamma.astype(jnp.float32), (0, Cout_pad - Cout)).reshape(1, Cout_pad)
    b = jnp.pad(beta.astype(jnp.float32), (0, Cout_pad - Cout)).reshape(1, Cout_pad)
    scale = g * lax.rsqrt(var + eps)
    bias = b - mean * scale

    # --- Pallas kernel 2: BN apply + Mish (lane-dense, byte-budgeted tiles) ---
    total_rows = N * nbh * tm
    y2 = y.reshape(total_rows, Cout_pad)
    nchunks = N * nbh
    # ~12 B per (row, lane): bf16 in + f32 out, double-buffered pipeline stages.
    budget = 8 * 1024 * 1024
    cap_rows = max(tm, budget // (12 * Cout_pad))
    k = 1
    for d in range(1, nchunks + 1):
        if nchunks % d == 0 and d * tm <= cap_rows:
            k = d
    tm2 = k * tm

    out_flat = pl.pallas_call(
        _bn_mish_kernel,
        out_shape=jax.ShapeDtypeStruct((total_rows, Cout_pad), jnp.float32),
        grid=(total_rows // tm2,),
        in_specs=[
            pl.BlockSpec((tm2, Cout_pad), lambda i: (i, 0)),
            pl.BlockSpec((1, Cout_pad), lambda i: (0, 0)),
            pl.BlockSpec((1, Cout_pad), lambda i: (0, 0)),
        ],
        out_specs=pl.BlockSpec((tm2, Cout_pad), lambda i: (i, 0)),
        compiler_params=pltpu.CompilerParams(
            dimension_semantics=("parallel",),
            vmem_limit_bytes=vmem_limit),
    )(y2, scale, bias)

    # --- glue: extract the strided valid outputs, back to NCHW ---
    out_img = out_flat.reshape(N, Hpo, Wp, Cout_pad)
    out_nhwc = out_img[:, 0:(OH - 1) * s + 1:s, 0:(OW - 1) * s + 1:s, :Cout]
    return jnp.transpose(out_nhwc, (0, 3, 1, 2))


# ----------------------------------------------------------------------------
# Pure-JAX f32 reference (correctness check only).
# ----------------------------------------------------------------------------
def reference_forward(x_nchw, conv_w, gamma, beta, *, stride=1, eps=1e-5):
    pad = conv_w.shape[2] // 2
    y = lax.conv_general_dilated(
        x_nchw.astype(jnp.float32), conv_w.astype(jnp.float32),
        window_strides=(stride, stride),
        padding=[(pad, pad), (pad, pad)],
        dimension_numbers=("NCHW", "OIHW", "NCHW"))
    mean = jnp.mean(y, axis=(0, 2, 3), keepdims=True)
    var = jnp.mean((y - mean) ** 2, axis=(0, 2, 3), keepdims=True)
    g = gamma.reshape(1, -1, 1, 1)
    b = beta.reshape(1, -1, 1, 1)
    xn = (y - mean) * lax.rsqrt(var + eps) * g + b
    sp = jnp.where(xn > 20.0, xn, jnp.log1p(jnp.exp(jnp.minimum(xn, 20.0))))
    return xn * jnp.tanh(sp)


if __name__ == "__main__":
    key = jax.random.PRNGKey(0)
    k_x, k_w = jax.random.split(key)

    # BasicConv(in_channels=4, out_channels=8, kernel_size=3, stride=1), NCHW input.
    N, Cin, H, W = 2, 4, 16, 16
    Cout, ksize, stride = 8, 3, 1

    x = jax.random.normal(k_x, (N, Cin, H, W), dtype=jnp.float32)
    conv_w = jax.random.normal(k_w, (Cout, Cin, ksize, ksize),
                               dtype=jnp.float32) * 0.1
    gamma = jnp.ones((Cout,), dtype=jnp.float32)   # BatchNorm2d default weight
    beta = jnp.zeros((Cout,), dtype=jnp.float32)   # BatchNorm2d default bias

    out = basic_conv_forward(x, conv_w, gamma, beta, stride=stride)
    out = jax.block_until_ready(out)

    ref = reference_forward(x, conv_w, gamma, beta, stride=stride)
    assert out.shape == (N, Cout, H // stride, W // stride), out.shape
    # bf16 MXU inputs + bf16 intermediate y -> compare against the f32 reference
    # with bf16-appropriate tolerances.
    assert jnp.allclose(out, ref, atol=3e-2, rtol=3e-2), \
        float(jnp.max(jnp.abs(out - ref)))

    print("KERNEL_OK")
</pallas_src>

<mosaic_0001>
module attributes {stable_mosaic.version = 11 : i64} {
  func.func @kernel(%arg0: i32, %arg1: i32, %arg2: i32, %arg3: memref<1x342x8xbf16, #tpu.memory_space<vmem>>, %arg4: memref<72x128xbf16, #tpu.memory_space<vmem>>, %arg5: memref<1x288x1xf32, #tpu.memory_space<vmem>>, %arg6: memref<1x288x128xbf16, #tpu.memory_space<vmem>>, %arg7: memref<1x1x128xf32, #tpu.memory_space<vmem>>, %arg8: memref<1x1x128xf32, #tpu.memory_space<vmem>>) attributes {dimension_semantics = [#tpu.dimension_semantics<parallel>, #tpu.dimension_semantics<parallel>, #tpu.dimension_semantics<arbitrary>], iteration_bounds = array<i64: 1, 2, 1>, scalar_prefetch = 0 : i64, scratch_operands = 0 : i64, tpu.core_type = #tpu.core_type<tc>, window_params = [{transform_indices = @transform_0, window_bounds = array<i64: 1, 342, 8>}, {pipeline_mode = #tpu.pipeline_mode<synchronous>, transform_indices = @transform_1, window_bounds = array<i64: 72, 128>}, {transform_indices = @transform_2, window_bounds = array<i64: 1, 288, 1>}, {transform_indices = @transform_3, window_bounds = array<i64: 1, 288, 128>}, {transform_indices = @transform_4, window_bounds = array<i64: 1, 1, 128>}, {transform_indices = @transform_5, window_bounds = array<i64: 1, 1, 128>}]} {
    %c0 = arith.constant 0 : index
    %c0_0 = arith.constant 0 : index
    %c0_1 = arith.constant 0 : index
    %0 = vector.load %arg3[%c0, %c0_0, %c0_1] : memref<1x342x8xbf16, #tpu.memory_space<vmem>>, vector<1x288x8xbf16>
    %1 = vector.shape_cast %0 : vector<1x288x8xbf16> to vector<288x8xbf16>
    %c0_2 = arith.constant 0 : index
    %c1 = arith.constant 1 : index
    %c0_3 = arith.constant 0 : index
    %2 = vector.load %arg3[%c0_2, %c1, %c0_3] : memref<1x342x8xbf16, #tpu.memory_space<vmem>>, vector<1x288x8xbf16>
    %3 = vector.shape_cast %2 : vector<1x288x8xbf16> to vector<288x8xbf16>
    %c0_4 = arith.constant 0 : index
    %c2 = arith.constant 2 : index
    %c0_5 = arith.constant 0 : index
    %4 = vector.load %arg3[%c0_4, %c2, %c0_5] : memref<1x342x8xbf16, #tpu.memory_space<vmem>>, vector<1x288x8xbf16>
    %5 = vector.shape_cast %4 : vector<1x288x8xbf16> to vector<288x8xbf16>
    %c0_6 = arith.constant 0 : index
    %c18 = arith.constant 18 : index
    %c0_7 = arith.constant 0 : index
    %6 = vector.load %arg3[%c0_6, %c18, %c0_7] : memref<1x342x8xbf16, #tpu.memory_space<vmem>>, vector<1x288x8xbf16>
    %7 = vector.shape_cast %6 : vector<1x288x8xbf16> to vector<288x8xbf16>
    %c0_8 = arith.constant 0 : index
    %c19 = arith.constant 19 : index
    %c0_9 = arith.constant 0 : index
    %8 = vector.load %arg3[%c0_8, %c19, %c0_9] : memref<1x342x8xbf16, #tpu.memory_space<vmem>>, vector<1x288x8xbf16>
    %9 = vector.shape_cast %8 : vector<1x288x8xbf16> to vector<288x8xbf16>
    %c0_10 = arith.constant 0 : index
    %c20 = arith.constant 20 : index
    %c0_11 = arith.constant 0 : index
    %10 = vector.load %arg3[%c0_10, %c20, %c0_11] : memref<1x342x8xbf16, #tpu.memory_space<vmem>>, vector<1x288x8xbf16>
    %11 = vector.shape_cast %10 : vector<1x288x8xbf16> to vector<288x8xbf16>
    %c0_12 = arith.constant 0 : index
    %c36 = arith.constant 36 : index
    %c0_13 = arith.constant 0 : index
    %12 = vector.load %arg3[%c0_12, %c36, %c0_13] : memref<1x342x8xbf16, #tpu.memory_space<vmem>>, vector<1x288x8xbf16>
    %13 = vector.shape_cast %12 : vector<1x288x8xbf16> to vector<288x8xbf16>
    %c0_14 = arith.constant 0 : index
    %c37 = arith.constant 37 : index
    %c0_15 = arith.constant 0 : index
    %14 = vector.load %arg3[%c0_14, %c37, %c0_15] : memref<1x342x8xbf16, #tpu.memory_space<vmem>>, vector<1x288x8xbf16>
    %15 = vector.shape_cast %14 : vector<1x288x8xbf16> to vector<288x8xbf16>
    %c0_16 = arith.constant 0 : index
    %c38 = arith.constant 38 : index
    %c0_17 = arith.constant 0 : index
    %16 = vector.load %arg3[%c0_16, %c38, %c0_17] : memref<1x342x8xbf16, #tpu.memory_space<vmem>>, vector<1x288x8xbf16>
    %17 = vector.shape_cast %16 : vector<1x288x8xbf16> to vector<288x8xbf16>
    %18 = tpu.concatenate %1, %3, %5, %7, %9, %11, %13, %15, %17 in 1 : vector<288x8xbf16>, vector<288x8xbf16>, vector<288x8xbf16>, vector<288x8xbf16>, vector<288x8xbf16>, vector<288x8xbf16>, vector<288x8xbf16>, vector<288x8xbf16>, vector<288x8xbf16> -> vector<288x72xbf16>
    %c0_18 = arith.constant 0 : index
    %c0_19 = arith.constant 0 : index
    %19 = vector.load %arg4[%c0_18, %c0_19] : memref<72x128xbf16, #tpu.memory_space<vmem>>, vector<72x128xbf16>
    %cst = arith.constant dense<0.000000e+00> : vector<288x128xf32>
    %20 = tpu.matmul %18, %19, %cst {dimension_numbers = #tpu.dot_dimension_numbers<[1], [0], [0], [1], [0, 0, 1, 1], [], []>} : vector<288x72xbf16>, vector<72x128xbf16>, vector<288x128xf32> -> vector<288x128xf32>
    %21 = arith.truncf %20 : vector<288x128xf32> to vector<288x128xbf16>
    %c0_20 = arith.constant 0 : index
    %c0_21 = arith.constant 0 : index
    %c0_22 = arith.constant 0 : index
    %22 = vector.load %arg6[%c0_20, %c0_21, %c0_22] : memref<1x288x128xbf16, #tpu.memory_space<vmem>>, vector<1x288x128xbf16>
    %23 = vector.shape_cast %22 : vector<1x288x128xbf16> to vector<288x128xbf16>
    %24 = vector.shape_cast %21 : vector<288x128xbf16> to vector<1x288x128xbf16>
    tpu.vector_store %arg6[%c0_20, %c0_21, %c0_22], %24 {strides = array<i32>} : memref<1x288x128xbf16, #tpu.memory_space<vmem>>, vector<1x288x128xbf16>,
    %c0_23 = arith.constant 0 : index
    %c0_24 = arith.constant 0 : index
    %c0_25 = arith.constant 0 : index
    %25 = vector.load %arg5[%c0_23, %c0_24, %c0_25] : memref<1x288x1xf32, #tpu.memory_space<vmem>>, vector<1x288x1xf32>
    %26 = vector.shape_cast %25 : vector<1x288x1xf32> to vector<288x1xf32>
    %27 = vector.broadcast %26 : vector<288x1xf32> to vector<288x128xf32>
    %28 = arith.mulf %20, %27 : vector<288x128xf32>
    %cst_26 = arith.constant dense<0.000000e+00> : vector<128xf32>
    %29 = vector.multi_reduction <add>, %28, %cst_26 [0] : vector<288x128xf32> to vector<128xf32>
    %30 = vector.shape_cast %29 : vector<128xf32> to vector<1x128xf32>
    %c0_27 = arith.constant 0 : index
    %c0_28 = arith.constant 0 : index
    %c0_29 = arith.constant 0 : index
    %31 = vector.load %arg7[%c0_27, %c0_28, %c0_29] : memref<1x1x128xf32, #tpu.memory_space<vmem>>, vector<1x1x128xf32>
    %32 = vector.shape_cast %31 : vector<1x1x128xf32> to vector<1x128xf32>
    %33 = vector.shape_cast %30 : vector<1x128xf32> to vector<1x1x128xf32>
    tpu.vector_store %arg7[%c0_27, %c0_28, %c0_29], %33 {strides = array<i32>} : memref<1x1x128xf32, #tpu.memory_space<vmem>>, vector<1x1x128xf32>,
    %34 = arith.mulf %28, %20 : vector<288x128xf32>
    %cst_30 = arith.constant dense<0.000000e+00> : vector<128xf32>
    %35 = vector.multi_reduction <add>, %34, %cst_30 [0] : vector<288x128xf32> to vector<128xf32>
    %36 = vector.shape_cast %35 : vector<128xf32> to vector<1x128xf32>
    %c0_31 = arith.constant 0 : index
    %c0_32 = arith.constant 0 : index
    %c0_33 = arith.constant 0 : index
    %37 = vector.load %arg8[%c0_31, %c0_32, %c0_33] : memref<1x1x128xf32, #tpu.memory_space<vmem>>, vector<1x1x128xf32>
    %38 = vector.shape_cast %37 : vector<1x1x128xf32> to vector<1x128xf32>
    %39 = vector.shape_cast %36 : vector<1x128xf32> to vector<1x1x128xf32>
    tpu.vector_store %arg8[%c0_31, %c0_32, %c0_33], %39 {strides = array<i32>} : memref<1x1x128xf32, #tpu.memory_space<vmem>>, vector<1x1x128xf32>,
    return
  }
  func.func @transform_0(%arg0: i32, %arg1: i32, %arg2: i32) -> (i32, i32, i32) {
    %c1_i32 = arith.constant 1 : i32
    %0 = arith.muli %arg1, %c1_i32 : i32
    %1 = arith.addi %0, %arg0 : i32
    %c0_i32 = arith.constant 0 : i32
    %c0_i32_0 = arith.constant 0 : i32
    %c0_i32_1 = arith.constant 0 : i32
    return %1, %c0_i32, %c0_i32_0 : i32, i32, i32
  }
  func.func @transform_1(%arg0: i32, %arg1: i32, %arg2: i32) -> (i32, i32) {
    %c0_i32 = arith.constant 0 : i32
    %c0_i32_0 = arith.constant 0 : i32
    return %c0_i32, %arg2 : i32, i32
  }
  func.func @transform_2(%arg0: i32, %arg1: i32, %arg2: i32) -> (i32, i32, i32) {
    %c0_i32 = arith.constant 0 : i32
    %c0_i32_0 = arith.constant 0 : i32
    %c0_i32_1 = arith.constant 0 : i32
    return %arg0, %c0_i32, %c0_i32_0 : i32, i32, i32
  }
  func.func @transform_3(%arg0: i32, %arg1: i32, %arg2: i32) -> (i32, i32, i32) {
    %c0_i32 = arith.constant 0 : i32
    return %arg1, %arg0, %arg2 : i32, i32, i32
  }
  func.func @transform_4(%arg0: i32, %arg1: i32, %arg2: i32) -> (i32, i32, i32) {
    %c1_i32 = arith.constant 1 : i32
    %0 = arith.muli %arg1, %c1_i32 : i32
    %1 = arith.addi %0, %arg0 : i32
    %c0_i32 = arith.constant 0 : i32
    %c0_i32_0 = arith.constant 0 : i32
    return %1, %c0_i32, %arg2 : i32, i32, i32
  }
  func.func @transform_5(%arg0: i32, %arg1: i32, %arg2: i32) -> (i32, i32, i32) {
    %c1_i32 = arith.constant 1 : i32
    %0 = arith.muli %arg1, %c1_i32 : i32
    %1 = arith.addi %0, %arg0 : i32
    %c0_i32 = arith.constant 0 : i32
    %c0_i32_0 = arith.constant 0 : i32
    return %1, %c0_i32, %arg2 : i32, i32, i32
  }
}

module attributes {stable_mosaic.version = 11 : i64} {
  func.func @_bn_mish_kernel(%arg0: i32, %arg1: memref<576x128xbf16, #tpu.memory_space<vmem>>, %arg2: memref<1x128xf32, #tpu.memory_space<vmem>>, %arg3: memref<1x128xf32, #tpu.memory_space<vmem>>, %arg4: memref<576x128xf32, #tpu.memory_space<vmem>>) attributes {dimension_semantics = [#tpu.dimension_semantics<parallel>], iteration_bounds = array<i64: 1>, scalar_prefetch = 0 : i64, scratch_operands = 0 : i64, tpu.core_type = #tpu.core_type<tc>, window_params = [{transform_indices = @transform_0, window_bounds = array<i64: 576, 128>}, {pipeline_mode = #tpu.pipeline_mode<synchronous>, transform_indices = @transform_1, window_bounds = array<i64: 1, 128>}, {pipeline_mode = #tpu.pipeline_mode<synchronous>, transform_indices = @transform_2, window_bounds = array<i64: 1, 128>}, {transform_indices = @transform_3, window_bounds = array<i64: 576, 128>}]} {
    %c0 = arith.constant 0 : index
    %c0_0 = arith.constant 0 : index
    %0 = vector.load %arg1[%c0, %c0_0] : memref<576x128xbf16, #tpu.memory_space<vmem>>, vector<576x128xbf16>
    %1 = arith.extf %0 : vector<576x128xbf16> to vector<576x128xf32>
    %c0_1 = arith.constant 0 : index
    %c0_2 = arith.constant 0 : index
    %2 = vector.load %arg2[%c0_1, %c0_2] : memref<1x128xf32, #tpu.memory_space<vmem>>, vector<1x128xf32>
    %3 = vector.broadcast %2 : vector<1x128xf32> to vector<576x128xf32>
    %4 = arith.mulf %1, %3 : vector<576x128xf32>
    %c0_3 = arith.constant 0 : index
    %c0_4 = arith.constant 0 : index
    %5 = vector.load %arg3[%c0_3, %c0_4] : memref<1x128xf32, #tpu.memory_space<vmem>>, vector<1x128xf32>
    %6 = vector.broadcast %5 : vector<1x128xf32> to vector<576x128xf32>
    %7 = arith.addf %4, %6 : vector<576x128xf32>
    %cst = arith.constant 2.000000e+01 : f32
    %8 = vector.broadcast %cst : f32 to vector<576x128xf32>
    %9 = arith.minimumf %7, %8 : vector<576x128xf32>
    %10 = math.exp %9 : vector<576x128xf32>
    %cst_5 = arith.constant 2.000000e+00 : f32
    %11 = vector.broadcast %cst_5 : f32 to vector<576x128xf32>
    %12 = arith.addf %10, %11 : vector<576x128xf32>
    %13 = arith.mulf %10, %12 : vector<576x128xf32>
    %cst_6 = arith.constant 2.000000e+00 : f32
    %14 = vector.broadcast %cst_6 : f32 to vector<576x128xf32>
    %15 = arith.addf %13, %14 : vector<576x128xf32>
    %16 = tpu.reciprocal %15 {approx = true} : vector<576x128xf32> -> vector<576x128xf32>
    %17 = arith.mulf %15, %16 : vector<576x128xf32>
    %cst_7 = arith.constant 2.000000e+00 : f32
    %18 = vector.broadcast %cst_7 : f32 to vector<576x128xf32>
    %19 = arith.subf %18, %17 : vector<576x128xf32>
    %20 = arith.mulf %16, %19 : vector<576x128xf32>
    %cst_8 = arith.constant 2.000000e+01 : f32
    %21 = vector.broadcast %cst_8 : f32 to vector<576x128xf32>
    %22 = arith.cmpf ogt, %7, %21 : vector<576x128xf32>
    %23 = arith.mulf %7, %13 : vector<576x128xf32>
    %24 = arith.mulf %23, %20 : vector<576x128xf32>
    %25 = arith.select %22, %7, %24 : vector<576x128xi1>, vector<576x128xf32>
    %c0_9 = arith.constant 0 : index
    %c0_10 = arith.constant 0 : index
    %26 = vector.load %arg4[%c0_9, %c0_10] : memref<576x128xf32, #tpu.memory_space<vmem>>, vector<576x128xf32>
    tpu.vector_store %arg4[%c0_9, %c0_10], %25 {strides = array<i32>} : memref<576x128xf32, #tpu.memory_space<vmem>>, vector<576x128xf32>,
    return
  }
  func.func @transform_0(%arg0: i32) -> (i32, i32) {
    %c0_i32 = arith.constant 0 : i32
    %c0_i32_0 = arith.constant 0 : i32
    return %arg0, %c0_i32 : i32, i32
  }
  func.func @transform_1(%arg0: i32) -> (i32, i32) {
    %c0_i32 = arith.constant 0 : i32
    %c0_i32_0 = arith.constant 0 : i32
    %c0_i32_1 = arith.constant 0 : i32
    return %c0_i32, %c0_i32_0 : i32, i32
  }
  func.func @transform_2(%arg0: i32) -> (i32, i32) {
    %c0_i32 = arith.constant 0 : i32
    %c0_i32_0 = arith.constant 0 : i32
    %c0_i32_1 = arith.constant 0 : i32
    return %c0_i32, %c0_i32_0 : i32, i32
  }
  func.func @transform_3(%arg0: i32) -> (i32, i32) {
    %c0_i32 = arith.constant 0 : i32
    %c0_i32_0 = arith.constant 0 : i32
    return %arg0, %c0_i32 : i32, i32
  }
}

</mosaic_0001>

<llo_original>
// kernel: basic_conv_forward.3
$region0: #{basic_conv_forward.3}
  #allocation0 [shape = 'u32[]', space=smem, size = 0x4, offset = 0x4, fixed_abs, tag = 'smem constant byte address 0x4 - core index']
  #allocation1 [shape = 'u32[72,128]{1,0:T(1,128)}', space=vmem, size = 0x9000, scoped, tag = 'internal scratch']
  %s0 = inlined_call_operand.vmem [shape: bf16[576,128], index: 0, kind: input, shape index: {}]
  %s1 = inlined_call_operand.vmem [shape: f32[1,128], index: 1, kind: input, shape index: {}]
  %s2 = inlined_call_operand.vmem [shape: f32[1,128], index: 2, kind: input, shape index: {}]
  %s3 = inlined_call_operand.vmem [shape: f32[576,128], index: 3, kind: output, shape index: {}]
  %s4 = sld [smem:[#allocation0]]
  $region22: #{basic_conv_forward.3} parent=0
    _
  %s6 = ssub.s32 1, %s4
  %s7 = scalar_select 0, %s6, %s4
  // Predicated region
  $region2: #{basic_conv_forward.3} parent=0 // pred_check
    _
  $region3: #{basic_conv_forward.3} parent=0 // pred_check_branch
    %9 = sbr.rel (0) target = $region5
  $region4: #{basic_conv_forward.3} parent=0 // pred_region
    _
  $region5: #{basic_conv_forward.3} parent=0 // pred_fallthru
    _
  // Predicated region
  $region6: #{basic_conv_forward.3} parent=0 // pred_check
    _
  $region7: #{basic_conv_forward.3} parent=0 // pred_check_branch
    %11 = sbr.rel (0) target = $region9
  $region8: #{basic_conv_forward.3} parent=0 // pred_region
    _
  $region9: #{basic_conv_forward.3} parent=0 // pred_fallthru
    _
  // Predicated region
  $region10: #{basic_conv_forward.3} parent=0 // pred_check
    _
  $region11: #{basic_conv_forward.3} parent=0 // pred_check_branch
    %13 = sbr.rel (0) target = $region13
  $region12: #{basic_conv_forward.3} parent=0 // pred_region
    _
  $region13: #{basic_conv_forward.3} parent=0 // pred_fallthru
    _
  %v14 = vld [vmem:[%s0] sm:$0xf]
  %v15 = vld [vmem:[%s0 + $0x4] sm:$0xf]
  %v16 = vld [vmem:[%s0 + $0x8] sm:$0xf]
  %v17 = vld [vmem:[%s0 + $0xc] sm:$0xf]
  %v18 = vld [vmem:[%s0 + $0x10] sm:$0xf]
  %v19 = vld [vmem:[%s0 + $0x14] sm:$0xf]
  %v20 = vld [vmem:[%s0 + $0x18] sm:$0xf]
  %v21 = vld [vmem:[%s0 + $0x1c] sm:$0xf]
  %v22 = vld [vmem:[%s0 + $0x20] sm:$0xf]
  %v23 = vld [vmem:[%s0 + $0x24] sm:$0xf]
  %v24 = vld [vmem:[%s0 + $0x28] sm:$0xf]
  %v25 = vld [vmem:[%s0 + $0x2c] sm:$0xf]
  %v26 = vld [vmem:[%s0 + $0x30] sm:$0xf]
  %v27 = vld [vmem:[%s0 + $0x34] sm:$0xf]
  %v28 = vld [vmem:[%s0 + $0x38] sm:$0xf]
  %v29 = vld [vmem:[%s0 + $0x3c] sm:$0xf]
  %v30 = vld [vmem:[%s0 + $0x40] sm:$0xf]
  %v31 = vld [vmem:[%s0 + $0x44] sm:$0xf]
  %v32 = vld [vmem:[%s0 + $0x48] sm:$0xf]
  %v33 = vld [vmem:[%s0 + $0x4c] sm:$0xf]
  %v34 = vld [vmem:[%s0 + $0x50] sm:$0xf]
  %v35 = vld [vmem:[%s0 + $0x54] sm:$0xf]
  %v36 = vld [vmem:[%s0 + $0x58] sm:$0xf]
  %v37 = vld [vmem:[%s0 + $0x5c] sm:$0xf]
  %v38 = vld [vmem:[%s0 + $0x60] sm:$0xf]
  %v39 = vld [vmem:[%s0 + $0x64] sm:$0xf]
  %v40 = vld [vmem:[%s0 + $0x68] sm:$0xf]
  %v41 = vld [vmem:[%s0 + $0x6c] sm:$0xf]
  %v42 = vld [vmem:[%s0 + $0x70] sm:$0xf]
  %v43 = vld [vmem:[%s0 + $0x74] sm:$0xf]
  %v44 = vld [vmem:[%s0 + $0x78] sm:$0xf]
  %v45 = vld [vmem:[%s0 + $0x7c] sm:$0xf]
  %v46 = vld [vmem:[%s0 + $0x80] sm:$0xf]
  %v47 = vld [vmem:[%s0 + $0x84] sm:$0xf]
  %v48 = vld [vmem:[%s0 + $0x88] sm:$0xf]
  %v49 = vld [vmem:[%s0 + $0x8c] sm:$0xf]
  %v50 = vld [vmem:[%s0 + $0x90] sm:$0xf]
  %v51 = vld [vmem:[%s0 + $0x94] sm:$0xf]
  %v52 = vld [vmem:[%s0 + $0x98] sm:$0xf]
  %v53 = vld [vmem:[%s0 + $0x9c] sm:$0xf]
  %v54 = vld [vmem:[%s0 + $0xa0] sm:$0xf]
  %v55 = vld [vmem:[%s0 + $0xa4] sm:$0xf]
  %v56 = vld [vmem:[%s0 + $0xa8] sm:$0xf]
  %v57 = vld [vmem:[%s0 + $0xac] sm:$0xf]
  %v58 = vld [vmem:[%s0 + $0xb0] sm:$0xf]
  %v59 = vld [vmem:[%s0 + $0xb4] sm:$0xf]
  %v60 = vld [vmem:[%s0 + $0xb8] sm:$0xf]
  %v61 = vld [vmem:[%s0 + $0xbc] sm:$0xf]
  %v62 = vld [vmem:[%s0 + $0xc0] sm:$0xf]
  %v63 = vld [vmem:[%s0 + $0xc4] sm:$0xf]
  %v64 = vld [vmem:[%s0 + $0xc8] sm:$0xf]
  %v65 = vld [vmem:[%s0 + $0xcc] sm:$0xf]
  %v66 = vld [vmem:[%s0 + $0xd0] sm:$0xf]
  %v67 = vld [vmem:[%s0 + $0xd4] sm:$0xf]
  %v68 = vld [vmem:[%s0 + $0xd8] sm:$0xf]
  %v69 = vld [vmem:[%s0 + $0xdc] sm:$0xf]
  %v70 = vld [vmem:[%s0 + $0xe0] sm:$0xf]
  %v71 = vld [vmem:[%s0 + $0xe4] sm:$0xf]
  %v72 = vld [vmem:[%s0 + $0xe8] sm:$0xf]
  %v73 = vld [vmem:[%s0 + $0xec] sm:$0xf]
  %v74 = vld [vmem:[%s0 + $0xf0] sm:$0xf]
  %v75 = vld [vmem:[%s0 + $0xf4] sm:$0xf]
  %v76 = vld [vmem:[%s0 + $0xf8] sm:$0xf]
  %v77 = vld [vmem:[%s0 + $0xfc] sm:$0xf]
  %v78 = vld [vmem:[%s0 + $0x100] sm:$0xf]
  %v79 = vld [vmem:[%s0 + $0x104] sm:$0xf]
  %v80 = vld [vmem:[%s0 + $0x108] sm:$0xf]
  %v81 = vld [vmem:[%s0 + $0x10c] sm:$0xf]
  %v82 = vld [vmem:[%s0 + $0x110] sm:$0xf]
  %v83 = vld [vmem:[%s0 + $0x114] sm:$0xf]
  %v84 = vld [vmem:[%s0 + $0x118] sm:$0xf]
  %v85 = vld [vmem:[%s0 + $0x11c] sm:$0xf]
  %v86 = vunpack.c.l.bf16 %v14
  %v87 = vunpack.c.l.bf16 %v15
  %v88 = vunpack.c.l.bf16 %v16
  %v89 = vunpack.c.l.bf16 %v17
  %v90 = vunpack.c.l.bf16 %v18
  %v91 = vunpack.c.l.bf16 %v19
  %v92 = vunpack.c.l.bf16 %v20
  %v93 = vunpack.c.l.bf16 %v21
  %v94 = vunpack.c.l.bf16 %v22
  %v95 = vunpack.c.l.bf16 %v23
  %v96 = vunpack.c.l.bf16 %v24
  %v97 = vunpack.c.l.bf16 %v25
  %v98 = vunpack.c.l.bf16 %v26
  %v99 = vunpack.c.l.bf16 %v27
  %v100 = vunpack.c.l.bf16 %v28
  %v101 = vunpack.c.l.bf16 %v29
  %v102 = vunpack.c.l.bf16 %v30
  %v103 = vunpack.c.l.bf16 %v31
  %v104 = vunpack.c.l.bf16 %v32
  %v105 = vunpack.c.l.bf16 %v33
  %v106 = vunpack.c.l.bf16 %v34
  %v107 = vunpack.c.l.bf16 %v35
  %v108 = vunpack.c.l.bf16 %v36
  %v109 = vunpack.c.l.bf16 %v37
  %v110 = vunpack.c.l.bf16 %v38
  %v111 = vunpack.c.l.bf16 %v39
  %v112 = vunpack.c.l.bf16 %v40
  %v113 = vunpack.c.l.bf16 %v41
  %v114 = vunpack.c.l.bf16 %v42
  %v115 = vunpack.c.l.bf16 %v43
  %v116 = vunpack.c.l.bf16 %v44
  %v117 = vunpack.c.l.bf16 %v45
  %v118 = vunpack.c.l.bf16 %v46
  %v119 = vunpack.c.l.bf16 %v47
  %v120 = vunpack.c.l.bf16 %v48
  %v121 = vunpack.c.l.bf16 %v49
  %v122 = vunpack.c.l.bf16 %v50
  %v123 = vunpack.c.l.bf16 %v51
  %v124 = vunpack.c.l.bf16 %v52
  %v125 = vunpack.c.l.bf16 %v53
  %v126 = vunpack.c.l.bf16 %v54
  %v127 = vunpack.c.l.bf16 %v55
  %v128 = vunpack.c.l.bf16 %v56
  %v129 = vunpack.c.l.bf16 %v57
  %v130 = vunpack.c.l.bf16 %v58
  %v131 = vunpack.c.l.bf16 %v59
  %v132 = vunpack.c.l.bf16 %v60
  %v133 = vunpack.c.l.bf16 %v61
  %v134 = vunpack.c.l.bf16 %v62
  %v135 = vunpack.c.l.bf16 %v63
  %v136 = vunpack.c.l.bf16 %v64
  %v137 = vunpack.c.l.bf16 %v65
  %v138 = vunpack.c.l.bf16 %v66
  %v139 = vunpack.c.l.bf16 %v67
  %v140 = vunpack.c.l.bf16 %v68
  %v141 = vunpack.c.l.bf16 %v69
  %v142 = vunpack.c.l.bf16 %v70
  %v143 = vunpack.c.l.bf16 %v71
  %v144 = vunpack.c.l.bf16 %v72
  %v145 = vunpack.c.l.bf16 %v73
  %v146 = vunpack.c.l.bf16 %v74
  %v147 = vunpack.c.l.bf16 %v75
  %v148 = vunpack.c.l.bf16 %v76
  %v149 = vunpack.c.l.bf16 %v77
  %v150 = vunpack.c.l.bf16 %v78
  %v151 = vunpack.c.l.bf16 %v79
  %v152 = vunpack.c.l.bf16 %v80
  %v153 = vunpack.c.l.bf16 %v81
  %v154 = vunpack.c.l.bf16 %v82
  %v155 = vunpack.c.l.bf16 %v83
  %v156 = vunpack.c.l.bf16 %v84
  %v157 = vunpack.c.l.bf16 %v85
  %v158 = vld [vmem:[%s1] sm:$0x1]
  %v160 = vperm.slane %v158, 0
  %v162 = vmul.f32 %v86, %v160
  %v163 = vmul.f32 %v87, %v160
  %v164 = vmul.f32 %v88, %v160
  %v165 = vmul.f32 %v89, %v160
  %v166 = vmul.f32 %v90, %v160
  %v167 = vmul.f32 %v91, %v160
  %v168 = vmul.f32 %v92, %v160
  %v169 = vmul.f32 %v93, %v160
  %v170 = vmul.f32 %v94, %v160
  %v171 = vmul.f32 %v95, %v160
  %v172 = vmul.f32 %v96, %v160
  %v173 = vmul.f32 %v97, %v160
  %v174 = vmul.f32 %v98, %v160
  %v175 = vmul.f32 %v99, %v160
  %v176 = vmul.f32 %v100, %v160
  %v177 = vmul.f32 %v101, %v160
  %v178 = vmul.f32 %v102, %v160
  %v179 = vmul.f32 %v103, %v160
  %v180 = vmul.f32 %v104, %v160
  %v181 = vmul.f32 %v105, %v160
  %v182 = vmul.f32 %v106, %v160
  %v183 = vmul.f32 %v107, %v160
  %v184 = vmul.f32 %v108, %v160
  %v185 = vmul.f32 %v109, %v160
  %v186 = vmul.f32 %v110, %v160
  %v187 = vmul.f32 %v111, %v160
  %v188 = vmul.f32 %v112, %v160
  %v189 = vmul.f32 %v113, %v160
  %v190 = vmul.f32 %v114, %v160
  %v191 = vmul.f32 %v115, %v160
  %v192 = vmul.f32 %v116, %v160
  %v193 = vmul.f32 %v117, %v160
  %v194 = vmul.f32 %v118, %v160
  %v195 = vmul.f32 %v119, %v160
  %v196 = vmul.f32 %v120, %v160
  %v197 = vmul.f32 %v121, %v160
  %v198 = vmul.f32 %v122, %v160
  %v199 = vmul.f32 %v123, %v160
  %v200 = vmul.f32 %v124, %v160
  %v201 = vmul.f32 %v125, %v160
  %v202 = vmul.f32 %v126, %v160
  %v203 = vmul.f32 %v127, %v160
  %v204 = vmul.f32 %v128, %v160
  %v205 = vmul.f32 %v129, %v160
  %v206 = vmul.f32 %v130, %v160
  %v207 = vmul.f32 %v131, %v160
  %v208 = vmul.f32 %v132, %v160
  %v209 = vmul.f32 %v133, %v160
  %v210 = vmul.f32 %v134, %v160
  %v211 = vmul.f32 %v135, %v160
  %v212 = vmul.f32 %v136, %v160
  %v213 = vmul.f32 %v137, %v160
  %v214 = vmul.f32 %v138, %v160
  %v215 = vmul.f32 %v139, %v160
  %v216 = vmul.f32 %v140, %v160
  %v217 = vmul.f32 %v141, %v160
  %v218 = vmul.f32 %v142, %v160
  %v219 = vmul.f32 %v143, %v160
  %v220 = vmul.f32 %v144, %v160
  %v221 = vmul.f32 %v145, %v160
  %v222 = vmul.f32 %v146, %v160
  %v223 = vmul.f32 %v147, %v160
  %v224 = vmul.f32 %v148, %v160
  %v225 = vmul.f32 %v149, %v160
  %v226 = vmul.f32 %v150, %v160
  %v227 = vmul.f32 %v151, %v160
  %v228 = vmul.f32 %v152, %v160
  %v229 = vmul.f32 %v153, %v160
  %v230 = vmul.f32 %v154, %v160
  %v231 = vmul.f32 %v155, %v160
  %v232 = vmul.f32 %v156, %v160
  %v233 = vmul.f32 %v157, %v160
  %v234 = vld [vmem:[%s2] sm:$0x1]
  %v236 = vperm.slane %v234, 0
  %v238 = vadd.f32 %v162, %v236
  %v239 = vadd.f32 %v163, %v236
  %v240 = vadd.f32 %v164, %v236
  %v241 = vadd.f32 %v165, %v236
  %v242 = vadd.f32 %v166, %v236
  %v243 = vadd.f32 %v167, %v236
  %v244 = vadd.f32 %v168, %v236
  %v245 = vadd.f32 %v169, %v236
  %v246 = vadd.f32 %v170, %v236
  %v247 = vadd.f32 %v171, %v236
  %v248 = vadd.f32 %v172, %v236
  %v249 = vadd.f32 %v173, %v236
  %v250 = vadd.f32 %v174, %v236
  %v251 = vadd.f32 %v175, %v236
  %v252 = vadd.f32 %v176, %v236
  %v253 = vadd.f32 %v177, %v236
  %v254 = vadd.f32 %v178, %v236
  %v255 = vadd.f32 %v179, %v236
  %v256 = vadd.f32 %v180, %v236
  %v257 = vadd.f32 %v181, %v236
  %v258 = vadd.f32 %v182, %v236
  %v259 = vadd.f32 %v183, %v236
  %v260 = vadd.f32 %v184, %v236
  %v261 = vadd.f32 %v185, %v236
  %v262 = vadd.f32 %v186, %v236
  %v263 = vadd.f32 %v187, %v236
  %v264 = vadd.f32 %v188, %v236
  %v265 = vadd.f32 %v189, %v236
  %v266 = vadd.f32 %v190, %v236
  %v267 = vadd.f32 %v191, %v236
  %v268 = vadd.f32 %v192, %v236
  %v269 = vadd.f32 %v193, %v236
  %v270 = vadd.f32 %v194, %v236
  %v271 = vadd.f32 %v195, %v236
  %v272 = vadd.f32 %v196, %v236
  %v273 = vadd.f32 %v197, %v236
  %v274 = vadd.f32 %v198, %v236
  %v275 = vadd.f32 %v199, %v236
  %v276 = vadd.f32 %v200, %v236
  %v277 = vadd.f32 %v201, %v236
  %v278 = vadd.f32 %v202, %v236
  %v279 = vadd.f32 %v203, %v236
  %v280 = vadd.f32 %v204, %v236
  %v281 = vadd.f32 %v205, %v236
  %v282 = vadd.f32 %v206, %v236
  %v283 = vadd.f32 %v207, %v236
  %v284 = vadd.f32 %v208, %v236
  %v285 = vadd.f32 %v209, %v236
  %v286 = vadd.f32 %v210, %v236
  %v287 = vadd.f32 %v211, %v236
  %v288 = vadd.f32 %v212, %v236
  %v289 = vadd.f32 %v213, %v236
  %v290 = vadd.f32 %v214, %v236
  %v291 = vadd.f32 %v215, %v236
  %v292 = vadd.f32 %v216, %v236
  %v293 = vadd.f32 %v217, %v236
  %v294 = vadd.f32 %v218, %v236
  %v295 = vadd.f32 %v219, %v236
  %v296 = vadd.f32 %v220, %v236
  %v297 = vadd.f32 %v221, %v236
  %v298 = vadd.f32 %v222, %v236
  %v299 = vadd.f32 %v223, %v236
  %v300 = vadd.f32 %v224, %v236
  %v301 = vadd.f32 %v225, %v236
  %v302 = vadd.f32 %v226, %v236
  %v303 = vadd.f32 %v227, %v236
  %v304 = vadd.f32 %v228, %v236
  %v305 = vadd.f32 %v229, %v236
  %v306 = vadd.f32 %v230, %v236
  %v307 = vadd.f32 %v231, %v236
  %v308 = vadd.f32 %v232, %v236
  %v309 = vadd.f32 %v233, %v236
  %v310 = vmin.f32 %v238, 20.0
  %v311 = vmin.f32 %v239, 20.0
  %v312 = vmin.f32 %v240, 20.0
  %v313 = vmin.f32 %v241, 20.0
  %v314 = vmin.f32 %v242, 20.0
  %v315 = vmin.f32 %v243, 20.0
  %v316 = vmin.f32 %v244, 20.0
  %v317 = vmin.f32 %v245, 20.0
  %v318 = vmin.f32 %v246, 20.0
  %v319 = vmin.f32 %v247, 20.0
  %v320 = vmin.f32 %v248, 20.0
  %v321 = vmin.f32 %v249, 20.0
  %v322 = vmin.f32 %v250, 20.0
  %v323 = vmin.f32 %v251, 20.0
  %v324 = vmin.f32 %v252, 20.0
  %v325 = vmin.f32 %v253, 20.0
  %v326 = vmin.f32 %v254, 20.0
  %v327 = vmin.f32 %v255, 20.0
  %v328 = vmin.f32 %v256, 20.0
  %v329 = vmin.f32 %v257, 20.0
  %v330 = vmin.f32 %v258, 20.0
  %v331 = vmin.f32 %v259, 20.0
  %v332 = vmin.f32 %v260, 20.0
  %v333 = vmin.f32 %v261, 20.0
  %v334 = vmin.f32 %v262, 20.0
  %v335 = vmin.f32 %v263, 20.0
  %v336 = vmin.f32 %v264, 20.0
  %v337 = vmin.f32 %v265, 20.0
  %v338 = vmin.f32 %v266, 20.0
  %v339 = vmin.f32 %v267, 20.0
  %v340 = vmin.f32 %v268, 20.0
  %v341 = vmin.f32 %v269, 20.0
  %v342 = vmin.f32 %v270, 20.0
  %v343 = vmin.f32 %v271, 20.0
  %v344 = vmin.f32 %v272, 20.0
  %v345 = vmin.f32 %v273, 20.0
  %v346 = vmin.f32 %v274, 20.0
  %v347 = vmin.f32 %v275, 20.0
  %v348 = vmin.f32 %v276, 20.0
  %v349 = vmin.f32 %v277, 20.0
  %v350 = vmin.f32 %v278, 20.0
  %v351 = vmin.f32 %v279, 20.0
  %v352 = vmin.f32 %v280, 20.0
  %v353 = vmin.f32 %v281, 20.0
  %v354 = vmin.f32 %v282, 20.0
  %v355 = vmin.f32 %v283, 20.0
  %v356 = vmin.f32 %v284, 20.0
  %v357 = vmin.f32 %v285, 20.0
  %v358 = vmin.f32 %v286, 20.0
  %v359 = vmin.f32 %v287, 20.0
  %v360 = vmin.f32 %v288, 20.0
  %v361 = vmin.f32 %v289, 20.0
  %v362 = vmin.f32 %v290, 20.0
  %v363 = vmin.f32 %v291, 20.0
  %v364 = vmin.f32 %v292, 20.0
  %v365 = vmin.f32 %v293, 20.0
  %v366 = vmin.f32 %v294, 20.0
  %v367 = vmin.f32 %v295, 20.0
  %v368 = vmin.f32 %v296, 20.0
  %v369 = vmin.f32 %v297, 20.0
  %v370 = vmin.f32 %v298, 20.0
  %v371 = vmin.f32 %v299, 20.0
  %v372 = vmin.f32 %v300, 20.0
  %v373 = vmin.f32 %v301, 20.0
  %v374 = vmin.f32 %v302, 20.0
  %v375 = vmin.f32 %v303, 20.0
  %v376 = vmin.f32 %v304, 20.0
  %v377 = vmin.f32 %v305, 20.0
  %v378 = vmin.f32 %v306, 20.0
  %v379 = vmin.f32 %v307, 20.0
  %v380 = vmin.f32 %v308, 20.0
  %v381 = vmin.f32 %v309, 20.0
  %v382 = vmul.f32 %v310, 1.442695
  %v383 = vpow.pop %v382
  %v384 = vmul.f32 %v311, 1.442695
  %v385 = vpow.pop %v384
  %v386 = vmul.f32 %v312, 1.442695
  %v387 = vpow.pop %v386
  %v388 = vmul.f32 %v313, 1.442695
  %v389 = vpow.pop %v388
  %v390 = vmul.f32 %v314, 1.442695
  %v391 = vpow.pop %v390
  %v392 = vmul.f32 %v315, 1.442695
  %v393 = vpow.pop %v392
  %v394 = vmul.f32 %v316, 1.442695
  %v395 = vpow.pop %v394
  %v396 = vmul.f32 %v317, 1.442695
  %v397 = vpow.pop %v396
  %v398 = vmul.f32 %v318, 1.442695
  %v399 = vpow.pop %v398
  %v400 = vmul.f32 %v319, 1.442695
  %v401 = vpow.pop %v400
  %v402 = vmul.f32 %v320, 1.442695
  %v403 = vpow.pop %v402
  %v404 = vmul.f32 %v321, 1.442695
  %v405 = vpow.pop %v404
  %v406 = vmul.f32 %v322, 1.442695
  %v407 = vpow.pop %v406
  %v408 = vmul.f32 %v323, 1.442695
  %v409 = vpow.pop %v408
  %v410 = vmul.f32 %v324, 1.442695
  %v411 = vpow.pop %v410
  %v412 = vmul.f32 %v325, 1.442695
  %v413 = vpow.pop %v412
  %v414 = vmul.f32 %v326, 1.442695
  %v415 = vpow.pop %v414
  %v416 = vmul.f32 %v327, 1.442695
  %v417 = vpow.pop %v416
  %v418 = vmul.f32 %v328, 1.442695
  %v419 = vpow.pop %v418
  %v420 = vmul.f32 %v329, 1.442695
  %v421 = vpow.pop %v420
  %v422 = vmul.f32 %v330, 1.442695
  %v423 = vpow.pop %v422
  %v424 = vmul.f32 %v331, 1.442695
  %v425 = vpow.pop %v424
  %v426 = vmul.f32 %v332, 1.442695
  %v427 = vpow.pop %v426
  %v428 = vmul.f32 %v333, 1.442695
  %v429 = vpow.pop %v428
  %v430 = vmul.f32 %v334, 1.442695
  %v431 = vpow.pop %v430
  %v432 = vmul.f32 %v335, 1.442695
  %v433 = vpow.pop %v432
  %v434 = vmul.f32 %v336, 1.442695
  %v435 = vpow.pop %v434
  %v436 = vmul.f32 %v337, 1.442695
  %v437 = vpow.pop %v436
  %v438 = vmul.f32 %v338, 1.442695
  %v439 = vpow.pop %v438
  %v440 = vmul.f32 %v339, 1.442695
  %v441 = vpow.pop %v440
  %v442 = vmul.f32 %v340, 1.442695
  %v443 = vpow.pop %v442
  %v444 = vmul.f32 %v341, 1.442695
  %v445 = vpow.pop %v444
  %v446 = vmul.f32 %v342, 1.442695
  %v447 = vpow.pop %v446
  %v448 = vmul.f32 %v343, 1.442695
  %v449 = vpow.pop %v448
  %v450 = vmul.f32 %v344, 1.442695
  %v451 = vpow.pop %v450
  %v452 = vmul.f32 %v345, 1.442695
  %v453 = vpow.pop %v452
  %v454 = vmul.f32 %v346, 1.442695
  %v455 = vpow.pop %v454
  %v456 = vmul.f32 %v347, 1.442695
  %v457 = vpow.pop %v456
  %v458 = vmul.f32 %v348, 1.442695
  %v459 = vpow.pop %v458
  %v460 = vmul.f32 %v349, 1.442695
  %v461 = vpow.pop %v460
  %v462 = vmul.f32 %v350, 1.442695
  %v463 = vpow.pop %v462
  %v464 = vmul.f32 %v351, 1.442695
  %v465 = vpow.pop %v464
  %v466 = vmul.f32 %v352, 1.442695
  %v467 = vpow.pop %v466
  %v468 = vmul.f32 %v353, 1.442695
  %v469 = vpow.pop %v468
  %v470 = vmul.f32 %v354, 1.442695
  %v471 = vpow.pop %v470
  %v472 = vmul.f32 %v355, 1.442695
  %v473 = vpow.pop %v472
  %v474 = vmul.f32 %v356, 1.442695
  %v475 = vpow.pop %v474
  %v476 = vmul.f32 %v357, 1.442695
  %v477 = vpow.pop %v476
  %v478 = vmul.f32 %v358, 1.442695
  %v479 = vpow.pop %v478
  %v480 = vmul.f32 %v359, 1.442695
  %v481 = vpow.pop %v480
  %v482 = vmul.f32 %v360, 1.442695
  %v483 = vpow.pop %v482
  %v484 = vmul.f32 %v361, 1.442695
  %v485 = vpow.pop %v484
  %v486 = vmul.f32 %v362, 1.442695
  %v487 = vpow.pop %v486
  %v488 = vmul.f32 %v363, 1.442695
  %v489 = vpow.pop %v488
  %v490 = vmul.f32 %v364, 1.442695
  %v491 = vpow.pop %v490
  %v492 = vmul.f32 %v365, 1.442695
  %v493 = vpow.pop %v492
  %v494 = vmul.f32 %v366, 1.442695
  %v495 = vpow.pop %v494
  %v496 = vmul.f32 %v367, 1.442695
  %v497 = vpow.pop %v496
  %v498 = vmul.f32 %v368, 1.442695
  %v499 = vpow.pop %v498
  %v500 = vmul.f32 %v369, 1.442695
  %v501 = vpow.pop %v500
  %v502 = vmul.f32 %v370, 1.442695
  %v503 = vpow.pop %v502
  %v504 = vmul.f32 %v371, 1.442695
  %v505 = vpow.pop %v504
  %v506 = vmul.f32 %v372, 1.442695
  %v507 = vpow.pop %v506
  %v508 = vmul.f32 %v373, 1.442695
  %v509 = vpow.pop %v508
  %v510 = vmul.f32 %v374, 1.442695
  %v511 = vpow.pop %v510
  %v512 = vmul.f32 %v375, 1.442695
  %v513 = vpow.pop %v512
  %v514 = vmul.f32 %v376, 1.442695
  %v515 = vpow.pop %v514
  %v516 = vmul.f32 %v377, 1.442695
  %v517 = vpow.pop %v516
  %v518 = vmul.f32 %v378, 1.442695
  %v519 = vpow.pop %v518
  %v520 = vmul.f32 %v379, 1.442695
  %v521 = vpow.pop %v520
  %v522 = vmul.f32 %v380, 1.442695
  %v523 = vpow.pop %v522
  %v524 = vmul.f32 %v381, 1.442695
  %v525 = vpow.pop %v524
  %v526 = vadd.f32 %v383, 2.0
  %v527 = vadd.f32 %v385, 2.0
  %v528 = vadd.f32 %v387, 2.0
  %v529 = vadd.f32 %v389, 2.0
  %v530 = vadd.f32 %v391, 2.0
  %v531 = vadd.f32 %v393, 2.0
  %v532 = vadd.f32 %v395, 2.0
  %v533 = vadd.f32 %v397, 2.0
  %v534 = vadd.f32 %v399, 2.0
  %v535 = vadd.f32 %v401, 2.0
  %v536 = vadd.f32 %v403, 2.0
  %v537 = vadd.f32 %v405, 2.0
  %v538 = vadd.f32 %v407, 2.0
  %v539 = vadd.f32 %v409, 2.0
  %v540 = vadd.f32 %v411, 2.0
  %v541 = vadd.f32 %v413, 2.0
  %v542 = vadd.f32 %v415, 2.0
  %v543 = vadd.f32 %v417, 2.0
  %v544 = vadd.f32 %v419, 2.0
  %v545 = vadd.f32 %v421, 2.0
  %v546 = vadd.f32 %v423, 2.0
  %v547 = vadd.f32 %v425, 2.0
  %v548 = vadd.f32 %v427, 2.0
  %v549 = vadd.f32 %v429, 2.0
  %v550 = vadd.f32 %v431, 2.0
  %v551 = vadd.f32 %v433, 2.0
  %v552 = vadd.f32 %v435, 2.0
  %v553 = vadd.f32 %v437, 2.0
  %v554 = vadd.f32 %v439, 2.0
  %v555 = vadd.f32 %v441, 2.0
  %v556 = vadd.f32 %v443, 2.0
  %v557 = vadd.f32 %v445, 2.0
  %v558 = vadd.f32 %v447, 2.0
  %v559 = vadd.f32 %v449, 2.0
  %v560 = vadd.f32 %v451, 2.0
  %v561 = vadd.f32 %v453, 2.0
  %v562 = vadd.f32 %v455, 2.0
  %v563 = vadd.f32 %v457, 2.0
  %v564 = vadd.f32 %v459, 2.0
  %v565 = vadd.f32 %v461, 2.0
  %v566 = vadd.f32 %v463, 2.0
  %v567 = vadd.f32 %v465, 2.0
  %v568 = vadd.f32 %v467, 2.0
  %v569 = vadd.f32 %v469, 2.0
  %v570 = vadd.f32 %v471, 2.0
  %v571 = vadd.f32 %v473, 2.0
  %v572 = vadd.f32 %v475, 2.0
  %v573 = vadd.f32 %v477, 2.0
  %v574 = vadd.f32 %v479, 2.0
  %v575 = vadd.f32 %v481, 2.0
  %v576 = vadd.f32 %v483, 2.0
  %v577 = vadd.f32 %v485, 2.0
  %v578 = vadd.f32 %v487, 2.0
  %v579 = vadd.f32 %v489, 2.0
  %v580 = vadd.f32 %v491, 2.0
  %v581 = vadd.f32 %v493, 2.0
  %v582 = vadd.f32 %v495, 2.0
  %v583 = vadd.f32 %v497, 2.0
  %v584 = vadd.f32 %v499, 2.0
  %v585 = vadd.f32 %v501, 2.0
  %v586 = vadd.f32 %v503, 2.0
  %v587 = vadd.f32 %v505, 2.0
  %v588 = vadd.f32 %v507, 2.0
  %v589 = vadd.f32 %v509, 2.0
  %v590 = vadd.f32 %v511, 2.0
  %v591 = vadd.f32 %v513, 2.0
  %v592 = vadd.f32 %v515, 2.0
  %v593 = vadd.f32 %v517, 2.0
  %v594 = vadd.f32 %v519, 2.0
  %v595 = vadd.f32 %v521, 2.0
  %v596 = vadd.f32 %v523, 2.0
  %v597 = vadd.f32 %v525, 2.0
  %v598 = vmul.f32 %v383, %v526
  %v599 = vmul.f32 %v385, %v527
  %v600 = vmul.f32 %v387, %v528
  %v601 = vmul.f32 %v389, %v529
  %v602 = vmul.f32 %v391, %v530
  %v603 = vmul.f32 %v393, %v531
  %v604 = vmul.f32 %v395, %v532
  %v605 = vmul.f32 %v397, %v533
  %v606 = vmul.f32 %v399, %v534
  %v607 = vmul.f32 %v401, %v535
  %v608 = vmul.f32 %v403, %v536
  %v609 = vmul.f32 %v405, %v537
  %v610 = vmul.f32 %v407, %v538
  %v611 = vmul.f32 %v409, %v539
  %v612 = vmul.f32 %v411, %v540
  %v613 = vmul.f32 %v413, %v541
  %v614 = vmul.f32 %v415, %v542
  %v615 = vmul.f32 %v417, %v543
  %v616 = vmul.f32 %v419, %v544
  %v617 = vmul.f32 %v421, %v545
  %v618 = vmul.f32 %v423, %v546
  %v619 = vmul.f32 %v425, %v547
  %v620 = vmul.f32 %v427, %v548
  %v621 = vmul.f32 %v429, %v549
  %v622 = vmul.f32 %v431, %v550
  %v623 = vmul.f32 %v433, %v551
  %v624 = vmul.f32 %v435, %v552
  %v625 = vmul.f32 %v437, %v553
  %v626 = vmul.f32 %v439, %v554
  %v627 = vmul.f32 %v441, %v555
  %v628 = vmul.f32 %v443, %v556
  %v629 = vmul.f32 %v445, %v557
  %v630 = vmul.f32 %v447, %v558
  %v631 = vmul.f32 %v449, %v559
  %v632 = vmul.f32 %v451, %v560
  %v633 = vmul.f32 %v453, %v561
  %v634 = vmul.f32 %v455, %v562
  %v635 = vmul.f32 %v457, %v563
  %v636 = vmul.f32 %v459, %v564
  %v637 = vmul.f32 %v461, %v565
  %v638 = vmul.f32 %v463, %v566
  %v639 = vmul.f32 %v465, %v567
  %v640 = vmul.f32 %v467, %v568
  %v641 = vmul.f32 %v469, %v569
  %v642 = vmul.f32 %v471, %v570
  %v643 = vmul.f32 %v473, %v571
  %v644 = vmul.f32 %v475, %v572
  %v645 = vmul.f32 %v477, %v573
  %v646 = vmul.f32 %v479, %v574
  %v647 = vmul.f32 %v481, %v575
  %v648 = vmul.f32 %v483, %v576
  %v649 = vmul.f32 %v485, %v577
  %v650 = vmul.f32 %v487, %v578
  %v651 = vmul.f32 %v489, %v579
  %v652 = vmul.f32 %v491, %v580
  %v653 = vmul.f32 %v493, %v581
  %v654 = vmul.f32 %v495, %v582
  %v655 = vmul.f32 %v497, %v583
  %v656 = vmul.f32 %v499, %v584
  %v657 = vmul.f32 %v501, %v585
  %v658 = vmul.f32 %v503, %v586
  %v659 = vmul.f32 %v505, %v587
  %v660 = vmul.f32 %v507, %v588
  %v661 = vmul.f32 %v509, %v589
  %v662 = vmul.f32 %v511, %v590
  %v663 = vmul.f32 %v513, %v591
  %v664 = vmul.f32 %v515, %v592
  %v665 = vmul.f32 %v517, %v593
  %v666 = vmul.f32 %v519, %v594
  %v667 = vmul.f32 %v521, %v595
  %v668 = vmul.f32 %v523, %v596
  %v669 = vmul.f32 %v525, %v597
  %v670 = vadd.f32 %v598, 2.0
  %v671 = vadd.f32 %v599, 2.0
  %v672 = vadd.f32 %v600, 2.0
  %v673 = vadd.f32 %v601, 2.0
  %v674 = vadd.f32 %v602, 2.0
  %v675 = vadd.f32 %v603, 2.0
  %v676 = vadd.f32 %v604, 2.0
  %v677 = vadd.f32 %v605, 2.0
  %v678 = vadd.f32 %v606, 2.0
  %v679 = vadd.f32 %v607, 2.0
  %v680 = vadd.f32 %v608, 2.0
  %v681 = vadd.f32 %v609, 2.0
  %v682 = vadd.f32 %v610, 2.0
  %v683 = vadd.f32 %v611, 2.0
  %v684 = vadd.f32 %v612, 2.0
  %v685 = vadd.f32 %v613, 2.0
  %v686 = vadd.f32 %v614, 2.0
  %v687 = vadd.f32 %v615, 2.0
  %v688 = vadd.f32 %v616, 2.0
  %v689 = vadd.f32 %v617, 2.0
  %v690 = vadd.f32 %v618, 2.0
  %v691 = vadd.f32 %v619, 2.0
  %v692 = vadd.f32 %v620, 2.0
  %v693 = vadd.f32 %v621, 2.0
  %v694 = vadd.f32 %v622, 2.0
  %v695 = vadd.f32 %v623, 2.0
  %v696 = vadd.f32 %v624, 2.0
  %v697 = vadd.f32 %v625, 2.0
  %v698 = vadd.f32 %v626, 2.0
  %v699 = vadd.f32 %v627, 2.0
  %v700 = vadd.f32 %v628, 2.0
  %v701 = vadd.f32 %v629, 2.0
  %v702 = vadd.f32 %v630, 2.0
  %v703 = vadd.f32 %v631, 2.0
  %v704 = vadd.f32 %v632, 2.0
  %v705 = vadd.f32 %v633, 2.0
  %v706 = vadd.f32 %v634, 2.0
  %v707 = vadd.f32 %v635, 2.0
  %v708 = vadd.f32 %v636, 2.0
  %v709 = vadd.f32 %v637, 2.0
  %v710 = vadd.f32 %v638, 2.0
  %v711 = vadd.f32 %v639, 2.0
  %v712 = vadd.f32 %v640, 2.0
  %v713 = vadd.f32 %v641, 2.0
  %v714 = vadd.f32 %v642, 2.0
  %v715 = vadd.f32 %v643, 2.0
  %v716 = vadd.f32 %v644, 2.0
  %v717 = vadd.f32 %v645, 2.0
  %v718 = vadd.f32 %v646, 2.0
  %v719 = vadd.f32 %v647, 2.0
  %v720 = vadd.f32 %v648, 2.0
  %v721 = vadd.f32 %v649, 2.0
  %v722 = vadd.f32 %v650, 2.0
  %v723 = vadd.f32 %v651, 2.0
  %v724 = vadd.f32 %v652, 2.0
  %v725 = vadd.f32 %v653, 2.0
  %v726 = vadd.f32 %v654, 2.0
  %v727 = vadd.f32 %v655, 2.0
  %v728 = vadd.f32 %v656, 2.0
  %v729 = vadd.f32 %v657, 2.0
  %v730 = vadd.f32 %v658, 2.0
  %v731 = vadd.f32 %v659, 2.0
  %v732 = vadd.f32 %v660, 2.0
  %v733 = vadd.f32 %v661, 2.0
  %v734 = vadd.f32 %v662, 2.0
  %v735 = vadd.f32 %v663, 2.0
  %v736 = vadd.f32 %v664, 2.0
  %v737 = vadd.f32 %v665, 2.0
  %v738 = vadd.f32 %v666, 2.0
  %v739 = vadd.f32 %v667, 2.0
  %v740 = vadd.f32 %v668, 2.0
  %v741 = vadd.f32 %v669, 2.0
  %v742 = vrcp.pop %v670
  %v743 = vrcp.pop %v671
  %v744 = vrcp.pop %v672
  %v745 = vrcp.pop %v673
  %v746 = vrcp.pop %v674
  %v747 = vrcp.pop %v675
  %v748 = vrcp.pop %v676
  %v749 = vrcp.pop %v677
  %v750 = vrcp.pop %v678
  %v751 = vrcp.pop %v679
  %v752 = vrcp.pop %v680
  %v753 = vrcp.pop %v681
  %v754 = vrcp.pop %v682
  %v755 = vrcp.pop %v683
  %v756 = vrcp.pop %v684
  %v757 = vrcp.pop %v685
  %v758 = vrcp.pop %v686
  %v759 = vrcp.pop %v687
  %v760 = vrcp.pop %v688
  %v761 = vrcp.pop %v689
  %v762 = vrcp.pop %v690
  %v763 = vrcp.pop %v691
  %v764 = vrcp.pop %v692
  %v765 = vrcp.pop %v693
  %v766 = vrcp.pop %v694
  %v767 = vrcp.pop %v695
  %v768 = vrcp.pop %v696
  %v769 = vrcp.pop %v697
  %v770 = vrcp.pop %v698
  %v771 = vrcp.pop %v699
  %v772 = vrcp.pop %v700
  %v773 = vrcp.pop %v701
  %v774 = vrcp.pop %v702
  %v775 = vrcp.pop %v703
  %v776 = vrcp.pop %v704
  %v777 = vrcp.pop %v705
  %v778 = vrcp.pop %v706
  %v779 = vrcp.pop %v707
  %v780 = vrcp.pop %v708
  %v781 = vrcp.pop %v709
  %v782 = vrcp.pop %v710
  %v783 = vrcp.pop %v711
  %v784 = vrcp.pop %v712
  %v785 = vrcp.pop %v713
  %v786 = vrcp.pop %v714
  %v787 = vrcp.pop %v715
  %v788 = vrcp.pop %v716
  %v789 = vrcp.pop %v717
  %v790 = vrcp.pop %v718
  %v791 = vrcp.pop %v719
  %v792 = vrcp.pop %v720
  %v793 = vrcp.pop %v721
  %v794 = vrcp.pop %v722
  %v795 = vrcp.pop %v723
  %v796 = vrcp.pop %v724
  %v797 = vrcp.pop %v725
  %v798 = vrcp.pop %v726
  %v799 = vrcp.pop %v727
  %v800 = vrcp.pop %v728
  %v801 = vrcp.pop %v729
  %v802 = vrcp.pop %v730
  %v803 = vrcp.pop %v731
  %v804 = vrcp.pop %v732
  %v805 = vrcp.pop %v733
  %v806 = vrcp.pop %v734
  %v807 = vrcp.pop %v735
  %v808 = vrcp.pop %v736
  %v809 = vrcp.pop %v737
  %v810 = vrcp.pop %v738
  %v811 = vrcp.pop %v739
  %v812 = vrcp.pop %v740
  %v813 = vrcp.pop %v741
  %v814 = vmul.f32 %v670, %v742
  %v815 = vmul.f32 %v671, %v743
  %v816 = vmul.f32 %v672, %v744
  %v817 = vmul.f32 %v673, %v745
  %v818 = vmul.f32 %v674, %v746
  %v819 = vmul.f32 %v675, %v747
  %v820 = vmul.f32 %v676, %v748
  %v821 = vmul.f32 %v677, %v749
  %v822 = vmul.f32 %v678, %v750
  %v823 = vmul.f32 %v679, %v751
  %v824 = vmul.f32 %v680, %v752
  %v825 = vmul.f32 %v681, %v753
  %v826 = vmul.f32 %v682, %v754
  %v827 = vmul.f32 %v683, %v755
  %v828 = vmul.f32 %v684, %v756
  %v829 = vmul.f32 %v685, %v757
  %v830 = vmul.f32 %v686, %v758
  %v831 = vmul.f32 %v687, %v759
  %v832 = vmul.f32 %v688, %v760
  %v833 = vmul.f32 %v689, %v761
  %v834 = vmul.f32 %v690, %v762
  %v835 = vmul.f32 %v691, %v763
  %v836 = vmul.f32 %v692, %v764
  %v837 = vmul.f32 %v693, %v765
  %v838 = vmul.f32 %v694, %v766
  %v839 = vmul.f32 %v695, %v767
  %v840 = vmul.f32 %v696, %v768
  %v841 = vmul.f32 %v697, %v769
  %v842 = vmul.f32 %v698, %v770
  %v843 = vmul.f32 %v699, %v771
  %v844 = vmul.f32 %v700, %v772
  %v845 = vmul.f32 %v701, %v773
  %v846 = vmul.f32 %v702, %v774
  %v847 = vmul.f32 %v703, %v775
  %v848 = vmul.f32 %v704, %v776
  %v849 = vmul.f32 %v705, %v777
  %v850 = vmul.f32 %v706, %v778
  %v851 = vmul.f32 %v707, %v779
  %v852 = vmul.f32 %v708, %v780
  %v853 = vmul.f32 %v709, %v781
  %v854 = vmul.f32 %v710, %v782
  %v855 = vmul.f32 %v711, %v783
  %v856 = vmul.f32 %v712, %v784
  %v857 = vmul.f32 %v713, %v785
  %v858 = vmul.f32 %v714, %v786
  %v859 = vmul.f32 %v715, %v787
  %v860 = vmul.f32 %v716, %v788
  %v861 = vmul.f32 %v717, %v789
  %v862 = vmul.f32 %v718, %v790
  %v863 = vmul.f32 %v719, %v791
  %v864 = vmul.f32 %v720, %v792
  %v865 = vmul.f32 %v721, %v793
  %v866 = vmul.f32 %v722, %v794
  %v867 = vmul.f32 %v723, %v795
  %v868 = vmul.f32 %v724, %v796
  %v869 = vmul.f32 %v725, %v797
  %v870 = vmul.f32 %v726, %v798
  %v871 = vmul.f32 %v727, %v799
  %v872 = vmul.f32 %v728, %v800
  %v873 = vmul.f32 %v729, %v801
  %v874 = vmul.f32 %v730, %v802
  %v875 = vmul.f32 %v731, %v803
  %v876 = vmul.f32 %v732, %v804
  %v877 = vmul.f32 %v733, %v805
  %v878 = vmul.f32 %v734, %v806
  %v879 = vmul.f32 %v735, %v807
  %v880 = vmul.f32 %v736, %v808
  %v881 = vmul.f32 %v737, %v809
  %v882 = vmul.f32 %v738, %v810
  %v883 = vmul.f32 %v739, %v811
  %v884 = vmul.f32 %v740, %v812
  %v885 = vmul.f32 %v741, %v813
  %v886 = vsub.f32 2.0, %v814
  %v887 = vsub.f32 2.0, %v815
  %v888 = vsub.f32 2.0, %v816
  %v889 = vsub.f32 2.0, %v817
  %v890 = vsub.f32 2.0, %v818
  %v891 = vsub.f32 2.0, %v819
  %v892 = vsub.f32 2.0, %v820
  %v893 = vsub.f32 2.0, %v821
  %v894 = vsub.f32 2.0, %v822
  %v895 = vsub.f32 2.0, %v823
  %v896 = vsub.f32 2.0, %v824
  %v897 = vsub.f32 2.0, %v825
  %v898 = vsub.f32 2.0, %v826
  %v899 = vsub.f32 2.0, %v827
  %v900 = vsub.f32 2.0, %v828
  %v901 = vsub.f32 2.0, %v829
  %v902 = vsub.f32 2.0, %v830
  %v903 = vsub.f32 2.0, %v831
  %v904 = vsub.f32 2.0, %v832
  %v905 = vsub.f32 2.0, %v833
  %v906 = vsub.f32 2.0, %v834
  %v907 = vsub.f32 2.0, %v835
  %v908 = vsub.f32 2.0, %v836
  %v909 = vsub.f32 2.0, %v837
  %v910 = vsub.f32 2.0, %v838
  %v911 = vsub.f32 2.0, %v839
  %v912 = vsub.f32 2.0, %v840
  %v913 = vsub.f32 2.0, %v841
  %v914 = vsub.f32 2.0, %v842
  %v915 = vsub.f32 2.0, %v843
  %v916 = vsub.f32 2.0, %v844
  %v917 = vsub.f32 2.0, %v845
  %v918 = vsub.f32 2.0, %v846
  %v919 = vsub.f32 2.0, %v847
  %v920 = vsub.f32 2.0, %v848
  %v921 = vsub.f32 2.0, %v849
  %v922 = vsub.f32 2.0, %v850
  %v923 = vsub.f32 2.0, %v851
  %v924 = vsub.f32 2.0, %v852
  %v925 = vsub.f32 2.0, %v853
  %v926 = vsub.f32 2.0, %v854
  %v927 = vsub.f32 2.0, %v855
  %v928 = vsub.f32 2.0, %v856
  %v929 = vsub.f32 2.0, %v857
  %v930 = vsub.f32 2.0, %v858
  %v931 = vsub.f32 2.0, %v859
  %v932 = vsub.f32 2.0, %v860
  %v933 = vsub.f32 2.0, %v861
  %v934 = vsub.f32 2.0, %v862
  %v935 = vsub.f32 2.0, %v863
  %v936 = vsub.f32 2.0, %v864
  %v937 = vsub.f32 2.0, %v865
  %v938 = vsub.f32 2.0, %v866
  %v939 = vsub.f32 2.0, %v867
  %v940 = vsub.f32 2.0, %v868
  %v941 = vsub.f32 2.0, %v869
  %v942 = vsub.f32 2.0, %v870
  %v943 = vsub.f32 2.0, %v871
  %v944 = vsub.f32 2.0, %v872
  %v945 = vsub.f32 2.0, %v873
  %v946 = vsub.f32 2.0, %v874
  %v947 = vsub.f32 2.0, %v875
  %v948 = vsub.f32 2.0, %v876
  %v949 = vsub.f32 2.0, %v877
  %v950 = vsub.f32 2.0, %v878
  %v951 = vsub.f32 2.0, %v879
  %v952 = vsub.f32 2.0, %v880
  %v953 = vsub.f32 2.0, %v881
  %v954 = vsub.f32 2.0, %v882
  %v955 = vsub.f32 2.0, %v883
  %v956 = vsub.f32 2.0, %v884
  %v957 = vsub.f32 2.0, %v885
  %v958 = vmul.f32 %v742, %v886
  %v959 = vmul.f32 %v743, %v887
  %v960 = vmul.f32 %v744, %v888
  %v961 = vmul.f32 %v745, %v889
  %v962 = vmul.f32 %v746, %v890
  %v963 = vmul.f32 %v747, %v891
  %v964 = vmul.f32 %v748, %v892
  %v965 = vmul.f32 %v749, %v893
  %v966 = vmul.f32 %v750, %v894
  %v967 = vmul.f32 %v751, %v895
  %v968 = vmul.f32 %v752, %v896
  %v969 = vmul.f32 %v753, %v897
  %v970 = vmul.f32 %v754, %v898
  %v971 = vmul.f32 %v755, %v899
  %v972 = vmul.f32 %v756, %v900
  %v973 = vmul.f32 %v757, %v901
  %v974 = vmul.f32 %v758, %v902
  %v975 = vmul.f32 %v759, %v903
  %v976 = vmul.f32 %v760, %v904
  %v977 = vmul.f32 %v761, %v905
  %v978 = vmul.f32 %v762, %v906
  %v979 = vmul.f32 %v763, %v907
  %v980 = vmul.f32 %v764, %v908
  %v981 = vmul.f32 %v765, %v909
  %v982 = vmul.f32 %v766, %v910
  %v983 = vmul.f32 %v767, %v911
  %v984 = vmul.f32 %v768, %v912
  %v985 = vmul.f32 %v769, %v913
  %v986 = vmul.f32 %v770, %v914
  %v987 = vmul.f32 %v771, %v915
  %v988 = vmul.f32 %v772, %v916
  %v989 = vmul.f32 %v773, %v917
  %v990 = vmul.f32 %v774, %v918
  %v991 = vmul.f32 %v775, %v919
  %v992 = vmul.f32 %v776, %v920
  %v993 = vmul.f32 %v777, %v921
  %v994 = vmul.f32 %v778, %v922
  %v995 = vmul.f32 %v779, %v923
  %v996 = vmul.f32 %v780, %v924
  %v997 = vmul.f32 %v781, %v925
  %v998 = vmul.f32 %v782, %v926
  %v999 = vmul.f32 %v783, %v927
  %v1000 = vmul.f32 %v784, %v928
  %v1001 = vmul.f32 %v785, %v929
  %v1002 = vmul.f32 %v786, %v930
  %v1003 = vmul.f32 %v787, %v931
  %v1004 = vmul.f32 %v788, %v932
  %v1005 = vmul.f32 %v789, %v933
  %v1006 = vmul.f32 %v790, %v934
  %v1007 = vmul.f32 %v791, %v935
  %v1008 = vmul.f32 %v792, %v936
  %v1009 = vmul.f32 %v793, %v937
  %v1010 = vmul.f32 %v794, %v938
  %v1011 = vmul.f32 %v795, %v939
  %v1012 = vmul.f32 %v796, %v940
  %v1013 = vmul.f32 %v797, %v941
  %v1014 = vmul.f32 %v798, %v942
  %v1015 = vmul.f32 %v799, %v943
  %v1016 = vmul.f32 %v800, %v944
  %v1017 = vmul.f32 %v801, %v945
  %v1018 = vmul.f32 %v802, %v946
  %v1019 = vmul.f32 %v803, %v947
  %v1020 = vmul.f32 %v804, %v948
  %v1021 = vmul.f32 %v805, %v949
  %v1022 = vmul.f32 %v806, %v950
  %v1023 = vmul.f32 %v807, %v951
  %v1024 = vmul.f32 %v808, %v952
  %v1025 = vmul.f32 %v809, %v953
  %v1026 = vmul.f32 %v810, %v954
  %v1027 = vmul.f32 %v811, %v955
  %v1028 = vmul.f32 %v812, %v956
  %v1029 = vmul.f32 %v813, %v957
  %vm1030 = vcmp.gt.f32.partialorder %v238, 20.0
  %vm1031 = vcmp.gt.f32.partialorder %v239, 20.0
  %vm1032 = vcmp.gt.f32.partialorder %v240, 20.0
  %vm1033 = vcmp.gt.f32.partialorder %v241, 20.0
  %vm1034 = vcmp.gt.f32.partialorder %v242, 20.0
  %vm1035 = vcmp.gt.f32.partialorder %v243, 20.0
  %vm1036 = vcmp.gt.f32.partialorder %v244, 20.0
  %vm1037 = vcmp.gt.f32.partialorder %v245, 20.0
  %vm1038 = vcmp.gt.f32.partialorder %v246, 20.0
  %vm1039 = vcmp.gt.f32.partialorder %v247, 20.0
  %vm1040 = vcmp.gt.f32.partialorder %v248, 20.0
  %vm1041 = vcmp.gt.f32.partialorder %v249, 20.0
  %vm1042 = vcmp.gt.f32.partialorder %v250, 20.0
  %vm1043 = vcmp.gt.f32.partialorder %v251, 20.0
  %vm1044 = vcmp.gt.f32.partialorder %v252, 20.0
  %vm1045 = vcmp.gt.f32.partialorder %v253, 20.0
  %vm1046 = vcmp.gt.f32.partialorder %v254, 20.0
  %vm1047 = vcmp.gt.f32.partialorder %v255, 20.0
  %vm1048 = vcmp.gt.f32.partialorder %v256, 20.0
  %vm1049 = vcmp.gt.f32.partialorder %v257, 20.0
  %vm1050 = vcmp.gt.f32.partialorder %v258, 20.0
  %vm1051 = vcmp.gt.f32.partialorder %v259, 20.0
  %vm1052 = vcmp.gt.f32.partialorder %v260, 20.0
  %vm1053 = vcmp.gt.f32.partialorder %v261, 20.0
  %vm1054 = vcmp.gt.f32.partialorder %v262, 20.0
  %vm1055 = vcmp.gt.f32.partialorder %v263, 20.0
  %vm1056 = vcmp.gt.f32.partialorder %v264, 20.0
  %vm1057 = vcmp.gt.f32.partialorder %v265, 20.0
  %vm1058 = vcmp.gt.f32.partialorder %v266, 20.0
  %vm1059 = vcmp.gt.f32.partialorder %v267, 20.0
  %vm1060 = vcmp.gt.f32.partialorder %v268, 20.0
  %vm1061 = vcmp.gt.f32.partialorder %v269, 20.0
  %vm1062 = vcmp.gt.f32.partialorder %v270, 20.0
  %vm1063 = vcmp.gt.f32.partialorder %v271, 20.0
  %vm1064 = vcmp.gt.f32.partialorder %v272, 20.0
  %vm1065 = vcmp.gt.f32.partialorder %v273, 20.0
  %vm1066 = vcmp.gt.f32.partialorder %v274, 20.0
  %vm1067 = vcmp.gt.f32.partialorder %v275, 20.0
  %vm1068 = vcmp.gt.f32.partialorder %v276, 20.0
  %vm1069 = vcmp.gt.f32.partialorder %v277, 20.0
  %vm1070 = vcmp.gt.f32.partialorder %v278, 20.0
  %vm1071 = vcmp.gt.f32.partialorder %v279, 20.0
  %vm1072 = vcmp.gt.f32.partialorder %v280, 20.0
  %vm1073 = vcmp.gt.f32.partialorder %v281, 20.0
  %vm1074 = vcmp.gt.f32.partialorder %v282, 20.0
  %vm1075 = vcmp.gt.f32.partialorder %v283, 20.0
  %vm1076 = vcmp.gt.f32.partialorder %v284, 20.0
  %vm1077 = vcmp.gt.f32.partialorder %v285, 20.0
  %vm1078 = vcmp.gt.f32.partialorder %v286, 20.0
  %vm1079 = vcmp.gt.f32.partialorder %v287, 20.0
  %vm1080 = vcmp.gt.f32.partialorder %v288, 20.0
  %vm1081 = vcmp.gt.f32.partialorder %v289, 20.0
  %vm1082 = vcmp.gt.f32.partialorder %v290, 20.0
  %vm1083 = vcmp.gt.f32.partialorder %v291, 20.0
  %vm1084 = vcmp.gt.f32.partialorder %v292, 20.0
  %vm1085 = vcmp.gt.f32.partialorder %v293, 20.0
  %vm1086 = vcmp.gt.f32.partialorder %v294, 20.0
  %vm1087 = vcmp.gt.f32.partialorder %v295, 20.0
  %vm1088 = vcmp.gt.f32.partialorder %v296, 20.0
  %vm1089 = vcmp.gt.f32.partialorder %v297, 20.0
  %vm1090 = vcmp.gt.f32.partialorder %v298, 20.0
  %vm1091 = vcmp.gt.f32.partialorder %v299, 20.0
  %vm1092 = vcmp.gt.f32.partialorder %v300, 20.0
  %vm1093 = vcmp.gt.f32.partialorder %v301, 20.0
  %vm1094 = vcmp.gt.f32.partialorder %v302, 20.0
  %vm1095 = vcmp.gt.f32.partialorder %v303, 20.0
  %vm1096 = vcmp.gt.f32.partialorder %v304, 20.0
  %vm1097 = vcmp.gt.f32.partialorder %v305, 20.0
  %vm1098 = vcmp.gt.f32.partialorder %v306, 20.0
  %vm1099 = vcmp.gt.f32.partialorder %v307, 20.0
  %vm1100 = vcmp.gt.f32.partialorder %v308, 20.0
  %vm1101 = vcmp.gt.f32.partialorder %v309, 20.0
  %v1102 = vmul.f32 %v238, %v598
  %v1103 = vmul.f32 %v239, %v599
  %v1104 = vmul.f32 %v240, %v600
  %v1105 = vmul.f32 %v241, %v601
  %v1106 = vmul.f32 %v242, %v602
  %v1107 = vmul.f32 %v243, %v603
  %v1108 = vmul.f32 %v244, %v604
  %v1109 = vmul.f32 %v245, %v605
  %v1110 = vmul.f32 %v246, %v606
  %v1111 = vmul.f32 %v247, %v607
  %v1112 = vmul.f32 %v248, %v608
  %v1113 = vmul.f32 %v249, %v609
  %v1114 = vmul.f32 %v250, %v610
  %v1115 = vmul.f32 %v251, %v611
  %v1116 = vmul.f32 %v252, %v612
  %v1117 = vmul.f32 %v253, %v613
  %v1118 = vmul.f32 %v254, %v614
  %v1119 = vmul.f32 %v255, %v615
  %v1120 = vmul.f32 %v256, %v616
  %v1121 = vmul.f32 %v257, %v617
  %v1122 = vmul.f32 %v258, %v618
  %v1123 = vmul.f32 %v259, %v619
  %v1124 = vmul.f32 %v260, %v620
  %v1125 = vmul.f32 %v261, %v621
  %v1126 = vmul.f32 %v262, %v622
  %v1127 = vmul.f32 %v263, %v623
  %v1128 = vmul.f32 %v264, %v624
  %v1129 = vmul.f32 %v265, %v625
  %v1130 = vmul.f32 %v266, %v626
  %v1131 = vmul.f32 %v267, %v627
  %v1132 = vmul.f32 %v268, %v628
  %v1133 = vmul.f32 %v269, %v629
  %v1134 = vmul.f32 %v270, %v630
  %v1135 = vmul.f32 %v271, %v631
  %v1136 = vmul.f32 %v272, %v632
  %v1137 = vmul.f32 %v273, %v633
  %v1138 = vmul.f32 %v274, %v634
  %v1139 = vmul.f32 %v275, %v635
  %v1140 = vmul.f32 %v276, %v636
  %v1141 = vmul.f32 %v277, %v637
  %v1142 = vmul.f32 %v278, %v638
  %v1143 = vmul.f32 %v279, %v639
  %v1144 = vmul.f32 %v280, %v640
  %v1145 = vmul.f32 %v281, %v641
  %v1146 = vmul.f32 %v282, %v642
  %v1147 = vmul.f32 %v283, %v643
  %v1148 = vmul.f32 %v284, %v644
  %v1149 = vmul.f32 %v285, %v645
  %v1150 = vmul.f32 %v286, %v646
  %v1151 = vmul.f32 %v287, %v647
  %v1152 = vmul.f32 %v288, %v648
  %v1153 = vmul.f32 %v289, %v649
  %v1154 = vmul.f32 %v290, %v650
  %v1155 = vmul.f32 %v291, %v651
  %v1156 = vmul.f32 %v292, %v652
  %v1157 = vmul.f32 %v293, %v653
  %v1158 = vmul.f32 %v294, %v654
  %v1159 = vmul.f32 %v295, %v655
  %v1160 = vmul.f32 %v296, %v656
  %v1161 = vmul.f32 %v297, %v657
  %v1162 = vmul.f32 %v298, %v658
  %v1163 = vmul.f32 %v299, %v659
  %v1164 = vmul.f32 %v300, %v660
  %v1165 = vmul.f32 %v301, %v661
  %v1166 = vmul.f32 %v302, %v662
  %v1167 = vmul.f32 %v303, %v663
  %v1168 = vmul.f32 %v304, %v664
  %v1169 = vmul.f32 %v305, %v665
  %v1170 = vmul.f32 %v306, %v666
  %v1171 = vmul.f32 %v307, %v667
  %v1172 = vmul.f32 %v308, %v668
  %v1173 = vmul.f32 %v309, %v669
  %v1174 = vmul.f32 %v1102, %v958
  %v1175 = vmul.f32 %v1103, %v959
  %v1176 = vmul.f32 %v1104, %v960
  %v1177 = vmul.f32 %v1105, %v961
  %v1178 = vmul.f32 %v1106, %v962
  %v1179 = vmul.f32 %v1107, %v963
  %v1180 = vmul.f32 %v1108, %v964
  %v1181 = vmul.f32 %v1109, %v965
  %v1182 = vmul.f32 %v1110, %v966
  %v1183 = vmul.f32 %v1111, %v967
  %v1184 = vmul.f32 %v1112, %v968
  %v1185 = vmul.f32 %v1113, %v969
  %v1186 = vmul.f32 %v1114, %v970
  %v1187 = vmul.f32 %v1115, %v971
  %v1188 = vmul.f32 %v1116, %v972
  %v1189 = vmul.f32 %v1117, %v973
  %v1190 = vmul.f32 %v1118, %v974
  %v1191 = vmul.f32 %v1119, %v975
  %v1192 = vmul.f32 %v1120, %v976
  %v1193 = vmul.f32 %v1121, %v977
  %v1194 = vmul.f32 %v1122, %v978
  %v1195 = vmul.f32 %v1123, %v979
  %v1196 = vmul.f32 %v1124, %v980
  %v1197 = vmul.f32 %v1125, %v981
  %v1198 = vmul.f32 %v1126, %v982
  %v1199 = vmul.f32 %v1127, %v983
  %v1200 = vmul.f32 %v1128, %v984
  %v1201 = vmul.f32 %v1129, %v985
  %v1202 = vmul.f32 %v1130, %v986
  %v1203 = vmul.f32 %v1131, %v987
  %v1204 = vmul.f32 %v1132, %v988
  %v1205 = vmul.f32 %v1133, %v989
  %v1206 = vmul.f32 %v1134, %v990
  %v1207 = vmul.f32 %v1135, %v991
  %v1208 = vmul.f32 %v1136, %v992
  %v1209 = vmul.f32 %v1137, %v993
  %v1210 = vmul.f32 %v1138, %v994
  %v1211 = vmul.f32 %v1139, %v995
  %v1212 = vmul.f32 %v1140, %v996
  %v1213 = vmul.f32 %v1141, %v997
  %v1214 = vmul.f32 %v1142, %v998
  %v1215 = vmul.f32 %v1143, %v999
  %v1216 = vmul.f32 %v1144, %v1000
  %v1217 = vmul.f32 %v1145, %v1001
  %v1218 = vmul.f32 %v1146, %v1002
  %v1219 = vmul.f32 %v1147, %v1003
  %v1220 = vmul.f32 %v1148, %v1004
  %v1221 = vmul.f32 %v1149, %v1005
  %v1222 = vmul.f32 %v1150, %v1006
  %v1223 = vmul.f32 %v1151, %v1007
  %v1224 = vmul.f32 %v1152, %v1008
  %v1225 = vmul.f32 %v1153, %v1009
  %v1226 = vmul.f32 %v1154, %v1010
  %v1227 = vmul.f32 %v1155, %v1011
  %v1228 = vmul.f32 %v1156, %v1012
  %v1229 = vmul.f32 %v1157, %v1013
  %v1230 = vmul.f32 %v1158, %v1014
  %v1231 = vmul.f32 %v1159, %v1015
  %v1232 = vmul.f32 %v1160, %v1016
  %v1233 = vmul.f32 %v1161, %v1017
  %v1234 = vmul.f32 %v1162, %v1018
  %v1235 = vmul.f32 %v1163, %v1019
  %v1236 = vmul.f32 %v1164, %v1020
  %v1237 = vmul.f32 %v1165, %v1021
  %v1238 = vmul.f32 %v1166, %v1022
  %v1239 = vmul.f32 %v1167, %v1023
  %v1240 = vmul.f32 %v1168, %v1024
  %v1241 = vmul.f32 %v1169, %v1025
  %v1242 = vmul.f32 %v1170, %v1026
  %v1243 = vmul.f32 %v1171, %v1027
  %v1244 = vmul.f32 %v1172, %v1028
  %v1245 = vmul.f32 %v1173, %v1029
  %v1246 = vsel %vm1030, %v238, %v1174
  %v1247 = vsel %vm1031, %v239, %v1175
  %v1248 = vsel %vm1032, %v240, %v1176
  %v1249 = vsel %vm1033, %v241, %v1177
  %v1250 = vsel %vm1034, %v242, %v1178
  %v1251 = vsel %vm1035, %v243, %v1179
  %v1252 = vsel %vm1036, %v244, %v1180
  %v1253 = vsel %vm1037, %v245, %v1181
  %v1254 = vsel %vm1038, %v246, %v1182
  %v1255 = vsel %vm1039, %v247, %v1183
  %v1256 = vsel %vm1040, %v248, %v1184
  %v1257 = vsel %vm1041, %v249, %v1185
  %v1258 = vsel %vm1042, %v250, %v1186
  %v1259 = vsel %vm1043, %v251, %v1187
  %v1260 = vsel %vm1044, %v252, %v1188
  %v1261 = vsel %vm1045, %v253, %v1189
  %v1262 = vsel %vm1046, %v254, %v1190
  %v1263 = vsel %vm1047, %v255, %v1191
  %v1264 = vsel %vm1048, %v256, %v1192
  %v1265 = vsel %vm1049, %v257, %v1193
  %v1266 = vsel %vm1050, %v258, %v1194
  %v1267 = vsel %vm1051, %v259, %v1195
  %v1268 = vsel %vm1052, %v260, %v1196
  %v1269 = vsel %vm1053, %v261, %v1197
  %v1270 = vsel %vm1054, %v262, %v1198
  %v1271 = vsel %vm1055, %v263, %v1199
  %v1272 = vsel %vm1056, %v264, %v1200
  %v1273 = vsel %vm1057, %v265, %v1201
  %v1274 = vsel %vm1058, %v266, %v1202
  %v1275 = vsel %vm1059, %v267, %v1203
  %v1276 = vsel %vm1060, %v268, %v1204
  %v1277 = vsel %vm1061, %v269, %v1205
  %v1278 = vsel %vm1062, %v270, %v1206
  %v1279 = vsel %vm1063, %v271, %v1207
  %v1280 = vsel %vm1064, %v272, %v1208
  %v1281 = vsel %vm1065, %v273, %v1209
  %v1282 = vsel %vm1066, %v274, %v1210
  %v1283 = vsel %vm1067, %v275, %v1211
  %v1284 = vsel %vm1068, %v276, %v1212
  %v1285 = vsel %vm1069, %v277, %v1213
  %v1286 = vsel %vm1070, %v278, %v1214
  %v1287 = vsel %vm1071, %v279, %v1215
  %v1288 = vsel %vm1072, %v280, %v1216
  %v1289 = vsel %vm1073, %v281, %v1217
  %v1290 = vsel %vm1074, %v282, %v1218
  %v1291 = vsel %vm1075, %v283, %v1219
  %v1292 = vsel %vm1076, %v284, %v1220
  %v1293 = vsel %vm1077, %v285, %v1221
  %v1294 = vsel %vm1078, %v286, %v1222
  %v1295 = vsel %vm1079, %v287, %v1223
  %v1296 = vsel %vm1080, %v288, %v1224
  %v1297 = vsel %vm1081, %v289, %v1225
  %v1298 = vsel %vm1082, %v290, %v1226
  %v1299 = vsel %vm1083, %v291, %v1227
  %v1300 = vsel %vm1084, %v292, %v1228
  %v1301 = vsel %vm1085, %v293, %v1229
  %v1302 = vsel %vm1086, %v294, %v1230
  %v1303 = vsel %vm1087, %v295, %v1231
  %v1304 = vsel %vm1088, %v296, %v1232
  %v1305 = vsel %vm1089, %v297, %v1233
  %v1306 = vsel %vm1090, %v298, %v1234
  %v1307 = vsel %vm1091, %v299, %v1235
  %v1308 = vsel %vm1092, %v300, %v1236
  %v1309 = vsel %vm1093, %v301, %v1237
  %v1310 = vsel %vm1094, %v302, %v1238
  %v1311 = vsel %vm1095, %v303, %v1239
  %v1312 = vsel %vm1096, %v304, %v1240
  %v1313 = vsel %vm1097, %v305, %v1241
  %v1314 = vsel %vm1098, %v306, %v1242
  %v1315 = vsel %vm1099, %v307, %v1243
  %v1316 = vsel %vm1100, %v308, %v1244
  %v1317 = vsel %vm1101, %v309, %v1245
  %1318 = vst [vmem:[%s3] sm:$0xff] %v1246
  %1319 = vst [vmem:[%s3 + $0x8] sm:$0xff] %v1247
  %1320 = vst [vmem:[%s3 + $0x10] sm:$0xff] %v1248
  %1321 = vst [vmem:[%s3 + $0x18] sm:$0xff] %v1249
  %1322 = vst [vmem:[%s3 + $0x20] sm:$0xff] %v1250
  %1323 = vst [vmem:[%s3 + $0x28] sm:$0xff] %v1251
  %1324 = vst [vmem:[%s3 + $0x30] sm:$0xff] %v1252
  %1325 = vst [vmem:[%s3 + $0x38] sm:$0xff] %v1253
  %1326 = vst [vmem:[%s3 + $0x40] sm:$0xff] %v1254
  %1327 = vst [vmem:[%s3 + $0x48] sm:$0xff] %v1255
  %1328 = vst [vmem:[%s3 + $0x50] sm:$0xff] %v1256
  %1329 = vst [vmem:[%s3 + $0x58] sm:$0xff] %v1257
  %1330 = vst [vmem:[%s3 + $0x60] sm:$0xff] %v1258
  %1331 = vst [vmem:[%s3 + $0x68] sm:$0xff] %v1259
  %1332 = vst [vmem:[%s3 + $0x70] sm:$0xff] %v1260
  %1333 = vst [vmem:[%s3 + $0x78] sm:$0xff] %v1261
  %1334 = vst [vmem:[%s3 + $0x80] sm:$0xff] %v1262
  %1335 = vst [vmem:[%s3 + $0x88] sm:$0xff] %v1263
  %1336 = vst [vmem:[%s3 + $0x90] sm:$0xff] %v1264
  %1337 = vst [vmem:[%s3 + $0x98] sm:$0xff] %v1265
  %1338 = vst [vmem:[%s3 + $0xa0] sm:$0xff] %v1266
  %1339 = vst [vmem:[%s3 + $0xa8] sm:$0xff] %v1267
  %1340 = vst [vmem:[%s3 + $0xb0] sm:$0xff] %v1268
  %1341 = vst [vmem:[%s3 + $0xb8] sm:$0xff] %v1269
  %1342 = vst [vmem:[%s3 + $0xc0] sm:$0xff] %v1270
  %1343 = vst [vmem:[%s3 + $0xc8] sm:$0xff] %v1271
  %1344 = vst [vmem:[%s3 + $0xd0] sm:$0xff] %v1272
  %1345 = vst [vmem:[%s3 + $0xd8] sm:$0xff] %v1273
  %1346 = vst [vmem:[%s3 + $0xe0] sm:$0xff] %v1274
  %1347 = vst [vmem:[%s3 + $0xe8] sm:$0xff] %v1275
  %1348 = vst [vmem:[%s3 + $0xf0] sm:$0xff] %v1276
  %1349 = vst [vmem:[%s3 + $0xf8] sm:$0xff] %v1277
  %1350 = vst [vmem:[%s3 + $0x100] sm:$0xff] %v1278
  %1351 = vst [vmem:[%s3 + $0x108] sm:$0xff] %v1279
  %1352 = vst [vmem:[%s3 + $0x110] sm:$0xff] %v1280
  %1353 = vst [vmem:[%s3 + $0x118] sm:$0xff] %v1281
  %1354 = vst [vmem:[%s3 + $0x120] sm:$0xff] %v1282
  %1355 = vst [vmem:[%s3 + $0x128] sm:$0xff] %v1283
  %1356 = vst [vmem:[%s3 + $0x130] sm:$0xff] %v1284
  %1357 = vst [vmem:[%s3 + $0x138] sm:$0xff] %v1285
  %1358 = vst [vmem:[%s3 + $0x140] sm:$0xff] %v1286
  %1359 = vst [vmem:[%s3 + $0x148] sm:$0xff] %v1287
  %1360 = vst [vmem:[%s3 + $0x150] sm:$0xff] %v1288
  %1361 = vst [vmem:[%s3 + $0x158] sm:$0xff] %v1289
  %1362 = vst [vmem:[%s3 + $0x160] sm:$0xff] %v1290
  %1363 = vst [vmem:[%s3 + $0x168] sm:$0xff] %v1291
  %1364 = vst [vmem:[%s3 + $0x170] sm:$0xff] %v1292
  %1365 = vst [vmem:[%s3 + $0x178] sm:$0xff] %v1293
  %1366 = vst [vmem:[%s3 + $0x180] sm:$0xff] %v1294
  %1367 = vst [vmem:[%s3 + $0x188] sm:$0xff] %v1295
  %1368 = vst [vmem:[%s3 + $0x190] sm:$0xff] %v1296
  %1369 = vst [vmem:[%s3 + $0x198] sm:$0xff] %v1297
  %1370 = vst [vmem:[%s3 + $0x1a0] sm:$0xff] %v1298
  %1371 = vst [vmem:[%s3 + $0x1a8] sm:$0xff] %v1299
  %1372 = vst [vmem:[%s3 + $0x1b0] sm:$0xff] %v1300
  %1373 = vst [vmem:[%s3 + $0x1b8] sm:$0xff] %v1301
  %1374 = vst [vmem:[%s3 + $0x1c0] sm:$0xff] %v1302
  %1375 = vst [vmem:[%s3 + $0x1c8] sm:$0xff] %v1303
  %1376 = vst [vmem:[%s3 + $0x1d0] sm:$0xff] %v1304
  %1377 = vst [vmem:[%s3 + $0x1d8] sm:$0xff] %v1305
  %1378 = vst [vmem:[%s3 + $0x1e0] sm:$0xff] %v1306
  %1379 = vst [vmem:[%s3 + $0x1e8] sm:$0xff] %v1307
  %1380 = vst [vmem:[%s3 + $0x1f0] sm:$0xff] %v1308
  %1381 = vst [vmem:[%s3 + $0x1f8] sm:$0xff] %v1309
  %1382 = vst [vmem:[%s3 + $0x200] sm:$0xff] %v1310
  %1383 = vst [vmem:[%s3 + $0x208] sm:$0xff] %v1311
  %1384 = vst [vmem:[%s3 + $0x210] sm:$0xff] %v1312
  %1385 = vst [vmem:[%s3 + $0x218] sm:$0xff] %v1313
  %1386 = vst [vmem:[%s3 + $0x220] sm:$0xff] %v1314
  %1387 = vst [vmem:[%s3 + $0x228] sm:$0xff] %v1315
  %1388 = vst [vmem:[%s3 + $0x230] sm:$0xff] %v1316
  %1389 = vst [vmem:[%s3 + $0x238] sm:$0xff] %v1317
  // Predicated region
  $region14: #{basic_conv_forward.3} parent=0 // pred_check
    _
  $region15: #{basic_conv_forward.3} parent=0 // pred_check_branch
    %1391 = sbr.rel (0) target = $region17
  $region16: #{basic_conv_forward.3} parent=0 // pred_region
    _
  $region17: #{basic_conv_forward.3} parent=0 // pred_fallthru
    _
  // Predicated region
  $region18: #{basic_conv_forward.3} parent=0 // pred_check
    _
  $region19: #{basic_conv_forward.3} parent=0 // pred_check_branch
    %1393 = sbr.rel (0) target = $region21
  $region20: #{basic_conv_forward.3} parent=0 // pred_region
    _
  $region21: #{basic_conv_forward.3} parent=0 // pred_fallthru
    _

// kernel: basic_conv_forward.2
$region0: #{basic_conv_forward.2}
  #allocation0 [shape = 'u32[]', space=smem, size = 0x4, offset = 0x4, fixed_abs, tag = 'smem constant byte address 0x4 - core index']
  #allocation1 [shape = 'u32[72,128]{1,0:T(1,128)}', space=vmem, size = 0x9000, scoped, tag = 'internal scratch']
  %s0 = inlined_call_operand.vmem [shape: bf16[2,342,8], index: 0, kind: input, shape index: {}]
  %s1 = inlined_call_operand.vmem [shape: bf16[72,128], index: 1, kind: input, shape index: {}]
  %s2 = inlined_call_operand.vmem [shape: f32[1,288,1], index: 2, kind: input, shape index: {}]
  %s3 = inlined_call_operand.vmem [shape: bf16[2,288,128], index: 3, kind: output, shape index: {0}]
  %s4 = inlined_call_operand.vmem [shape: f32[2,1,128], index: 4, kind: output, shape index: {1}]
  %s5 = inlined_call_operand.vmem [shape: f32[2,1,128], index: 5, kind: output, shape index: {2}]
  %6 = xla_tuple %s3, %s4, %s5
  %s7 = sld [smem:[#allocation0]]
  $region61: #{basic_conv_forward.2} parent=0
    _
  %s9 = ssub.s32 1, %s7
  %s10 = scalar_select 0, %s9, %s7
  loop: start=0, step=1, limit=4
  $region2: #{basic_conv_forward.2} parent=0 // loop_pre_header
    _
  $region3: #{basic_conv_forward.2} parent=0 // loop_header
    %s12 = sphi 0, %s16
    %p13 = scmp.ge.s32.totalorder %s12, 4
    %s19 = sphi 0, %s38
    %s20 = sphi 0, %s34
    %s21 = sphi 0, %s30
    %s22 = sphi 0, %s19
    %s23 = sphi 0, %s20
    %s24 = sphi 0, %s21
    %s25 = sphi 0, %s22
    %s26 = sphi 0, %s23
    %s27 = sphi 0, %s24
    %s43 = sphi 0, %s45
    %s46 = sphi 0, %s43
    %s47 = sphi 0, %s46
    %s63 = sphi 0, %s47
    %s69 = sphi 0, %s71
    %s72 = sphi 0, %s69
    %s73 = sphi 0, %s72
    %s89 = sphi 0, %s73
    %s95 = sphi 0, %s97
    %s98 = sphi 0, %s95
    %s99 = sphi 0, %s98
    %s115 = sphi 0, %s99
    %s125 = sphi 0, %s127
    %s128 = sphi 0, %s125
    %s129 = sphi 0, %s128
    %s145 = sphi 0, %s129
    %s155 = sphi 0, %s157
    %s158 = sphi 0, %s155
    %s159 = sphi 0, %s158
    %s175 = sphi 0, %s159
    %s185 = sphi 0, %s187
    %s188 = sphi 0, %s185
    %s189 = sphi 0, %s188
    %s205 = sphi 0, %s189
  $region4: #{basic_conv_forward.2} parent=0 // loop_header_branch
    %15 = sbr.rel (%p13) target = $region8
  $region5: #{basic_conv_forward.2} parent=0 // loop_body
    %s17 = ssub.s32 %s12, 1
    %s18 = ssub.s32 %s12, 2
    %s28 = sadd.s32 1, %s21
    %p29 = scmp.ge.s32.totalorder %s28, 1
    %s30 = scalar_select %p29, 0, %s28
    %s31 = sadd.s32 1, %s20
    %s32 = scalar_select %p29, %s31, %s20
    %p33 = scmp.ge.s32.totalorder %s32, 2
    %s34 = scalar_select %p33, 0, %s32
    %s35 = sadd.s32 1, %s19
    %s36 = scalar_select %p33, %s35, %s19
    %p37 = scmp.ge.s32.totalorder %s36, 1
    %s38 = scalar_select %p37, 0, %s36
    %s39 = sadd.s32 %s20, %s19
    %s40 = sadd.s32 %s34, %s38
    %s41 = ssub.s32 %s39, %s40
    %p42 = scmp.eq.s32.totalorder %s41, 0
    %s44 = sadd.s32 %s43, 1
    %s45 = scalar_select %p42, %s43, %s44
    %p48 = pneg %p42
    %p49 = scmp.eq.s32.totalorder %s12, 1
    %p50 = por %p48, %p49
    %p51 = scmp.ne.s32.totalorder %s43, %s46
    %p52 = scmp.eq.s32.totalorder %s12, 0
    %p53 = por %p51, %p52
    %p54 = scmp.ne.s32.totalorder %s43, %s46
    %p55 = scmp.eq.s32.totalorder %s17, 1
    %p56 = por %p54, %p55
    %p57 = scmp.ne.s32.totalorder %s46, %s47
    %p58 = scmp.eq.s32.totalorder %s17, 0
    %p59 = por %p57, %p58
    %p60 = scmp.ne.s32.totalorder %s46, %s47
    %p61 = scmp.eq.s32.totalorder %s18, 1
    %p62 = por %p60, %p61
    %p64 = scmp.ne.s32.totalorder %s47, %s63
    %p65 = scmp.eq.s32.totalorder %s18, 0
    %p66 = por %p64, %p65
    %s67 = ssub.s32 %s21, %s30
    %p68 = scmp.eq.s32.totalorder %s67, 0
    %s70 = sadd.s32 %s69, 1
    %s71 = scalar_select %p68, %s69, %s70
    %p74 = pneg %p68
    %p75 = scmp.eq.s32.totalorder %s12, 1
    %p76 = por %p74, %p75
    %p77 = scmp.ne.s32.totalorder %s69, %s72
    %p78 = scmp.eq.s32.totalorder %s12, 0
    %p79 = por %p77, %p78
    %p80 = scmp.ne.s32.totalorder %s69, %s72
    %p81 = scmp.eq.s32.totalorder %s17, 1
    %p82 = por %p80, %p81
    %p83 = scmp.ne.s32.totalorder %s72, %s73
    %p84 = scmp.eq.s32.totalorder %s17, 0
    %p85 = por %p83, %p84
    %p86 = scmp.ne.s32.totalorder %s72, %s73
    %p87 = scmp.eq.s32.totalorder %s18, 1
    %p88 = por %p86, %p87
    %p90 = scmp.ne.s32.totalorder %s73, %s89
    %p91 = scmp.eq.s32.totalorder %s18, 0
    %p92 = por %p90, %p91
    %s93 = ssub.s32 %s19, %s38
    %p94 = scmp.eq.s32.totalorder %s93, 0
    %s96 = sadd.s32 %s95, 1
    %s97 = scalar_select %p94, %s95, %s96
    %p100 = pneg %p94
    %p101 = scmp.eq.s32.totalorder %s12, 1
    %p102 = por %p100, %p101
    %p103 = scmp.ne.s32.totalorder %s95, %s98
    %p104 = scmp.eq.s32.totalorder %s12, 0
    %p105 = por %p103, %p104
    %p106 = scmp.ne.s32.totalorder %s95, %s98
    %p107 = scmp.eq.s32.totalorder %s17, 1
    %p108 = por %p106, %p107
    %p109 = scmp.ne.s32.totalorder %s98, %s99
    %p110 = scmp.eq.s32.totalorder %s17, 0
    %p111 = por %p109, %p110
    %p112 = scmp.ne.s32.totalorder %s98, %s99
    %p113 = scmp.eq.s32.totalorder %s18, 1
    %p114 = por %p112, %p113
    %p116 = scmp.ne.s32.totalorder %s99, %s115
    %p117 = scmp.eq.s32.totalorder %s18, 0
    %p118 = por %p116, %p117
    %s119 = ssub.s32 %s20, %s34
    %s120 = ssub.s32 %s19, %s38
    %s121 = sor.u32 %s119, %s120
    %s122 = ssub.s32 %s21, %s30
    %s123 = sor.u32 %s121, %s122
    %p124 = scmp.eq.s32.totalorder %s123, 0
    %s126 = sadd.s32 %s125, 1
    %s127 = scalar_select %p124, %s125, %s126
    %p130 = pneg %p124
    %p131 = scmp.eq.s32.totalorder %s12, 1
    %p132 = por %p130, %p131
    %p133 = scmp.ne.s32.totalorder %s125, %s128
    %p134 = scmp.eq.s32.totalorder %s12, 0
    %p135 = por %p133, %p134
    %p136 = scmp.ne.s32.totalorder %s125, %s128
    %p137 = scmp.eq.s32.totalorder %s17, 1
    %p138 = por %p136, %p137
    %p139 = scmp.ne.s32.totalorder %s128, %s129
    %p140 = scmp.eq.s32.totalorder %s17, 0
    %p141 = por %p139, %p140
    %p142 = scmp.ne.s32.totalorder %s128, %s129
    %p143 = scmp.eq.s32.totalorder %s18, 1
    %p144 = por %p142, %p143
    %p146 = scmp.ne.s32.totalorder %s129, %s145
    %p147 = scmp.eq.s32.totalorder %s18, 0
    %p148 = por %p146, %p147
    %s149 = sadd.s32 %s20, %s19
    %s150 = sadd.s32 %s34, %s38
    %s151 = ssub.s32 %s149, %s150
    %s152 = ssub.s32 %s21, %s30
    %s153 = sor.u32 %s151, %s152
    %p154 = scmp.eq.s32.totalorder %s153, 0
    %s156 = sadd.s32 %s155, 1
    %s157 = scalar_select %p154, %s155, %s156
    %p160 = pneg %p154
    %p161 = scmp.eq.s32.totalorder %s12, 1
    %p162 = por %p160, %p161
    %p163 = scmp.ne.s32.totalorder %s155, %s158
    %p164 = scmp.eq.s32.totalorder %s12, 0
    %p165 = por %p163, %p164
    %p166 = scmp.ne.s32.totalorder %s155, %s158
    %p167 = scmp.eq.s32.totalorder %s17, 1
    %p168 = por %p166, %p167
    %p169 = scmp.ne.s32.totalorder %s158, %s159
    %p170 = scmp.eq.s32.totalorder %s17, 0
    %p171 = por %p169, %p170
    %p172 = scmp.ne.s32.totalorder %s158, %s159
    %p173 = scmp.eq.s32.totalorder %s18, 1
    %p174 = por %p172, %p173
    %p176 = scmp.ne.s32.totalorder %s159, %s175
    %p177 = scmp.eq.s32.totalorder %s18, 0
    %p178 = por %p176, %p177
    %s179 = sadd.s32 %s20, %s19
    %s180 = sadd.s32 %s34, %s38
    %s181 = ssub.s32 %s179, %s180
    %s182 = ssub.s32 %s21, %s30
    %s183 = sor.u32 %s181, %s182
    %p184 = scmp.eq.s32.totalorder %s183, 0
    %s186 = sadd.s32 %s185, 1
    %s187 = scalar_select %p184, %s185, %s186
    %p190 = pneg %p184
    %p191 = scmp.eq.s32.totalorder %s12, 1
    %p192 = por %p190, %p191
    %p193 = scmp.ne.s32.totalorder %s185, %s188
    %p194 = scmp.eq.s32.totalorder %s12, 0
    %p195 = por %p193, %p194
    %p196 = scmp.ne.s32.totalorder %s185, %s188
    %p197 = scmp.eq.s32.totalorder %s17, 1
    %p198 = por %p196, %p197
    %p199 = scmp.ne.s32.totalorder %s188, %s189
    %p200 = scmp.eq.s32.totalorder %s17, 0
    %p201 = por %p199, %p200
    %p202 = scmp.ne.s32.totalorder %s188, %s189
    %p203 = scmp.eq.s32.totalorder %s18, 1
    %p204 = por %p202, %p203
    %p206 = scmp.ne.s32.totalorder %s189, %s205
    %p207 = scmp.eq.s32.totalorder %s18, 0
    %p208 = por %p206, %p207
    %p209 = scmp.le.s32.totalorder 1, %s12
    %p210 = scmp.lt.s32.totalorder %s12, 3
    %p211 = pnand %p209, %p210
    %p212 = pneg %p211
    // Predicated region
    $region9: #{basic_conv_forward.2} parent=5 // pred_check
      _
    $region10: #{basic_conv_forward.2} parent=5 // pred_check_branch
      %214 = sbr.rel (%p211) target = $region12
    $region11: #{basic_conv_forward.2} parent=5 // pred_region
      %s215 = ssub.s32 %s12, 1
      // Predicated region
      $region13: #{basic_conv_forward.2} parent=11 // pred_check
        %p216 = pneg %p85
      $region14: #{basic_conv_forward.2} parent=11 // pred_check_branch
        %218 = sbr.rel (%p216) target = $region16
      $region15: #{basic_conv_forward.2} parent=11 // pred_region
        %p219 = scmp.lt.s32.totalorder %s24, 0
        %s220 = scalar_select %p219, %s24, 0
        %s221 = smul.addr %s220, 4
        %s222 = scalar_lea.vmem %s1, %s221
      $region16: #{basic_conv_forward.2} parent=11 // pred_fallthru
        _
      // Predicated region
      $region17: #{basic_conv_forward.2} parent=11 // pred_check
        %p223 = pneg %p111
      $region18: #{basic_conv_forward.2} parent=11 // pred_check_branch
        %225 = sbr.rel (%p223) target = $region20
      $region19: #{basic_conv_forward.2} parent=11 // pred_region
        %p226 = scmp.lt.s32.totalorder %s22, 0
        %s227 = scalar_select %p226, %s22, 0
        %s228 = smul.addr %s227, 36
        %s229 = smul.addr %s228, 8
        %s230 = scalar_lea.vmem %s2, %s229
      $region20: #{basic_conv_forward.2} parent=11 // pred_fallthru
        _
    $region12: #{basic_conv_forward.2} parent=5 // pred_fallthru
      _
    %p231 = scmp.lt.s32.totalorder %s12, 2
    // Predicated region
    $region21: #{basic_conv_forward.2} parent=5 // pred_check
      %p232 = pneg %p231
    $region22: #{basic_conv_forward.2} parent=5 // pred_check_branch
      %234 = sbr.rel (%p232) target = $region24
    $region23: #{basic_conv_forward.2} parent=5 // pred_region
      // Predicated region
      $region25: #{basic_conv_forward.2} parent=23 // pred_check
        %p235 = pneg %p53
      $region26: #{basic_conv_forward.2} parent=23 // pred_check_branch
        %237 = sbr.rel (%p235) target = $region28
      $region27: #{basic_conv_forward.2} parent=23 // pred_region
        %s238 = sadd.s32 %s20, %s19
        %p239 = scmp.lt.s32.totalorder %s238, 1
        %s240 = scalar_select %p239, %s238, 1
        %s241 = smul.addr %s240, 43
        %s242 = smul.addr %s241, 4
        %s243 = scalar_lea.vmem %s0, %s242
        %s244 = sadd.s32 %s20, %s19
      $region28: #{basic_conv_forward.2} parent=23 // pred_fallthru
        _
    $region24: #{basic_conv_forward.2} parent=5 // pred_fallthru
      _
    %p245 = scmp.le.s32.totalorder 1, %s12
    %p246 = scmp.lt.s32.totalorder %s12, 3
    %p247 = pnand %p245, %p246
    %p248 = pneg %p247
    // Predicated region
    $region29: #{basic_conv_forward.2} parent=5 // pred_check
      _
    $region30: #{basic_conv_forward.2} parent=5 // pred_check_branch
      %250 = sbr.rel (%p247) target = $region32
    $region31: #{basic_conv_forward.2} parent=5 // pred_region
      %s251 = ssub.s32 %s12, 1
      %s252 = sadd.s32 %s23, %s22
      %p253 = scmp.lt.s32.totalorder %s252, 1
      %s254 = scalar_select %p253, %s252, 1
      %s255 = smul.addr %s254, 43
      %s256 = smul.addr %s255, 4
      %s257 = scalar_lea.vmem %s0, %s256
      %p258 = pneg %p59
      %p259 = pneg %p56
      %p260 = scmp.lt.s32.totalorder %s24, 0
      %s261 = scalar_select %p260, %s24, 0
      %s262 = smul.addr %s261, 4
      %s263 = scalar_lea.vmem %s1, %s262
      %p264 = pneg %p85
      %p265 = pneg %p82
      %p266 = scmp.lt.s32.totalorder %s22, 0
      %s267 = scalar_select %p266, %s22, 0
      %s268 = smul.addr %s267, 36
      %s269 = smul.addr %s268, 8
      %s270 = scalar_lea.vmem %s2, %s269
      %p271 = pneg %p111
      %p272 = pneg %p108
      %p273 = pneg %p141
      %p274 = pneg %p138
      %s275 = smul.u32 36, %s22
      %p276 = scmp.lt.s32.totalorder %s23, 1
      %s277 = scalar_select %p276, %s23, 1
      %p278 = scmp.lt.s32.totalorder %s275, 35
      %s279 = scalar_select %p278, %s275, 35
      %p280 = scmp.lt.s32.totalorder %s24, 0
      %s281 = scalar_select %p280, %s24, 0
      %s282 = sadd.s32 %s281, %s279
      %s283 = smul.addr %s277, 36
      %s284 = sadd.s32 %s282, %s283
      %s285 = smul.addr %s284, 4
      %s286 = scalar_lea.vmem %s3, %s285
      %p287 = pneg %p171
      %p288 = pneg %p168
      %s289 = sadd.s32 %s23, %s22
      %p290 = scmp.lt.s32.totalorder %s289, 1
      %s291 = scalar_select %p290, %s289, 1
      %p292 = scmp.lt.s32.totalorder %s24, 0
      %s293 = scalar_select %p292, %s24, 0
      %s294 = sadd.s32 %s293, %s291
      %s295 = scalar_lea.vmem %s4, %s294
      %p296 = pneg %p201
      %p297 = pneg %p198
      %s298 = sadd.s32 %s23, %s22
      %p299 = scmp.lt.s32.totalorder %s298, 1
      %s300 = scalar_select %p299, %s298, 1
      %p301 = scmp.lt.s32.totalorder %s24, 0
      %s302 = scalar_select %p301, %s24, 0
      %s303 = sadd.s32 %s302, %s300
      %s304 = scalar_lea.vmem %s5, %s303
      %s305 = sadd.s32 %s23, %s22
      %p306 = scmp.lt.s32.totalorder %s305, 1
      %s307 = scalar_select %p306, %s305, 1
      %s308 = smul.addr %s307, 43
      %s309 = smul.addr %s308, 4
      %s310 = scalar_lea.vmem %s0, %s309
      %s311 = sadd.s32 %s23, %s22
      %p312 = scmp.lt.s32.totalorder %s24, 0
      %s313 = scalar_select %p312, %s24, 0
      %s314 = smul.addr %s313, 4
      %s315 = scalar_lea.vmem %s1, %s314
      %p316 = scmp.lt.s32.totalorder %s22, 0
      %s317 = scalar_select %p316, %s22, 0
      %s318 = smul.addr %s317, 36
      %s319 = smul.addr %s318, 8
      %s320 = scalar_lea.vmem %s2, %s319
      %s321 = smul.u32 36, %s22
      %p322 = scmp.lt.s32.totalorder %s23, 1
      %s323 = scalar_select %p322, %s23, 1
      %p324 = scmp.lt.s32.totalorder %s321, 35
      %s325 = scalar_select %p324, %s321, 35
      %p326 = scmp.lt.s32.totalorder %s24, 0
      %s327 = scalar_select %p326, %s24, 0
      %s328 = sadd.s32 %s327, %s325
      %s329 = smul.addr %s323, 36
      %s330 = sadd.s32 %s328, %s329
      %s331 = smul.addr %s330, 4
      %s332 = scalar_lea.vmem %s3, %s331
      %s333 = smul.u32 36, %s22
      %s334 = sadd.s32 %s23, %s22
      %p335 = scmp.lt.s32.totalorder %s334, 1
      %s336 = scalar_select %p335, %s334, 1
      %p337 = scmp.lt.s32.totalorder %s24, 0
      %s338 = scalar_select %p337, %s24, 0
      %s339 = sadd.s32 %s338, %s336
      %s340 = scalar_lea.vmem %s4, %s339
      %s341 = sadd.s32 %s23, %s22
      %s342 = sadd.s32 %s23, %s22
      %p343 = scmp.lt.s32.totalorder %s342, 1
      %s344 = scalar_select %p343, %s342, 1
      %p345 = scmp.lt.s32.totalorder %s24, 0
      %s346 = scalar_select %p345, %s24, 0
      %s347 = sadd.s32 %s346, %s344
      %s348 = scalar_lea.vmem %s5, %s347
      %s349 = sadd.s32 %s23, %s22
      %v351 = vld [vmem:[%s310] sm:$0xf]
      %v352 = vld [vmem:[%s310 + $0x4] sm:$0xf]
      %v353 = vld [vmem:[%s310 + $0x8] sm:$0xf]
      %v354 = vld [vmem:[%s310 + $0xc] sm:$0xf]
      %v355 = vld [vmem:[%s310 + $0x10] sm:$0xf]
      %v356 = vld [vmem:[%s310 + $0x14] sm:$0xf]
      %v357 = vld [vmem:[%s310 + $0x18] sm:$0xf]
      %v358 = vld [vmem:[%s310 + $0x1c] sm:$0xf]
      %v359 = vld [vmem:[%s310 + $0x20] sm:$0xf]
      %v360 = vld [vmem:[%s310 + $0x24] sm:$0xf]
      %v361 = vld [vmem:[%s310 + $0x28] sm:$0xf]
      %v362 = vld [vmem:[%s310 + $0x2c] sm:$0xf]
      %v363 = vld [vmem:[%s310 + $0x30] sm:$0xf]
      %v364 = vld [vmem:[%s310 + $0x34] sm:$0xf]
      %v365 = vld [vmem:[%s310 + $0x38] sm:$0xf]
      %v366 = vld [vmem:[%s310 + $0x3c] sm:$0xf]
      %v367 = vld [vmem:[%s310 + $0x40] sm:$0xf]
      %v368 = vld [vmem:[%s310 + $0x44] sm:$0xf]
      %v369 = vld [vmem:[%s310 + $0x48] sm:$0xf]
      %v370 = vld [vmem:[%s310 + $0x4c] sm:$0xf]
      %v371 = vld [vmem:[%s310 + $0x50] sm:$0xf]
      %v372 = vld [vmem:[%s310 + $0x54] sm:$0xf]
      %v373 = vld [vmem:[%s310 + $0x58] sm:$0xf]
      %v374 = vld [vmem:[%s310 + $0x5c] sm:$0xf]
      %v375 = vld [vmem:[%s310 + $0x60] sm:$0xf]
      %v376 = vld [vmem:[%s310 + $0x64] sm:$0xf]
      %v377 = vld [vmem:[%s310 + $0x68] sm:$0xf]
      %v378 = vld [vmem:[%s310 + $0x6c] sm:$0xf]
      %v379 = vld [vmem:[%s310 + $0x70] sm:$0xf]
      %v380 = vld [vmem:[%s310 + $0x74] sm:$0xf]
      %v381 = vld [vmem:[%s310 + $0x78] sm:$0xf]
      %v382 = vld [vmem:[%s310 + $0x7c] sm:$0xf]
      %v383 = vld [vmem:[%s310 + $0x80] sm:$0xf]
      %v384 = vld [vmem:[%s310 + $0x84] sm:$0xf]
      %v385 = vld [vmem:[%s310 + $0x88] sm:$0xf]
      %v386 = vld [vmem:[%s310 + $0x8c] sm:$0xf]
      %v387 = vld [vmem:[%s310 + $0x90] sm:$0x1]
      %v388 = vld [vmem:[%s310] sm:$0xe]
      %v389 = vld [vmem:[%s310 + $0x8] sm:$0xe]
      %v390 = vld [vmem:[%s310 + $0x90] sm:$0xf]
      %v391 = vld [vmem:[%s310 + $0x94] sm:$0xf]
      %v392 = vld [vmem:[%s310 + $0x98] sm:$0x1]
      %v393 = vld [vmem:[%s310 + $0x98] sm:$0x3]
      %v394 = vld [vmem:[%s310 + $0x8] sm:$0xc]
      %v395 = vld [vmem:[%s310 + $0x10] sm:$0xc]
      %v396 = vld [vmem:[%s310 + $0x98] sm:$0xf]
      %v397 = vld [vmem:[%s310 + $0x9c] sm:$0xf]
      %v398 = vld [vmem:[%s310 + $0xa0] sm:$0x3]
      %v399 = vld [vmem:[%s310 + $0xa0] sm:$0x7]
      %v400 = vld [vmem:[%s310 + $0x10] sm:$0x8]
      %v437 = vunpack.c.l.b16 %v351
      %v438 = vunpack.c.l.b16 %v352
      %v439 = vunpack.c.l.b16 %v353
      %v440 = vunpack.c.l.b16 %v354
      %v441 = vunpack.c.l.b16 %v355
      %v442 = vunpack.c.l.b16 %v356
      %v443 = vunpack.c.l.b16 %v357
      %v444 = vunpack.c.l.b16 %v358
      %v445 = vunpack.c.l.b16 %v359
      %v446 = vunpack.c.l.b16 %v360
      %v447 = vunpack.c.l.b16 %v361
      %v448 = vunpack.c.l.b16 %v362
      %v449 = vunpack.c.l.b16 %v363
      %v450 = vunpack.c.l.b16 %v364
      %v451 = vunpack.c.l.b16 %v365
      %v452 = vunpack.c.l.b16 %v366
      %v453 = vunpack.c.l.b16 %v367
      %v454 = vunpack.c.l.b16 %v368
      %v455 = vunpack.c.l.b16 %v369
      %v456 = vunpack.c.l.b16 %v370
      %v457 = vunpack.c.l.b16 %v371
      %v458 = vunpack.c.l.b16 %v372
      %v459 = vunpack.c.l.b16 %v373
      %v460 = vunpack.c.l.b16 %v374
      %v461 = vunpack.c.l.b16 %v375
      %v462 = vunpack.c.l.b16 %v376
      %v463 = vunpack.c.l.b16 %v377
      %v464 = vunpack.c.l.b16 %v378
      %v465 = vunpack.c.l.b16 %v379
      %v466 = vunpack.c.l.b16 %v380
      %v467 = vunpack.c.l.b16 %v381
      %v468 = vunpack.c.l.b16 %v382
      %v469 = vunpack.c.l.b16 %v383
      %v470 = vunpack.c.l.b16 %v384
      %v471 = vunpack.c.l.b16 %v385
      %v472 = vunpack.c.l.b16 %v386
      %v473 = vpack.c.b16 %v438, %v437
      %v474 = vpack.c.b16 %v440, %v439
      %v475 = vpack.c.b16 %v442, %v441
      %v476 = vpack.c.b16 %v444, %v443
      %v477 = vpack.c.b16 %v446, %v445
      %v478 = vpack.c.b16 %v448, %v447
      %v479 = vpack.c.b16 %v450, %v449
      %v480 = vpack.c.b16 %v452, %v451
      %v481 = vpack.c.b16 %v454, %v453
      %v482 = vpack.c.b16 %v456, %v455
      %v483 = vpack.c.b16 %v458, %v457
      %v484 = vpack.c.b16 %v460, %v459
      %v485 = vpack.c.b16 %v462, %v461
      %v486 = vpack.c.b16 %v464, %v463
      %v487 = vpack.c.b16 %v466, %v465
      %v488 = vpack.c.b16 %v468, %v467
      %v489 = vpack.c.b16 %v470, %v469
      %v490 = vpack.c.b16 %v472, %v471
      %v492 = vunpack.c.l.b16 %v387
      %v493 = vpack.c.b16 %v492, %v492
      %vm494 = vsmask.f32 7424
      %v496 = vshrl.u32 %v473, 16
      %v498 = vshll.u32 %v473, 16
      %v500 = vrot.slane %v498, 1
      %v501 = vor.u32 %v496, %v500
      %v503 = vshll.u32 %v474, 16
      %v505 = vrot.slane %v503, 1
      %v506 = vsel %vm494, %v501, %v505
      %v507 = vshrl.u32 %v474, 16
      %v509 = vor.u32 %v507, %v505
      %v511 = vshll.u32 %v475, 16
      %v513 = vrot.slane %v511, 1
      %v514 = vsel %vm494, %v509, %v513
      %v515 = vshrl.u32 %v475, 16
      %v517 = vor.u32 %v515, %v513
      %v519 = vshll.u32 %v476, 16
      %v521 = vrot.slane %v519, 1
      %v522 = vsel %vm494, %v517, %v521
      %v523 = vshrl.u32 %v476, 16
      %v525 = vor.u32 %v523, %v521
      %v527 = vshll.u32 %v477, 16
      %v529 = vrot.slane %v527, 1
      %v530 = vsel %vm494, %v525, %v529
      %v531 = vshrl.u32 %v477, 16
      %v533 = vor.u32 %v531, %v529
      %v535 = vshll.u32 %v478, 16
      %v537 = vrot.slane %v535, 1
      %v538 = vsel %vm494, %v533, %v537
      %v539 = vshrl.u32 %v478, 16
      %v541 = vor.u32 %v539, %v537
      %v543 = vshll.u32 %v479, 16
      %v545 = vrot.slane %v543, 1
      %v546 = vsel %vm494, %v541, %v545
      %v547 = vshrl.u32 %v479, 16
      %v549 = vor.u32 %v547, %v545
      %v551 = vshll.u32 %v480, 16
      %v553 = vrot.slane %v551, 1
      %v554 = vsel %vm494, %v549, %v553
      %v555 = vshrl.u32 %v480, 16
      %v557 = vor.u32 %v555, %v553
      %v559 = vshll.u32 %v481, 16
      %v561 = vrot.slane %v559, 1
      %v562 = vsel %vm494, %v557, %v561
      %v563 = vshrl.u32 %v481, 16
      %v565 = vor.u32 %v563, %v561
      %v567 = vshll.u32 %v482, 16
      %v569 = vrot.slane %v567, 1
      %v570 = vsel %vm494, %v565, %v569
      %v571 = vshrl.u32 %v482, 16
      %v573 = vor.u32 %v571, %v569
      %v575 = vshll.u32 %v483, 16
      %v577 = vrot.slane %v575, 1
      %v578 = vsel %vm494, %v573, %v577
      %v579 = vshrl.u32 %v483, 16
      %v581 = vor.u32 %v579, %v577
      %v583 = vshll.u32 %v484, 16
      %v585 = vrot.slane %v583, 1
      %v586 = vsel %vm494, %v581, %v585
      %v587 = vshrl.u32 %v484, 16
      %v589 = vor.u32 %v587, %v585
      %v591 = vshll.u32 %v485, 16
      %v593 = vrot.slane %v591, 1
      %v594 = vsel %vm494, %v589, %v593
      %v595 = vshrl.u32 %v485, 16
      %v597 = vor.u32 %v595, %v593
      %v599 = vshll.u32 %v486, 16
      %v601 = vrot.slane %v599, 1
      %v602 = vsel %vm494, %v597, %v601
      %v603 = vshrl.u32 %v486, 16
      %v605 = vor.u32 %v603, %v601
      %v607 = vshll.u32 %v487, 16
      %v609 = vrot.slane %v607, 1
      %v610 = vsel %vm494, %v605, %v609
      %v611 = vshrl.u32 %v487, 16
      %v613 = vor.u32 %v611, %v609
      %v615 = vshll.u32 %v488, 16
      %v617 = vrot.slane %v615, 1
      %v618 = vsel %vm494, %v613, %v617
      %v619 = vshrl.u32 %v488, 16
      %v621 = vor.u32 %v619, %v617
      %v623 = vshll.u32 %v489, 16
      %v625 = vrot.slane %v623, 1
      %v626 = vsel %vm494, %v621, %v625
      %v627 = vshrl.u32 %v489, 16
      %v629 = vor.u32 %v627, %v625
      %v631 = vshll.u32 %v490, 16
      %v633 = vrot.slane %v631, 1
      %v634 = vsel %vm494, %v629, %v633
      %v635 = vshrl.u32 %v490, 16
      %v637 = vor.u32 %v635, %v633
      %v639 = vshll.u32 %v493, 16
      %v641 = vrot.slane %v639, 1
      %v642 = vsel %vm494, %v637, %v641
      %643 = vrot.lane.b32.xlu0 %v506, 8
      %v644 = vpop.permute.xlu0 %643
      %645 = vrot.lane.b32.xlu0 %v514, 8
      %v646 = vpop.permute.xlu0 %645
      %647 = vrot.lane.b32.xlu0 %v522, 8
      %v648 = vpop.permute.xlu0 %647
      %649 = vrot.lane.b32.xlu0 %v530, 8
      %v650 = vpop.permute.xlu0 %649
      %651 = vrot.lane.b32.xlu0 %v538, 8
      %v652 = vpop.permute.xlu0 %651
      %653 = vrot.lane.b32.xlu0 %v546, 8
      %v654 = vpop.permute.xlu0 %653
      %655 = vrot.lane.b32.xlu0 %v554, 8
      %v656 = vpop.permute.xlu0 %655
      %657 = vrot.lane.b32.xlu0 %v562, 8
      %v658 = vpop.permute.xlu0 %657
      %659 = vrot.lane.b32.xlu0 %v570, 8
      %v660 = vpop.permute.xlu0 %659
      %661 = vrot.lane.b32.xlu0 %v578, 8
      %v662 = vpop.permute.xlu0 %661
      %663 = vrot.lane.b32.xlu0 %v586, 8
      %v664 = vpop.permute.xlu0 %663
      %665 = vrot.lane.b32.xlu0 %v594, 8
      %v666 = vpop.permute.xlu0 %665
      %667 = vrot.lane.b32.xlu0 %v602, 8
      %v668 = vpop.permute.xlu0 %667
      %669 = vrot.lane.b32.xlu0 %v610, 8
      %v670 = vpop.permute.xlu0 %669
      %671 = vrot.lane.b32.xlu0 %v618, 8
      %v672 = vpop.permute.xlu0 %671
      %673 = vrot.lane.b32.xlu0 %v626, 8
      %v674 = vpop.permute.xlu0 %673
      %675 = vrot.lane.b32.xlu0 %v634, 8
      %v676 = vpop.permute.xlu0 %675
      %677 = vrot.lane.b32.xlu0 %v642, 8
      %v678 = vpop.permute.xlu0 %677
      %v680 = vunpack.c.l.b16 %v388
      %v681 = vpack.c.b16 %v438, %v680
      %vm682 = vcmask 1046528
      %v683 = vrot.slane %v681, 1
      %v684 = vrot.slane %v474, 1
      %v685 = vsel %vm682, %v683, %v684
      %v686 = vrot.slane %v475, 1
      %v687 = vsel %vm682, %v684, %v686
      %v688 = vrot.slane %v476, 1
      %v689 = vsel %vm682, %v686, %v688
      %v690 = vrot.slane %v477, 1
      %v691 = vsel %vm682, %v688, %v690
      %v692 = vrot.slane %v478, 1
      %v693 = vsel %vm682, %v690, %v692
      %v694 = vrot.slane %v479, 1
      %v695 = vsel %vm682, %v692, %v694
      %v696 = vrot.slane %v480, 1
      %v697 = vsel %vm682, %v694, %v696
      %v698 = vrot.slane %v481, 1
      %v699 = vsel %vm682, %v696, %v698
      %v700 = vrot.slane %v482, 1
      %v701 = vsel %vm682, %v698, %v700
      %v702 = vrot.slane %v483, 1
      %v703 = vsel %vm682, %v700, %v702
      %v704 = vrot.slane %v484, 1
      %v705 = vsel %vm682, %v702, %v704
      %v706 = vrot.slane %v485, 1
      %v707 = vsel %vm682, %v704, %v706
      %v708 = vrot.slane %v486, 1
      %v709 = vsel %vm682, %v706, %v708
      %v710 = vrot.slane %v487, 1
      %v711 = vsel %vm682, %v708, %v710
      %v712 = vrot.slane %v488, 1
      %v713 = vsel %vm682, %v710, %v712
      %v714 = vrot.slane %v489, 1
      %v715 = vsel %vm682, %v712, %v714
      %v716 = vrot.slane %v490, 1
      %v717 = vsel %vm682, %v714, %v716
      %v718 = vrot.slane %v493, 1
      %v719 = vsel %vm682, %v716, %v718
      %720 = vrot.lane.b32.xlu0 %v685, 16
      %v721 = vpop.permute.xlu0 %720
      %722 = vrot.lane.b32.xlu0 %v687, 16
      %v723 = vpop.permute.xlu0 %722
      %724 = vrot.lane.b32.xlu0 %v689, 16
      %v725 = vpop.permute.xlu0 %724
      %726 = vrot.lane.b32.xlu0 %v691, 16
      %v727 = vpop.permute.xlu0 %726
      %728 = vrot.lane.b32.xlu0 %v693, 16
      %v729 = vpop.permute.xlu0 %728
      %730 = vrot.lane.b32.xlu0 %v695, 16
      %v731 = vpop.permute.xlu0 %730
      %732 = vrot.lane.b32.xlu0 %v697, 16
      %v733 = vpop.permute.xlu0 %732
      %734 = vrot.lane.b32.xlu0 %v699, 16
      %v735 = vpop.permute.xlu0 %734
      %736 = vrot.lane.b32.xlu0 %v701, 16
      %v737 = vpop.permute.xlu0 %736
      %738 = vrot.lane.b32.xlu0 %v703, 16
      %v739 = vpop.permute.xlu0 %738
      %740 = vrot.lane.b32.xlu0 %v705, 16
      %v741 = vpop.permute.xlu0 %740
      %742 = vrot.lane.b32.xlu0 %v707, 16
      %v743 = vpop.permute.xlu0 %742
      %744 = vrot.lane.b32.xlu0 %v709, 16
      %v745 = vpop.permute.xlu0 %744
      %746 = vrot.lane.b32.xlu0 %v711, 16
      %v747 = vpop.permute.xlu0 %746
      %748 = vrot.lane.b32.xlu0 %v713, 16
      %v749 = vpop.permute.xlu0 %748
      %750 = vrot.lane.b32.xlu0 %v715, 16
      %v751 = vpop.permute.xlu0 %750
      %752 = vrot.lane.b32.xlu0 %v717, 16
      %v753 = vpop.permute.xlu0 %752
      %754 = vrot.lane.b32.xlu0 %v719, 16
      %v755 = vpop.permute.xlu0 %754
      %v760 = vunpack.c.l.b16 %v389
      %v761 = vunpack.c.l.b16 %v390
      %v762 = vunpack.c.l.b16 %v391
      %v763 = vunpack.c.l.b16 %v392
      %v764 = vpack.c.b16 %v440, %v760
      %v765 = vpack.c.b16 %v762, %v761
      %v766 = vpack.c.b16 %v763, %v763
      %v767 = vrot.slane %v764, 1
      %v768 = vsel %vm682, %v767, %v686
      %v769 = vrot.slane %v765, 1
      %v770 = vsel %vm682, %v716, %v769
      %v771 = vrot.slane %v766, 1
      %v772 = vsel %vm682, %v769, %v771
      %773 = vrot.lane.b32.xlu0 %v768, 24
      %v774 = vpop.permute.xlu0 %773
      %775 = vrot.lane.b32.xlu0 %v689, 24
      %v776 = vpop.permute.xlu0 %775
      %777 = vrot.lane.b32.xlu0 %v691, 24
      %v778 = vpop.permute.xlu0 %777
      %779 = vrot.lane.b32.xlu0 %v693, 24
      %v780 = vpop.permute.xlu0 %779
      %781 = vrot.lane.b32.xlu0 %v695, 24
      %v782 = vpop.permute.xlu0 %781
      %783 = vrot.lane.b32.xlu0 %v697, 24
      %v784 = vpop.permute.xlu0 %783
      %785 = vrot.lane.b32.xlu0 %v699, 24
      %v786 = vpop.permute.xlu0 %785
      %787 = vrot.lane.b32.xlu0 %v701, 24
      %v788 = vpop.permute.xlu0 %787
      %789 = vrot.lane.b32.xlu0 %v703, 24
      %v790 = vpop.permute.xlu0 %789
      %791 = vrot.lane.b32.xlu0 %v705, 24
      %v792 = vpop.permute.xlu0 %791
      %793 = vrot.lane.b32.xlu0 %v707, 24
      %v794 = vpop.permute.xlu0 %793
      %795 = vrot.lane.b32.xlu0 %v709, 24
      %v796 = vpop.permute.xlu0 %795
      %797 = vrot.lane.b32.xlu0 %v711, 24
      %v798 = vpop.permute.xlu0 %797
      %799 = vrot.lane.b32.xlu0 %v713, 24
      %v800 = vpop.permute.xlu0 %799
      %801 = vrot.lane.b32.xlu0 %v715, 24
      %v802 = vpop.permute.xlu0 %801
      %803 = vrot.lane.b32.xlu0 %v717, 24
      %v804 = vpop.permute.xlu0 %803
      %805 = vrot.lane.b32.xlu0 %v770, 24
      %v806 = vpop.permute.xlu0 %805
      %807 = vrot.lane.b32.xlu0 %v772, 24
      %v808 = vpop.permute.xlu0 %807
      %v810 = vunpack.c.l.b16 %v393
      %v811 = vpack.c.b16 %v810, %v810
      %vm812 = vsmask.f32 6400
      %v814 = vshrl.u32 %v764, 16
      %v816 = vrot.slane %v814, 1
      %v817 = vshll.u32 %v764, 16
      %v819 = vrot.slane %v817, 2
      %v820 = vor.u32 %v816, %v819
      %v821 = vrot.slane %v515, 1
      %v822 = vrot.slane %v511, 2
      %v823 = vor.u32 %v821, %v822
      %v824 = vsel %vm812, %v820, %v823
      %v825 = vrot.slane %v523, 1
      %v826 = vrot.slane %v519, 2
      %v827 = vor.u32 %v825, %v826
      %v828 = vsel %vm812, %v823, %v827
      %v829 = vrot.slane %v531, 1
      %v830 = vrot.slane %v527, 2
      %v831 = vor.u32 %v829, %v830
      %v832 = vsel %vm812, %v827, %v831
      %v833 = vrot.slane %v539, 1
      %v834 = vrot.slane %v535, 2
      %v835 = vor.u32 %v833, %v834
      %v836 = vsel %vm812, %v831, %v835
      %v837 = vrot.slane %v547, 1
      %v838 = vrot.slane %v543, 2
      %v839 = vor.u32 %v837, %v838
      %v840 = vsel %vm812, %v835, %v839
      %v841 = vrot.slane %v555, 1
      %v842 = vrot.slane %v551, 2
      %v843 = vor.u32 %v841, %v842
      %v844 = vsel %vm812, %v839, %v843
      %v845 = vrot.slane %v563, 1
      %v846 = vrot.slane %v559, 2
      %v847 = vor.u32 %v845, %v846
      %v848 = vsel %vm812, %v843, %v847
      %v849 = vrot.slane %v571, 1
      %v850 = vrot.slane %v567, 2
      %v851 = vor.u32 %v849, %v850
      %v852 = vsel %vm812, %v847, %v851
      %v853 = vrot.slane %v579, 1
      %v854 = vrot.slane %v575, 2
      %v855 = vor.u32 %v853, %v854
      %v856 = vsel %vm812, %v851, %v855
      %v857 = vrot.slane %v587, 1
      %v858 = vrot.slane %v583, 2
      %v859 = vor.u32 %v857, %v858
      %v860 = vsel %vm812, %v855, %v859
      %v861 = vrot.slane %v595, 1
      %v862 = vrot.slane %v591, 2
      %v863 = vor.u32 %v861, %v862
      %v864 = vsel %vm812, %v859, %v863
      %v865 = vrot.slane %v603, 1
      %v866 = vrot.slane %v599, 2
      %v867 = vor.u32 %v865, %v866
      %v868 = vsel %vm812, %v863, %v867
      %v869 = vrot.slane %v611, 1
      %v870 = vrot.slane %v607, 2
      %v871 = vor.u32 %v869, %v870
      %v872 = vsel %vm812, %v867, %v871
      %v873 = vrot.slane %v619, 1
      %v874 = vrot.slane %v615, 2
      %v875 = vor.u32 %v873, %v874
      %v876 = vsel %vm812, %v871, %v875
      %v877 = vrot.slane %v627, 1
      %v878 = vrot.slane %v623, 2
      %v879 = vor.u32 %v877, %v878
      %v880 = vsel %vm812, %v875, %v879
      %v881 = vrot.slane %v635, 1
      %v882 = vrot.slane %v631, 2
      %v883 = vor.u32 %v881, %v882
      %v884 = vsel %vm812, %v879, %v883
      %v886 = vshrl.u32 %v765, 16
      %v888 = vrot.slane %v886, 1
      %v889 = vshll.u32 %v765, 16
      %v891 = vrot.slane %v889, 2
      %v892 = vor.u32 %v888, %v891
      %v893 = vsel %vm812, %v883, %v892
      %v895 = vshrl.u32 %v811, 16
      %v897 = vrot.slane %v895, 1
      %v898 = vshll.u32 %v811, 16
      %v900 = vrot.slane %v898, 2
      %v901 = vor.u32 %v897, %v900
      %v902 = vsel %vm812, %v892, %v901
      %903 = vrot.lane.b32.xlu0 %v824, 32
      %v904 = vpop.permute.xlu0 %903
      %905 = vrot.lane.b32.xlu0 %v828, 32
      %v906 = vpop.permute.xlu0 %905
      %907 = vrot.lane.b32.xlu0 %v832, 32
      %v908 = vpop.permute.xlu0 %907
      %909 = vrot.lane.b32.xlu0 %v836, 32
      %v910 = vpop.permute.xlu0 %909
      %911 = vrot.lane.b32.xlu0 %v840, 32
      %v912 = vpop.permute.xlu0 %911
      %913 = vrot.lane.b32.xlu0 %v844, 32
      %v914 = vpop.permute.xlu0 %913
      %915 = vrot.lane.b32.xlu0 %v848, 32
      %v916 = vpop.permute.xlu0 %915
      %917 = vrot.lane.b32.xlu0 %v852, 32
      %v918 = vpop.permute.xlu0 %917
      %919 = vrot.lane.b32.xlu0 %v856, 32
      %v920 = vpop.permute.xlu0 %919
      %921 = vrot.lane.b32.xlu0 %v860, 32
      %v922 = vpop.permute.xlu0 %921
      %923 = vrot.lane.b32.xlu0 %v864, 32
      %v924 = vpop.permute.xlu0 %923
      %925 = vrot.lane.b32.xlu0 %v868, 32
      %v926 = vpop.permute.xlu0 %925
      %927 = vrot.lane.b32.xlu0 %v872, 32
      %v928 = vpop.permute.xlu0 %927
      %929 = vrot.lane.b32.xlu0 %v876, 32
      %v930 = vpop.permute.xlu0 %929
      %931 = vrot.lane.b32.xlu0 %v880, 32
      %v932 = vpop.permute.xlu0 %931
      %933 = vrot.lane.b32.xlu0 %v884, 32
      %v934 = vpop.permute.xlu0 %933
      %935 = vrot.lane.b32.xlu0 %v893, 32
      %v936 = vpop.permute.xlu0 %935
      %937 = vrot.lane.b32.xlu0 %v902, 32
      %v938 = vpop.permute.xlu0 %937
      %v940 = vunpack.c.l.b16 %v394
      %v941 = vpack.c.b16 %v440, %v940
      %vm942 = vcmask 1045504
      %v943 = vrot.slane %v941, 2
      %v944 = vrot.slane %v475, 2
      %v945 = vsel %vm942, %v943, %v944
      %v946 = vrot.slane %v476, 2
      %v947 = vsel %vm942, %v944, %v946
      %v948 = vrot.slane %v477, 2
      %v949 = vsel %vm942, %v946, %v948
      %v950 = vrot.slane %v478, 2
      %v951 = vsel %vm942, %v948, %v950
      %v952 = vrot.slane %v479, 2
      %v953 = vsel %vm942, %v950, %v952
      %v954 = vrot.slane %v480, 2
      %v955 = vsel %vm942, %v952, %v954
      %v956 = vrot.slane %v481, 2
      %v957 = vsel %vm942, %v954, %v956
      %v958 = vrot.slane %v482, 2
      %v959 = vsel %vm942, %v956, %v958
      %v960 = vrot.slane %v483, 2
      %v961 = vsel %vm942, %v958, %v960
      %v962 = vrot.slane %v484, 2
      %v963 = vsel %vm942, %v960, %v962
      %v964 = vrot.slane %v485, 2
      %v965 = vsel %vm942, %v962, %v964
      %v966 = vrot.slane %v486, 2
      %v967 = vsel %vm942, %v964, %v966
      %v968 = vrot.slane %v487, 2
      %v969 = vsel %vm942, %v966, %v968
      %v970 = vrot.slane %v488, 2
      %v971 = vsel %vm942, %v968, %v970
      %v972 = vrot.slane %v489, 2
      %v973 = vsel %vm942, %v970, %v972
      %v974 = vrot.slane %v490, 2
      %v975 = vsel %vm942, %v972, %v974
      %v976 = vrot.slane %v765, 2
      %v977 = vsel %vm942, %v974, %v976
      %v978 = vrot.slane %v811, 2
      %v979 = vsel %vm942, %v976, %v978
      %980 = vrot.lane.b32.xlu0 %v945, 40
      %v981 = vpop.permute.xlu0 %980
      %982 = vrot.lane.b32.xlu0 %v947, 40
      %v983 = vpop.permute.xlu0 %982
      %984 = vrot.lane.b32.xlu0 %v949, 40
      %v985 = vpop.permute.xlu0 %984
      %986 = vrot.lane.b32.xlu0 %v951, 40
      %v987 = vpop.permute.xlu0 %986
      %988 = vrot.lane.b32.xlu0 %v953, 40
      %v989 = vpop.permute.xlu0 %988
      %990 = vrot.lane.b32.xlu0 %v955, 40
      %v991 = vpop.permute.xlu0 %990
      %992 = vrot.lane.b32.xlu0 %v957, 40
      %v993 = vpop.permute.xlu0 %992
      %994 = vrot.lane.b32.xlu0 %v959, 40
      %v995 = vpop.permute.xlu0 %994
      %996 = vrot.lane.b32.xlu0 %v961, 40
      %v997 = vpop.permute.xlu0 %996
      %998 = vrot.lane.b32.xlu0 %v963, 40
      %v999 = vpop.permute.xlu0 %998
      %1000 = vrot.lane.b32.xlu0 %v965, 40
      %v1001 = vpop.permute.xlu0 %1000
      %1002 = vrot.lane.b32.xlu0 %v967, 40
      %v1003 = vpop.permute.xlu0 %1002
      %1004 = vrot.lane.b32.xlu0 %v969, 40
      %v1005 = vpop.permute.xlu0 %1004
      %1006 = vrot.lane.b32.xlu0 %v971, 40
      %v1007 = vpop.permute.xlu0 %1006
      %1008 = vrot.lane.b32.xlu0 %v973, 40
      %v1009 = vpop.permute.xlu0 %1008
      %1010 = vrot.lane.b32.xlu0 %v975, 40
      %v1011 = vpop.permute.xlu0 %1010
      %1012 = vrot.lane.b32.xlu0 %v977, 40
      %v1013 = vpop.permute.xlu0 %1012
      %1014 = vrot.lane.b32.xlu0 %v979, 40
      %v1015 = vpop.permute.xlu0 %1014
      %v1020 = vunpack.c.l.b16 %v395
      %v1021 = vunpack.c.l.b16 %v396
      %v1022 = vunpack.c.l.b16 %v397
      %v1023 = vunpack.c.l.b16 %v398
      %v1024 = vpack.c.b16 %v442, %v1020
      %v1025 = vpack.c.b16 %v1022, %v1021
      %v1026 = vpack.c.b16 %v1023, %v1023
      %v1027 = vrot.slane %v1024, 2
      %v1028 = vsel %vm942, %v1027, %v946
      %v1029 = vrot.slane %v1025, 2
      %v1030 = vsel %vm942, %v976, %v1029
      %v1031 = vrot.slane %v1026, 2
      %v1032 = vsel %vm942, %v1029, %v1031
      %1033 = vrot.lane.b32.xlu0 %v1028, 48
      %v1034 = vpop.permute.xlu0 %1033
      %1035 = vrot.lane.b32.xlu0 %v949, 48
      %v1036 = vpop.permute.xlu0 %1035
      %1037 = vrot.lane.b32.xlu0 %v951, 48
      %v1038 = vpop.permute.xlu0 %1037
      %1039 = vrot.lane.b32.xlu0 %v953, 48
      %v1040 = vpop.permute.xlu0 %1039
      %1041 = vrot.lane.b32.xlu0 %v955, 48
      %v1042 = vpop.permute.xlu0 %1041
      %1043 = vrot.lane.b32.xlu0 %v957, 48
      %v1044 = vpop.permute.xlu0 %1043
      %1045 = vrot.lane.b32.xlu0 %v959, 48
      %v1046 = vpop.permute.xlu0 %1045
      %1047 = vrot.lane.b32.xlu0 %v961, 48
      %v1048 = vpop.permute.xlu0 %1047
      %1049 = vrot.lane.b32.xlu0 %v963, 48
      %v1050 = vpop.permute.xlu0 %1049
      %1051 = vrot.lane.b32.xlu0 %v965, 48
      %v1052 = vpop.permute.xlu0 %1051
      %1053 = vrot.lane.b32.xlu0 %v967, 48
      %v1054 = vpop.permute.xlu0 %1053
      %1055 = vrot.lane.b32.xlu0 %v969, 48
      %v1056 = vpop.permute.xlu0 %1055
      %1057 = vrot.lane.b32.xlu0 %v971, 48
      %v1058 = vpop.permute.xlu0 %1057
      %1059 = vrot.lane.b32.xlu0 %v973, 48
      %v1060 = vpop.permute.xlu0 %1059
      %1061 = vrot.lane.b32.xlu0 %v975, 48
      %v1062 = vpop.permute.xlu0 %1061
      %1063 = vrot.lane.b32.xlu0 %v977, 48
      %v1064 = vpop.permute.xlu0 %1063
      %1065 = vrot.lane.b32.xlu0 %v1030, 48
      %v1066 = vpop.permute.xlu0 %1065
      %1067 = vrot.lane.b32.xlu0 %v1032, 48
      %v1068 = vpop.permute.xlu0 %1067
      %v1070 = vunpack.c.l.b16 %v399
      %v1071 = vpack.c.b16 %v1070, %v1070
      %vm1072 = vsmask.f32 5376
      %v1074 = vshrl.u32 %v1024, 16
      %v1076 = vrot.slane %v1074, 2
      %v1077 = vshll.u32 %v1024, 16
      %v1079 = vrot.slane %v1077, 3
      %v1080 = vor.u32 %v1076, %v1079
      %v1081 = vrot.slane %v523, 2
      %v1082 = vrot.slane %v519, 3
      %v1083 = vor.u32 %v1081, %v1082
      %v1084 = vsel %vm1072, %v1080, %v1083
      %v1085 = vrot.slane %v531, 2
      %v1086 = vrot.slane %v527, 3
      %v1087 = vor.u32 %v1085, %v1086
      %v1088 = vsel %vm1072, %v1083, %v1087
      %v1089 = vrot.slane %v539, 2
      %v1090 = vrot.slane %v535, 3
      %v1091 = vor.u32 %v1089, %v1090
      %v1092 = vsel %vm1072, %v1087, %v1091
      %v1093 = vrot.slane %v547, 2
      %v1094 = vrot.slane %v543, 3
      %v1095 = vor.u32 %v1093, %v1094
      %v1096 = vsel %vm1072, %v1091, %v1095
      %v1097 = vrot.slane %v555, 2
      %v1098 = vrot.slane %v551, 3
      %v1099 = vor.u32 %v1097, %v1098
      %v1100 = vsel %vm1072, %v1095, %v1099
      %v1101 = vrot.slane %v563, 2
      %v1102 = vrot.slane %v559, 3
      %v1103 = vor.u32 %v1101, %v1102
      %v1104 = vsel %vm1072, %v1099, %v1103
      %v1105 = vrot.slane %v571, 2
      %v1106 = vrot.slane %v567, 3
      %v1107 = vor.u32 %v1105, %v1106
      %v1108 = vsel %vm1072, %v1103, %v1107
      %v1109 = vrot.slane %v579, 2
      %v1110 = vrot.slane %v575, 3
      %v1111 = vor.u32 %v1109, %v1110
      %v1112 = vsel %vm1072, %v1107, %v1111
      %v1113 = vrot.slane %v587, 2
      %v1114 = vrot.slane %v583, 3
      %v1115 = vor.u32 %v1113, %v1114
      %v1116 = vsel %vm1072, %v1111, %v1115
      %v1117 = vrot.slane %v595, 2
      %v1118 = vrot.slane %v591, 3
      %v1119 = vor.u32 %v1117, %v1118
      %v1120 = vsel %vm1072, %v1115, %v1119
      %v1121 = vrot.slane %v603, 2
      %v1122 = vrot.slane %v599, 3
      %v1123 = vor.u32 %v1121, %v1122
      %v1124 = vsel %vm1072, %v1119, %v1123
      %v1125 = vrot.slane %v611, 2
      %v1126 = vrot.slane %v607, 3
      %v1127 = vor.u32 %v1125, %v1126
      %v1128 = vsel %vm1072, %v1123, %v1127
      %v1129 = vrot.slane %v619, 2
      %v1130 = vrot.slane %v615, 3
      %v1131 = vor.u32 %v1129, %v1130
      %v1132 = vsel %vm1072, %v1127, %v1131
      %v1133 = vrot.slane %v627, 2
      %v1134 = vrot.slane %v623, 3
      %v1135 = vor.u32 %v1133, %v1134
      %v1136 = vsel %vm1072, %v1131, %v1135
      %v1137 = vrot.slane %v635, 2
      %v1138 = vrot.slane %v631, 3
      %v1139 = vor.u32 %v1137, %v1138
      %v1140 = vsel %vm1072, %v1135, %v1139
      %v1141 = vrot.slane %v886, 2
      %v1142 = vrot.slane %v889, 3
      %v1143 = vor.u32 %v1141, %v1142
      %v1144 = vsel %vm1072, %v1139, %v1143
      %v1146 = vshrl.u32 %v1025, 16
      %v1148 = vrot.slane %v1146, 2
      %v1149 = vshll.u32 %v1025, 16
      %v1151 = vrot.slane %v1149, 3
      %v1152 = vor.u32 %v1148, %v1151
      %v1153 = vsel %vm1072, %v1143, %v1152
      %v1155 = vshrl.u32 %v1071, 16
      %v1157 = vrot.slane %v1155, 2
      %v1158 = vshll.u32 %v1071, 16
      %v1160 = vrot.slane %v1158, 3
      %v1161 = vor.u32 %v1157, %v1160
      %v1162 = vsel %vm1072, %v1152, %v1161
      %1163 = vrot.lane.b32.xlu0 %v1084, 56
      %v1164 = vpop.permute.xlu0 %1163
      %1165 = vrot.lane.b32.xlu0 %v1088, 56
      %v1166 = vpop.permute.xlu0 %1165
      %1167 = vrot.lane.b32.xlu0 %v1092, 56
      %v1168 = vpop.permute.xlu0 %1167
      %1169 = vrot.lane.b32.xlu0 %v1096, 56
      %v1170 = vpop.permute.xlu0 %1169
      %1171 = vrot.lane.b32.xlu0 %v1100, 56
      %v1172 = vpop.permute.xlu0 %1171
      %1173 = vrot.lane.b32.xlu0 %v1104, 56
      %v1174 = vpop.permute.xlu0 %1173
      %1175 = vrot.lane.b32.xlu0 %v1108, 56
      %v1176 = vpop.permute.xlu0 %1175
      %1177 = vrot.lane.b32.xlu0 %v1112, 56
      %v1178 = vpop.permute.xlu0 %1177
      %1179 = vrot.lane.b32.xlu0 %v1116, 56
      %v1180 = vpop.permute.xlu0 %1179
      %1181 = vrot.lane.b32.xlu0 %v1120, 56
      %v1182 = vpop.permute.xlu0 %1181
      %1183 = vrot.lane.b32.xlu0 %v1124, 56
      %v1184 = vpop.permute.xlu0 %1183
      %1185 = vrot.lane.b32.xlu0 %v1128, 56
      %v1186 = vpop.permute.xlu0 %1185
      %1187 = vrot.lane.b32.xlu0 %v1132, 56
      %v1188 = vpop.permute.xlu0 %1187
      %1189 = vrot.lane.b32.xlu0 %v1136, 56
      %v1190 = vpop.permute.xlu0 %1189
      %1191 = vrot.lane.b32.xlu0 %v1140, 56
      %v1192 = vpop.permute.xlu0 %1191
      %1193 = vrot.lane.b32.xlu0 %v1144, 56
      %v1194 = vpop.permute.xlu0 %1193
      %1195 = vrot.lane.b32.xlu0 %v1153, 56
      %v1196 = vpop.permute.xlu0 %1195
      %1197 = vrot.lane.b32.xlu0 %v1162, 56
      %v1198 = vpop.permute.xlu0 %1197
      %v1200 = vunpack.c.l.b16 %v400
      %v1201 = vpack.c.b16 %v442, %v1200
      %vm1202 = vcmask 1044480
      %v1203 = vrot.slane %v1201, 3
      %v1204 = vrot.slane %v476, 3
      %v1205 = vsel %vm1202, %v1203, %v1204
      %v1206 = vrot.slane %v477, 3
      %v1207 = vsel %vm1202, %v1204, %v1206
      %v1208 = vrot.slane %v478, 3
      %v1209 = vsel %vm1202, %v1206, %v1208
      %v1210 = vrot.slane %v479, 3
      %v1211 = vsel %vm1202, %v1208, %v1210
      %v1212 = vrot.slane %v480, 3
      %v1213 = vsel %vm1202, %v1210, %v1212
      %v1214 = vrot.slane %v481, 3
      %v1215 = vsel %vm1202, %v1212, %v1214
      %v1216 = vrot.slane %v482, 3
      %v1217 = vsel %vm1202, %v1214, %v1216
      %v1218 = vrot.slane %v483, 3
      %v1219 = vsel %vm1202, %v1216, %v1218
      %v1220 = vrot.slane %v484, 3
      %v1221 = vsel %vm1202, %v1218, %v1220
      %v1222 = vrot.slane %v485, 3
      %v1223 = vsel %vm1202, %v1220, %v1222
      %v1224 = vrot.slane %v486, 3
      %v1225 = vsel %vm1202, %v1222, %v1224
      %v1226 = vrot.slane %v487, 3
      %v1227 = vsel %vm1202, %v1224, %v1226
      %v1228 = vrot.slane %v488, 3
      %v1229 = vsel %vm1202, %v1226, %v1228
      %v1230 = vrot.slane %v489, 3
      %v1231 = vsel %vm1202, %v1228, %v1230
      %v1232 = vrot.slane %v490, 3
      %v1233 = vsel %vm1202, %v1230, %v1232
      %v1234 = vrot.slane %v765, 3
      %v1235 = vsel %vm1202, %v1232, %v1234
      %v1236 = vrot.slane %v1025, 3
      %v1237 = vsel %vm1202, %v1234, %v1236
      %v1238 = vrot.slane %v1071, 3
      %v1239 = vsel %vm1202, %v1236, %v1238
      %1240 = vrot.lane.b32.xlu0 %v1205, 64
      %v1241 = vpop.permute.xlu0 %1240
      %1242 = vrot.lane.b32.xlu0 %v1207, 64
      %v1243 = vpop.permute.xlu0 %1242
      %1244 = vrot.lane.b32.xlu0 %v1209, 64
      %v1245 = vpop.permute.xlu0 %1244
      %1246 = vrot.lane.b32.xlu0 %v1211, 64
      %v1247 = vpop.permute.xlu0 %1246
      %1248 = vrot.lane.b32.xlu0 %v1213, 64
      %v1249 = vpop.permute.xlu0 %1248
      %1250 = vrot.lane.b32.xlu0 %v1215, 64
      %v1251 = vpop.permute.xlu0 %1250
      %1252 = vrot.lane.b32.xlu0 %v1217, 64
      %v1253 = vpop.permute.xlu0 %1252
      %1254 = vrot.lane.b32.xlu0 %v1219, 64
      %v1255 = vpop.permute.xlu0 %1254
      %1256 = vrot.lane.b32.xlu0 %v1221, 64
      %v1257 = vpop.permute.xlu0 %1256
      %1258 = vrot.lane.b32.xlu0 %v1223, 64
      %v1259 = vpop.permute.xlu0 %1258
      %1260 = vrot.lane.b32.xlu0 %v1225, 64
      %v1261 = vpop.permute.xlu0 %1260
      %1262 = vrot.lane.b32.xlu0 %v1227, 64
      %v1263 = vpop.permute.xlu0 %1262
      %1264 = vrot.lane.b32.xlu0 %v1229, 64
      %v1265 = vpop.permute.xlu0 %1264
      %1266 = vrot.lane.b32.xlu0 %v1231, 64
      %v1267 = vpop.permute.xlu0 %1266
      %1268 = vrot.lane.b32.xlu0 %v1233, 64
      %v1269 = vpop.permute.xlu0 %1268
      %1270 = vrot.lane.b32.xlu0 %v1235, 64
      %v1271 = vpop.permute.xlu0 %1270
      %1272 = vrot.lane.b32.xlu0 %v1237, 64
      %v1273 = vpop.permute.xlu0 %1272
      %1274 = vrot.lane.b32.xlu0 %v1239, 64
      %v1275 = vpop.permute.xlu0 %1274
      %vm1276 = vcmask 64512
      %v1278 = vsel %vm1276, %v473, %v644
      %v1280 = vsel %vm1276, %v474, %v646
      %v1282 = vsel %vm1276, %v475, %v648
      %v1284 = vsel %vm1276, %v476, %v650
      %v1286 = vsel %vm1276, %v477, %v652
      %v1288 = vsel %vm1276, %v478, %v654
      %v1290 = vsel %vm1276, %v479, %v656
      %v1292 = vsel %vm1276, %v480, %v658
      %v1294 = vsel %vm1276, %v481, %v660
      %v1296 = vsel %vm1276, %v482, %v662
      %v1298 = vsel %vm1276, %v483, %v664
      %v1300 = vsel %vm1276, %v484, %v666
      %v1302 = vsel %vm1276, %v485, %v668
      %v1304 = vsel %vm1276, %v486, %v670
      %v1306 = vsel %vm1276, %v487, %v672
      %v1308 = vsel %vm1276, %v488, %v674
      %v1310 = vsel %vm1276, %v489, %v676
      %v1312 = vsel %vm1276, %v490, %v678
      %vm1313 = vcmask 130048
      %v1315 = vsel %vm1313, %v1278, %v721
      %v1317 = vsel %vm1313, %v1280, %v723
      %v1319 = vsel %vm1313, %v1282, %v725
      %v1321 = vsel %vm1313, %v1284, %v727
      %v1323 = vsel %vm1313, %v1286, %v729
      %v1325 = vsel %vm1313, %v1288, %v731
      %v1327 = vsel %vm1313, %v1290, %v733
      %v1329 = vsel %vm1313, %v1292, %v735
      %v1331 = vsel %vm1313, %v1294, %v737
      %v1333 = vsel %vm1313, %v1296, %v739
      %v1335 = vsel %vm1313, %v1298, %v741
      %v1337 = vsel %vm1313, %v1300, %v743
      %v1339 = vsel %vm1313, %v1302, %v745
      %v1341 = vsel %vm1313, %v1304, %v747
      %v1343 = vsel %vm1313, %v1306, %v749
      %v1345 = vsel %vm1313, %v1308, %v751
      %v1347 = vsel %vm1313, %v1310, %v753
      %v1349 = vsel %vm1313, %v1312, %v755
      %vm1350 = vcmask 195584
      %v1352 = vsel %vm1350, %v1315, %v774
      %v1354 = vsel %vm1350, %v1317, %v776
      %v1356 = vsel %vm1350, %v1319, %v778
      %v1358 = vsel %vm1350, %v1321, %v780
      %v1360 = vsel %vm1350, %v1323, %v782
      %v1362 = vsel %vm1350, %v1325, %v784
      %v1364 = vsel %vm1350, %v1327, %v786
      %v1366 = vsel %vm1350, %v1329, %v788
      %v1368 = vsel %vm1350, %v1331, %v790
      %v1370 = vsel %vm1350, %v1333, %v792
      %v1372 = vsel %vm1350, %v1335, %v794
      %v1374 = vsel %vm1350, %v1337, %v796
      %v1376 = vsel %vm1350, %v1339, %v798
      %v1378 = vsel %vm1350, %v1341, %v800
      %v1380 = vsel %vm1350, %v1343, %v802
      %v1382 = vsel %vm1350, %v1345, %v804
      %v1384 = vsel %vm1350, %v1347, %v806
      %v1386 = vsel %vm1350, %v1349, %v808
      %vm1387 = vcmask 261120
      %v1389 = vsel %vm1387, %v1352, %v904
      %v1391 = vsel %vm1387, %v1354, %v906
      %v1393 = vsel %vm1387, %v1356, %v908
      %v1395 = vsel %vm1387, %v1358, %v910
      %v1397 = vsel %vm1387, %v1360, %v912
      %v1399 = vsel %vm1387, %v1362, %v914
      %v1401 = vsel %vm1387, %v1364, %v916
      %v1403 = vsel %vm1387, %v1366, %v918
      %v1405 = vsel %vm1387, %v1368, %v920
      %v1407 = vsel %vm1387, %v1370, %v922
      %v1409 = vsel %vm1387, %v1372, %v924
      %v1411 = vsel %vm1387, %v1374, %v926
      %v1413 = vsel %vm1387, %v1376, %v928
      %v1415 = vsel %vm1387, %v1378, %v930
      %v1417 = vsel %vm1387, %v1380, %v932
      %v1419 = vsel %vm1387, %v1382, %v934
      %v1421 = vsel %vm1387, %v1384, %v936
      %v1423 = vsel %vm1387, %v1386, %v938
      %vm1424 = vcmask 326656
      %v1426 = vsel %vm1424, %v1389, %v981
      %v1428 = vsel %vm1424, %v1391, %v983
      %v1430 = vsel %vm1424, %v1393, %v985
      %v1432 = vsel %vm1424, %v1395, %v987
      %v1434 = vsel %vm1424, %v1397, %v989
      %v1436 = vsel %vm1424, %v1399, %v991
      %v1438 = vsel %vm1424, %v1401, %v993
      %v1440 = vsel %vm1424, %v1403, %v995
      %v1442 = vsel %vm1424, %v1405, %v997
      %v1444 = vsel %vm1424, %v1407, %v999
      %v1446 = vsel %vm1424, %v1409, %v1001
      %v1448 = vsel %vm1424, %v1411, %v1003
      %v1450 = vsel %vm1424, %v1413, %v1005
      %v1452 = vsel %vm1424, %v1415, %v1007
      %v1454 = vsel %vm1424, %v1417, %v1009
      %v1456 = vsel %vm1424, %v1419, %v1011
      %v1458 = vsel %vm1424, %v1421, %v1013
      %v1460 = vsel %vm1424, %v1423, %v1015
      %vm1461 = vcmask 392192
      %v1463 = vsel %vm1461, %v1426, %v1034
      %v1465 = vsel %vm1461, %v1428, %v1036
      %v1467 = vsel %vm1461, %v1430, %v1038
      %v1469 = vsel %vm1461, %v1432, %v1040
      %v1471 = vsel %vm1461, %v1434, %v1042
      %v1473 = vsel %vm1461, %v1436, %v1044
      %v1475 = vsel %vm1461, %v1438, %v1046
      %v1477 = vsel %vm1461, %v1440, %v1048
      %v1479 = vsel %vm1461, %v1442, %v1050
      %v1481 = vsel %vm1461, %v1444, %v1052
      %v1483 = vsel %vm1461, %v1446, %v1054
      %v1485 = vsel %vm1461, %v1448, %v1056
      %v1487 = vsel %vm1461, %v1450, %v1058
      %v1489 = vsel %vm1461, %v1452, %v1060
      %v1491 = vsel %vm1461, %v1454, %v1062
      %v1493 = vsel %vm1461, %v1456, %v1064
      %v1495 = vsel %vm1461, %v1458, %v1066
      %v1497 = vsel %vm1461, %v1460, %v1068
      %vm1498 = vcmask 457728
      %v1500 = vsel %vm1498, %v1463, %v1164
      %v1502 = vsel %vm1498, %v1465, %v1166
      %v1504 = vsel %vm1498, %v1467, %v1168
      %v1506 = vsel %vm1498, %v1469, %v1170
      %v1508 = vsel %vm1498, %v1471, %v1172
      %v1510 = vsel %vm1498, %v1473, %v1174
      %v1512 = vsel %vm1498, %v1475, %v1176
      %v1514 = vsel %vm1498, %v1477, %v1178
      %v1516 = vsel %vm1498, %v1479, %v1180
      %v1518 = vsel %vm1498, %v1481, %v1182
      %v1520 = vsel %vm1498, %v1483, %v1184
      %v1522 = vsel %vm1498, %v1485, %v1186
      %v1524 = vsel %vm1498, %v1487, %v1188
      %v1526 = vsel %vm1498, %v1489, %v1190
      %v1528 = vsel %vm1498, %v1491, %v1192
      %v1530 = vsel %vm1498, %v1493, %v1194
      %v1532 = vsel %vm1498, %v1495, %v1196
      %v1534 = vsel %vm1498, %v1497, %v1198
      %vm1535 = vcmask 523264
      %v1537 = vsel %vm1535, %v1500, %v1241
      %v1539 = vsel %vm1535, %v1502, %v1243
      %v1541 = vsel %vm1535, %v1504, %v1245
      %v1543 = vsel %vm1535, %v1506, %v1247
      %v1545 = vsel %vm1535, %v1508, %v1249
      %v1547 = vsel %vm1535, %v1510, %v1251
      %v1549 = vsel %vm1535, %v1512, %v1253
      %v1551 = vsel %vm1535, %v1514, %v1255
      %v1553 = vsel %vm1535, %v1516, %v1257
      %v1555 = vsel %vm1535, %v1518, %v1259
      %v1557 = vsel %vm1535, %v1520, %v1261
      %v1559 = vsel %vm1535, %v1522, %v1263
      %v1561 = vsel %vm1535, %v1524, %v1265
      %v1563 = vsel %vm1535, %v1526, %v1267
      %v1565 = vsel %vm1535, %v1528, %v1269
      %v1567 = vsel %vm1535, %v1530, %v1271
      %v1569 = vsel %vm1535, %v1532, %v1273
      %v1571 = vsel %vm1535, %v1534, %v1275
      %v1572 = vld [vmem:[%s315] sm:$0xf]
      %v1573 = vld [vmem:[%s315 + $0x4] sm:$0xf]
      %v1574 = vld [vmem:[%s315 + $0x8] sm:$0xf]
      %v1575 = vld [vmem:[%s315 + $0xc] sm:$0xf]
      %v1576 = vld [vmem:[%s315 + $0x10] sm:$0xf]
      %v1577 = vld [vmem:[%s315 + $0x14] sm:$0xf]
      %v1578 = vld [vmem:[%s315 + $0x18] sm:$0xf]
      %v1579 = vld [vmem:[%s315 + $0x1c] sm:$0xf]
      %v1580 = vld [vmem:[%s315 + $0x20] sm:$0xf]
      %v1590 = vunpack.c.l.b16 %v1572
      %v1591 = vunpack.c.l.b16 %v1573
      %v1592 = vunpack.c.l.b16 %v1574
      %v1593 = vunpack.c.l.b16 %v1575
      %v1594 = vunpack.c.l.b16 %v1576
      %v1595 = vunpack.c.l.b16 %v1577
      %v1596 = vunpack.c.l.b16 %v1578
      %v1597 = vunpack.c.l.b16 %v1579
      %v1598 = vunpack.c.l.b16 %v1580
      %v1599 = vpack.c.b16 %v1591, %v1590
      %v1600 = vpack.c.b16 %v1593, %v1592
      %v1601 = vpack.c.b16 %v1595, %v1594
      %v1602 = vpack.c.b16 %v1597, %v1596
      %v1603 = vpack.c.b16 %v1598, %v1598
      %vm1608 = vcmask 588800
      %v1609 = vsel %vm1608, %v1537, 0
      %v1611 = vsel %vm1608, %v1539, 0
      %v1613 = vsel %vm1608, %v1541, 0
      %v1615 = vsel %vm1608, %v1543, 0
      %v1617 = vsel %vm1608, %v1545, 0
      %v1619 = vsel %vm1608, %v1547, 0
      %v1621 = vsel %vm1608, %v1549, 0
      %v1623 = vsel %vm1608, %v1551, 0
      %v1625 = vsel %vm1608, %v1553, 0
      %v1627 = vsel %vm1608, %v1555, 0
      %v1629 = vsel %vm1608, %v1557, 0
      %v1631 = vsel %vm1608, %v1559, 0
      %v1633 = vsel %vm1608, %v1561, 0
      %v1635 = vsel %vm1608, %v1563, 0
      %v1637 = vsel %vm1608, %v1565, 0
      %v1639 = vsel %vm1608, %v1567, 0
      %v1641 = vsel %vm1608, %v1569, 0
      %v1643 = vsel %vm1608, %v1571, 0
      %vm1645 = vcmask 1043456
      %v1647 = vsel %vm1645, %v1603, 0
      %1649 = vmatpush.bf16.msra.mxu0 0
      %1650 = vmatpush.bf16.msra.mxu0 0
      %1651 = vmatpush.bf16.msra.mxu0 0
      %1652 = vmatpush.bf16.msra.mxu0 %v1647
      %1653 = vmatpush.bf16.msra.mxu0 %v1602
      %1654 = vmatpush.bf16.msra.mxu0 %v1601
      %1655 = vmatpush.bf16.msra.mxu0 %v1600
      %1656 = vmatpush.bf16.msra.mxu0 %v1599
      %1657 = vmatmul.bf16.gmra.mxu0 %v1609
      %v1658 = vpop.f32.mrf.mxu0
      %v1659 = vadd.f32 0.0, %v1658
      %v1660 = vpop.f32.mrf.mxu0
      %v1661 = vadd.f32 0.0, %v1660
      %1662 = vmatmul.bf16.gmra.mxu0 %v1611
      %v1663 = vpop.f32.mrf.mxu0
      %v1664 = vadd.f32 0.0, %v1663
      %v1665 = vpop.f32.mrf.mxu0
      %v1666 = vadd.f32 0.0, %v1665
      %1667 = vmatmul.bf16.gmra.mxu0 %v1613
      %v1668 = vpop.f32.mrf.mxu0
      %v1669 = vadd.f32 0.0, %v1668
      %v1670 = vpop.f32.mrf.mxu0
      %v1671 = vadd.f32 0.0, %v1670
      %1672 = vmatmul.bf16.gmra.mxu0 %v1615
      %v1673 = vpop.f32.mrf.mxu0
      %v1674 = vadd.f32 0.0, %v1673
      %v1675 = vpop.f32.mrf.mxu0
      %v1676 = vadd.f32 0.0, %v1675
      %1677 = vmatmul.bf16.gmra.mxu0 %v1617
      %v1678 = vpop.f32.mrf.mxu0
      %v1679 = vadd.f32 0.0, %v1678
      %v1680 = vpop.f32.mrf.mxu0
      %v1681 = vadd.f32 0.0, %v1680
      %1682 = vmatmul.bf16.gmra.mxu0 %v1619
      %v1683 = vpop.f32.mrf.mxu0
      %v1684 = vadd.f32 0.0, %v1683
      %v1685 = vpop.f32.mrf.mxu0
      %v1686 = vadd.f32 0.0, %v1685
      %1687 = vmatmul.bf16.gmra.mxu0 %v1621
      %v1688 = vpop.f32.mrf.mxu0
      %v1689 = vadd.f32 0.0, %v1688
      %v1690 = vpop.f32.mrf.mxu0
      %v1691 = vadd.f32 0.0, %v1690
      %1692 = vmatmul.bf16.gmra.mxu0 %v1623
      %v1693 = vpop.f32.mrf.mxu0
      %v1694 = vadd.f32 0.0, %v1693
      %v1695 = vpop.f32.mrf.mxu0
      %v1696 = vadd.f32 0.0, %v1695
      %1697 = vmatmul.bf16.gmra.mxu0 %v1625
      %v1698 = vpop.f32.mrf.mxu0
      %v1699 = vadd.f32 0.0, %v1698
      %v1700 = vpop.f32.mrf.mxu0
      %v1701 = vadd.f32 0.0, %v1700
      %1702 = vmatmul.bf16.gmra.mxu0 %v1627
      %v1703 = vpop.f32.mrf.mxu0
      %v1704 = vadd.f32 0.0, %v1703
      %v1705 = vpop.f32.mrf.mxu0
      %v1706 = vadd.f32 0.0, %v1705
      %1707 = vmatmul.bf16.gmra.mxu0 %v1629
      %v1708 = vpop.f32.mrf.mxu0
      %v1709 = vadd.f32 0.0, %v1708
      %v1710 = vpop.f32.mrf.mxu0
      %v1711 = vadd.f32 0.0, %v1710
      %1712 = vmatmul.bf16.gmra.mxu0 %v1631
      %v1713 = vpop.f32.mrf.mxu0
      %v1714 = vadd.f32 0.0, %v1713
      %v1715 = vpop.f32.mrf.mxu0
      %v1716 = vadd.f32 0.0, %v1715
      %1717 = vmatmul.bf16.gmra.mxu0 %v1633
      %v1718 = vpop.f32.mrf.mxu0
      %v1719 = vadd.f32 0.0, %v1718
      %v1720 = vpop.f32.mrf.mxu0
      %v1721 = vadd.f32 0.0, %v1720
      %1722 = vmatmul.bf16.gmra.mxu0 %v1635
      %v1723 = vpop.f32.mrf.mxu0
      %v1724 = vadd.f32 0.0, %v1723
      %v1725 = vpop.f32.mrf.mxu0
      %v1726 = vadd.f32 0.0, %v1725
      %1727 = vmatmul.bf16.gmra.mxu0 %v1637
      %v1728 = vpop.f32.mrf.mxu0
      %v1729 = vadd.f32 0.0, %v1728
      %v1730 = vpop.f32.mrf.mxu0
      %v1731 = vadd.f32 0.0, %v1730
      %1732 = vmatmul.bf16.gmra.mxu0 %v1639
      %v1733 = vpop.f32.mrf.mxu0
      %v1734 = vadd.f32 0.0, %v1733
      %v1735 = vpop.f32.mrf.mxu0
      %v1736 = vadd.f32 0.0, %v1735
      %1737 = vmatmul.bf16.gmra.mxu0 %v1641
      %v1738 = vpop.f32.mrf.mxu0
      %v1739 = vadd.f32 0.0, %v1738
      %v1740 = vpop.f32.mrf.mxu0
      %v1741 = vadd.f32 0.0, %v1740
      %1742 = vmatmul.bf16.gmra.mxu0 %v1643
      %v1743 = vpop.f32.mrf.mxu0
      %v1744 = vadd.f32 0.0, %v1743
      %v1745 = vpop.f32.mrf.mxu0
      %v1746 = vadd.f32 0.0, %v1745
      %1747 = vdwg.mxu0
      %v1748 = vpack.c.bf16 %v1659, %v1659
      %v1749 = vpack.c.bf16 %v1661, %v1661
      %v1750 = vpack.c.bf16 %v1664, %v1664
      %v1751 = vpack.c.bf16 %v1666, %v1666
      %v1752 = vpack.c.bf16 %v1669, %v1669
      %v1753 = vpack.c.bf16 %v1671, %v1671
      %v1754 = vpack.c.bf16 %v1674, %v1674
      %v1755 = vpack.c.bf16 %v1676, %v1676
      %v1756 = vpack.c.bf16 %v1679, %v1679
      %v1757 = vpack.c.bf16 %v1681, %v1681
      %v1758 = vpack.c.bf16 %v1684, %v1684
      %v1759 = vpack.c.bf16 %v1686, %v1686
      %v1760 = vpack.c.bf16 %v1689, %v1689
      %v1761 = vpack.c.bf16 %v1691, %v1691
      %v1762 = vpack.c.bf16 %v1694, %v1694
      %v1763 = vpack.c.bf16 %v1696, %v1696
      %v1764 = vpack.c.bf16 %v1699, %v1699
      %v1765 = vpack.c.bf16 %v1701, %v1701
      %v1766 = vpack.c.bf16 %v1704, %v1704
      %v1767 = vpack.c.bf16 %v1706, %v1706
      %v1768 = vpack.c.bf16 %v1709, %v1709
      %v1769 = vpack.c.bf16 %v1711, %v1711
      %v1770 = vpack.c.bf16 %v1714, %v1714
      %v1771 = vpack.c.bf16 %v1716, %v1716
      %v1772 = vpack.c.bf16 %v1719, %v1719
      %v1773 = vpack.c.bf16 %v1721, %v1721
      %v1774 = vpack.c.bf16 %v1724, %v1724
      %v1775 = vpack.c.bf16 %v1726, %v1726
      %v1776 = vpack.c.bf16 %v1729, %v1729
      %v1777 = vpack.c.bf16 %v1731, %v1731
      %v1778 = vpack.c.bf16 %v1734, %v1734
      %v1779 = vpack.c.bf16 %v1736, %v1736
      %v1780 = vpack.c.bf16 %v1739, %v1739
      %v1781 = vpack.c.bf16 %v1741, %v1741
      %v1782 = vpack.c.bf16 %v1744, %v1744
      %v1783 = vpack.c.bf16 %v1746, %v1746
      %1784 = vst [vmem:[%s332] sm:$0xf] %v1748
      %1785 = vst [vmem:[%s332 + $0x4] sm:$0xf] %v1749
      %1786 = vst [vmem:[%s332 + $0x8] sm:$0xf] %v1750
      %1787 = vst [vmem:[%s332 + $0xc] sm:$0xf] %v1751
      %1788 = vst [vmem:[%s332 + $0x10] sm:$0xf] %v1752
      %1789 = vst [vmem:[%s332 + $0x14] sm:$0xf] %v1753
      %1790 = vst [vmem:[%s332 + $0x18] sm:$0xf] %v1754
      %1791 = vst [vmem:[%s332 + $0x1c] sm:$0xf] %v1755
      %1792 = vst [vmem:[%s332 + $0x20] sm:$0xf] %v1756
      %1793 = vst [vmem:[%s332 + $0x24] sm:$0xf] %v1757
      %1794 = vst [vmem:[%s332 + $0x28] sm:$0xf] %v1758
      %1795 = vst [vmem:[%s332 + $0x2c] sm:$0xf] %v1759
      %1796 = vst [vmem:[%s332 + $0x30] sm:$0xf] %v1760
      %1797 = vst [vmem:[%s332 + $0x34] sm:$0xf] %v1761
      %1798 = vst [vmem:[%s332 + $0x38] sm:$0xf] %v1762
      %1799 = vst [vmem:[%s332 + $0x3c] sm:$0xf] %v1763
      %1800 = vst [vmem:[%s332 + $0x40] sm:$0xf] %v1764
      %1801 = vst [vmem:[%s332 + $0x44] sm:$0xf] %v1765
      %1802 = vst [vmem:[%s332 + $0x48] sm:$0xf] %v1766
      %1803 = vst [vmem:[%s332 + $0x4c] sm:$0xf] %v1767
      %1804 = vst [vmem:[%s332 + $0x50] sm:$0xf] %v1768
      %1805 = vst [vmem:[%s332 + $0x54] sm:$0xf] %v1769
      %1806 = vst [vmem:[%s332 + $0x58] sm:$0xf] %v1770
      %1807 = vst [vmem:[%s332 + $0x5c] sm:$0xf] %v1771
      %1808 = vst [vmem:[%s332 + $0x60] sm:$0xf] %v1772
      %1809 = vst [vmem:[%s332 + $0x64] sm:$0xf] %v1773
      %1810 = vst [vmem:[%s332 + $0x68] sm:$0xf] %v1774
      %1811 = vst [vmem:[%s332 + $0x6c] sm:$0xf] %v1775
      %1812 = vst [vmem:[%s332 + $0x70] sm:$0xf] %v1776
      %1813 = vst [vmem:[%s332 + $0x74] sm:$0xf] %v1777
      %1814 = vst [vmem:[%s332 + $0x78] sm:$0xf] %v1778
      %1815 = vst [vmem:[%s332 + $0x7c] sm:$0xf] %v1779
      %1816 = vst [vmem:[%s332 + $0x80] sm:$0xf] %v1780
      %1817 = vst [vmem:[%s332 + $0x84] sm:$0xf] %v1781
      %1818 = vst [vmem:[%s332 + $0x88] sm:$0xf] %v1782
      %1819 = vst [vmem:[%s332 + $0x8c] sm:$0xf] %v1783
      %v1820 = vld [vmem:[%s320] sm:$0xff]
      %v1821 = vld [vmem:[%s320 + $0x8] sm:$0xff]
      %v1822 = vld [vmem:[%s320 + $0x10] sm:$0xff]
      %v1823 = vld [vmem:[%s320 + $0x18] sm:$0xff]
      %v1824 = vld [vmem:[%s320 + $0x20] sm:$0xff]
      %v1825 = vld [vmem:[%s320 + $0x28] sm:$0xff]
      %v1826 = vld [vmem:[%s320 + $0x30] sm:$0xff]
      %v1827 = vld [vmem:[%s320 + $0x38] sm:$0xff]
      %v1828 = vld [vmem:[%s320 + $0x40] sm:$0xff]
      %v1829 = vld [vmem:[%s320 + $0x48] sm:$0xff]
      %v1830 = vld [vmem:[%s320 + $0x50] sm:$0xff]
      %v1831 = vld [vmem:[%s320 + $0x58] sm:$0xff]
      %v1832 = vld [vmem:[%s320 + $0x60] sm:$0xff]
      %v1833 = vld [vmem:[%s320 + $0x68] sm:$0xff]
      %v1834 = vld [vmem:[%s320 + $0x70] sm:$0xff]
      %v1835 = vld [vmem:[%s320 + $0x78] sm:$0xff]
      %v1836 = vld [vmem:[%s320 + $0x80] sm:$0xff]
      %v1837 = vld [vmem:[%s320 + $0x88] sm:$0xff]
      %v1838 = vld [vmem:[%s320 + $0x90] sm:$0xff]
      %v1839 = vld [vmem:[%s320 + $0x98] sm:$0xff]
      %v1840 = vld [vmem:[%s320 + $0xa0] sm:$0xff]
      %v1841 = vld [vmem:[%s320 + $0xa8] sm:$0xff]
      %v1842 = vld [vmem:[%s320 + $0xb0] sm:$0xff]
      %v1843 = vld [vmem:[%s320 + $0xb8] sm:$0xff]
      %v1844 = vld [vmem:[%s320 + $0xc0] sm:$0xff]
      %v1845 = vld [vmem:[%s320 + $0xc8] sm:$0xff]
      %v1846 = vld [vmem:[%s320 + $0xd0] sm:$0xff]
      %v1847 = vld [vmem:[%s320 + $0xd8] sm:$0xff]
      %v1848 = vld [vmem:[%s320 + $0xe0] sm:$0xff]
      %v1849 = vld [vmem:[%s320 + $0xe8] sm:$0xff]
      %v1850 = vld [vmem:[%s320 + $0xf0] sm:$0xff]
      %v1851 = vld [vmem:[%s320 + $0xf8] sm:$0xff]
      %v1852 = vld [vmem:[%s320 + $0x100] sm:$0xff]
      %v1853 = vld [vmem:[%s320 + $0x108] sm:$0xff]
      %v1854 = vld [vmem:[%s320 + $0x110] sm:$0xff]
      %v1855 = vld [vmem:[%s320 + $0x118] sm:$0xff]
      %1857 = vset.pattern.permute.xlu0 0
      %1858 = vperm.xlu0 %1857, %v1820
      %v1859 = vpop.permute.xlu0 %1858
      %1862 = vset.pattern.permute.xlu0 0
      %1863 = vperm.xlu0 %1862, %v1821
      %v1864 = vpop.permute.xlu0 %1863
      %1867 = vset.pattern.permute.xlu0 0
      %1868 = vperm.xlu0 %1867, %v1822
      %v1869 = vpop.permute.xlu0 %1868
      %1872 = vset.pattern.permute.xlu0 0
      %1873 = vperm.xlu0 %1872, %v1823
      %v1874 = vpop.permute.xlu0 %1873
      %1877 = vset.pattern.permute.xlu0 0
      %1878 = vperm.xlu0 %1877, %v1824
      %v1879 = vpop.permute.xlu0 %1878
      %1882 = vset.pattern.permute.xlu0 0
      %1883 = vperm.xlu0 %1882, %v1825
      %v1884 = vpop.permute.xlu0 %1883
      %1887 = vset.pattern.permute.xlu0 0
      %1888 = vperm.xlu0 %1887, %v1826
      %v1889 = vpop.permute.xlu0 %1888
      %1892 = vset.pattern.permute.xlu0 0
      %1893 = vperm.xlu0 %1892, %v1827
      %v1894 = vpop.permute.xlu0 %1893
      %1897 = vset.pattern.permute.xlu0 0
      %1898 = vperm.xlu0 %1897, %v1828
      %v1899 = vpop.permute.xlu0 %1898
      %1902 = vset.pattern.permute.xlu0 0
      %1903 = vperm.xlu0 %1902, %v1829
      %v1904 = vpop.permute.xlu0 %1903
      %1907 = vset.pattern.permute.xlu0 0
      %1908 = vperm.xlu0 %1907, %v1830
      %v1909 = vpop.permute.xlu0 %1908
      %1912 = vset.pattern.permute.xlu0 0
      %1913 = vperm.xlu0 %1912, %v1831
      %v1914 = vpop.permute.xlu0 %1913
      %1917 = vset.pattern.permute.xlu0 0
      %1918 = vperm.xlu0 %1917, %v1832
      %v1919 = vpop.permute.xlu0 %1918
      %1922 = vset.pattern.permute.xlu0 0
      %1923 = vperm.xlu0 %1922, %v1833
      %v1924 = vpop.permute.xlu0 %1923
      %1927 = vset.pattern.permute.xlu0 0
      %1928 = vperm.xlu0 %1927, %v1834
      %v1929 = vpop.permute.xlu0 %1928
      %1932 = vset.pattern.permute.xlu0 0
      %1933 = vperm.xlu0 %1932, %v1835
      %v1934 = vpop.permute.xlu0 %1933
      %1937 = vset.pattern.permute.xlu0 0
      %1938 = vperm.xlu0 %1937, %v1836
      %v1939 = vpop.permute.xlu0 %1938
      %1942 = vset.pattern.permute.xlu0 0
      %1943 = vperm.xlu0 %1942, %v1837
      %v1944 = vpop.permute.xlu0 %1943
      %1947 = vset.pattern.permute.xlu0 0
      %1948 = vperm.xlu0 %1947, %v1838
      %v1949 = vpop.permute.xlu0 %1948
      %1952 = vset.pattern.permute.xlu0 0
      %1953 = vperm.xlu0 %1952, %v1839
      %v1954 = vpop.permute.xlu0 %1953
      %1957 = vset.pattern.permute.xlu0 0
      %1958 = vperm.xlu0 %1957, %v1840
      %v1959 = vpop.permute.xlu0 %1958
      %1962 = vset.pattern.permute.xlu0 0
      %1963 = vperm.xlu0 %1962, %v1841
      %v1964 = vpop.permute.xlu0 %1963
      %1967 = vset.pattern.permute.xlu0 0
      %1968 = vperm.xlu0 %1967, %v1842
      %v1969 = vpop.permute.xlu0 %1968
      %1972 = vset.pattern.permute.xlu0 0
      %1973 = vperm.xlu0 %1972, %v1843
      %v1974 = vpop.permute.xlu0 %1973
      %1977 = vset.pattern.permute.xlu0 0
      %1978 = vperm.xlu0 %1977, %v1844
      %v1979 = vpop.permute.xlu0 %1978
      %1982 = vset.pattern.permute.xlu0 0
      %1983 = vperm.xlu0 %1982, %v1845
      %v1984 = vpop.permute.xlu0 %1983
      %1987 = vset.pattern.permute.xlu0 0
      %1988 = vperm.xlu0 %1987, %v1846
      %v1989 = vpop.permute.xlu0 %1988
      %1992 = vset.pattern.permute.xlu0 0
      %1993 = vperm.xlu0 %1992, %v1847
      %v1994 = vpop.permute.xlu0 %1993
      %1997 = vset.pattern.permute.xlu0 0
      %1998 = vperm.xlu0 %1997, %v1848
      %v1999 = vpop.permute.xlu0 %1998
      %2002 = vset.pattern.permute.xlu0 0
      %2003 = vperm.xlu0 %2002, %v1849
      %v2004 = vpop.permute.xlu0 %2003
      %2007 = vset.pattern.permute.xlu0 0
      %2008 = vperm.xlu0 %2007, %v1850
      %v2009 = vpop.permute.xlu0 %2008
      %2012 = vset.pattern.permute.xlu0 0
      %2013 = vperm.xlu0 %2012, %v1851
      %v2014 = vpop.permute.xlu0 %2013
      %2017 = vset.pattern.permute.xlu0 0
      %2018 = vperm.xlu0 %2017, %v1852
      %v2019 = vpop.permute.xlu0 %2018
      %2022 = vset.pattern.permute.xlu0 0
      %2023 = vperm.xlu0 %2022, %v1853
      %v2024 = vpop.permute.xlu0 %2023
      %2027 = vset.pattern.permute.xlu0 0
      %2028 = vperm.xlu0 %2027, %v1854
      %v2029 = vpop.permute.xlu0 %2028
      %2032 = vset.pattern.permute.xlu0 0
      %2033 = vperm.xlu0 %2032, %v1855
      %v2034 = vpop.permute.xlu0 %2033
      %v2036 = vmul.f32 %v1659, %v1859
      %v2037 = vmul.f32 %v1661, %v1864
      %v2038 = vmul.f32 %v1664, %v1869
      %v2039 = vmul.f32 %v1666, %v1874
      %v2040 = vmul.f32 %v1669, %v1879
      %v2041 = vmul.f32 %v1671, %v1884
      %v2042 = vmul.f32 %v1674, %v1889
      %v2043 = vmul.f32 %v1676, %v1894
      %v2044 = vmul.f32 %v1679, %v1899
      %v2045 = vmul.f32 %v1681, %v1904
      %v2046 = vmul.f32 %v1684, %v1909
      %v2047 = vmul.f32 %v1686, %v1914
      %v2048 = vmul.f32 %v1689, %v1919
      %v2049 = vmul.f32 %v1691, %v1924
      %v2050 = vmul.f32 %v1694, %v1929
      %v2051 = vmul.f32 %v1696, %v1934
      %v2052 = vmul.f32 %v1699, %v1939
      %v2053 = vmul.f32 %v1701, %v1944
      %v2054 = vmul.f32 %v1704, %v1949
      %v2055 = vmul.f32 %v1706, %v1954
      %v2056 = vmul.f32 %v1709, %v1959
      %v2057 = vmul.f32 %v1711, %v1964
      %v2058 = vmul.f32 %v1714, %v1969
      %v2059 = vmul.f32 %v1716, %v1974
      %v2060 = vmul.f32 %v1719, %v1979
      %v2061 = vmul.f32 %v1721, %v1984
      %v2062 = vmul.f32 %v1724, %v1989
      %v2063 = vmul.f32 %v1726, %v1994
      %v2064 = vmul.f32 %v1729, %v1999
      %v2065 = vmul.f32 %v1731, %v2004
      %v2066 = vmul.f32 %v1734, %v2009
      %v2067 = vmul.f32 %v1736, %v2014
      %v2068 = vmul.f32 %v1739, %v2019
      %v2069 = vmul.f32 %v1741, %v2024
      %v2070 = vmul.f32 %v1744, %v2029
      %v2071 = vmul.f32 %v1746, %v2034
      %v2072 = vadd.f32 %v2036, %v2037
      %v2073 = vadd.f32 %v2072, %v2038
      %v2074 = vadd.f32 %v2073, %v2039
      %v2075 = vadd.f32 %v2074, %v2040
      %v2076 = vadd.f32 %v2075, %v2041
      %v2077 = vadd.f32 %v2076, %v2042
      %v2078 = vadd.f32 %v2077, %v2043
      %v2079 = vadd.f32 %v2078, %v2044
      %v2080 = vadd.f32 %v2079, %v2045
      %v2081 = vadd.f32 %v2080, %v2046
      %v2082 = vadd.f32 %v2081, %v2047
      %v2083 = vadd.f32 %v2082, %v2048
      %v2084 = vadd.f32 %v2083, %v2049
      %v2085 = vadd.f32 %v2084, %v2050
      %v2086 = vadd.f32 %v2085, %v2051
      %v2087 = vadd.f32 %v2086, %v2052
      %v2088 = vadd.f32 %v2087, %v2053
      %v2089 = vadd.f32 %v2088, %v2054
      %v2090 = vadd.f32 %v2089, %v2055
      %v2091 = vadd.f32 %v2090, %v2056
      %v2092 = vadd.f32 %v2091, %v2057
      %v2093 = vadd.f32 %v2092, %v2058
      %v2094 = vadd.f32 %v2093, %v2059
      %v2095 = vadd.f32 %v2094, %v2060
      %v2096 = vadd.f32 %v2095, %v2061
      %v2097 = vadd.f32 %v2096, %v2062
      %v2098 = vadd.f32 %v2097, %v2063
      %v2099 = vadd.f32 %v2098, %v2064
      %v2100 = vadd.f32 %v2099, %v2065
      %v2101 = vadd.f32 %v2100, %v2066
      %v2102 = vadd.f32 %v2101, %v2067
      %v2103 = vadd.f32 %v2102, %v2068
      %v2104 = vadd.f32 %v2103, %v2069
      %v2105 = vadd.f32 %v2104, %v2070
      %v2106 = vadd.f32 %v2105, %v2071
      %v2107 = vrot.slane %v2106, 4
      %v2108 = vadd.f32 %v2106, %v2107
      %v2109 = vrot.slane %v2108, 2
      %v2110 = vadd.f32 %v2108, %v2109
      %v2111 = vrot.slane %v2110, 1
      %v2112 = vadd.f32 %v2110, %v2111
      %2113 = vst [vmem:[%s340] sm:$0x1] %v2112
      %v2114 = vmul.f32 %v2036, %v1659
      %v2115 = vmul.f32 %v2037, %v1661
      %v2116 = vmul.f32 %v2038, %v1664
      %v2117 = vmul.f32 %v2039, %v1666
      %v2118 = vmul.f32 %v2040, %v1669
      %v2119 = vmul.f32 %v2041, %v1671
      %v2120 = vmul.f32 %v2042, %v1674
      %v2121 = vmul.f32 %v2043, %v1676
      %v2122 = vmul.f32 %v2044, %v1679
      %v2123 = vmul.f32 %v2045, %v1681
      %v2124 = vmul.f32 %v2046, %v1684
      %v2125 = vmul.f32 %v2047, %v1686
      %v2126 = vmul.f32 %v2048, %v1689
      %v2127 = vmul.f32 %v2049, %v1691
      %v2128 = vmul.f32 %v2050, %v1694
      %v2129 = vmul.f32 %v2051, %v1696
      %v2130 = vmul.f32 %v2052, %v1699
      %v2131 = vmul.f32 %v2053, %v1701
      %v2132 = vmul.f32 %v2054, %v1704
      %v2133 = vmul.f32 %v2055, %v1706
      %v2134 = vmul.f32 %v2056, %v1709
      %v2135 = vmul.f32 %v2057, %v1711
      %v2136 = vmul.f32 %v2058, %v1714
      %v2137 = vmul.f32 %v2059, %v1716
      %v2138 = vmul.f32 %v2060, %v1719
      %v2139 = vmul.f32 %v2061, %v1721
      %v2140 = vmul.f32 %v2062, %v1724
      %v2141 = vmul.f32 %v2063, %v1726
      %v2142 = vmul.f32 %v2064, %v1729
      %v2143 = vmul.f32 %v2065, %v1731
      %v2144 = vmul.f32 %v2066, %v1734
      %v2145 = vmul.f32 %v2067, %v1736
      %v2146 = vmul.f32 %v2068, %v1739
      %v2147 = vmul.f32 %v2069, %v1741
      %v2148 = vmul.f32 %v2070, %v1744
      %v2149 = vmul.f32 %v2071, %v1746
      %v2150 = vadd.f32 %v2114, %v2115
      %v2151 = vadd.f32 %v2150, %v2116
      %v2152 = vadd.f32 %v2151, %v2117
      %v2153 = vadd.f32 %v2152, %v2118
      %v2154 = vadd.f32 %v2153, %v2119
      %v2155 = vadd.f32 %v2154, %v2120
      %v2156 = vadd.f32 %v2155, %v2121
      %v2157 = vadd.f32 %v2156, %v2122
      %v2158 = vadd.f32 %v2157, %v2123
      %v2159 = vadd.f32 %v2158, %v2124
      %v2160 = vadd.f32 %v2159, %v2125
      %v2161 = vadd.f32 %v2160, %v2126
      %v2162 = vadd.f32 %v2161, %v2127
      %v2163 = vadd.f32 %v2162, %v2128
      %v2164 = vadd.f32 %v2163, %v2129
      %v2165 = vadd.f32 %v2164, %v2130
      %v2166 = vadd.f32 %v2165, %v2131
      %v2167 = vadd.f32 %v2166, %v2132
      %v2168 = vadd.f32 %v2167, %v2133
      %v2169 = vadd.f32 %v2168, %v2134
      %v2170 = vadd.f32 %v2169, %v2135
      %v2171 = vadd.f32 %v2170, %v2136
      %v2172 = vadd.f32 %v2171, %v2137
      %v2173 = vadd.f32 %v2172, %v2138
      %v2174 = vadd.f32 %v2173, %v2139
      %v2175 = vadd.f32 %v2174, %v2140
      %v2176 = vadd.f32 %v2175, %v2141
      %v2177 = vadd.f32 %v2176, %v2142
      %v2178 = vadd.f32 %v2177, %v2143
      %v2179 = vadd.f32 %v2178, %v2144
      %v2180 = vadd.f32 %v2179, %v2145
      %v2181 = vadd.f32 %v2180, %v2146
      %v2182 = vadd.f32 %v2181, %v2147
      %v2183 = vadd.f32 %v2182, %v2148
      %v2184 = vadd.f32 %v2183, %v2149
      %v2185 = vrot.slane %v2184, 4
      %v2186 = vadd.f32 %v2184, %v2185
      %v2187 = vrot.slane %v2186, 2
      %v2188 = vadd.f32 %v2186, %v2187
      %v2189 = vrot.slane %v2188, 1
      %v2190 = vadd.f32 %v2188, %v2189
      %2191 = vst [vmem:[%s348] sm:$0x1] %v2190
      %s2192 = smul.u32 36, %s22
      %p2193 = scmp.lt.s32.totalorder %s23, 1
      %s2194 = scalar_select %p2193, %s23, 1
      %p2195 = scmp.lt.s32.totalorder %s2192, 35
      %s2196 = scalar_select %p2195, %s2192, 35
      %p2197 = scmp.lt.s32.totalorder %s24, 0
      %s2198 = scalar_select %p2197, %s24, 0
      %s2199 = sadd.s32 %s2198, %s2196
      %s2200 = smul.addr %s2194, 36
      %s2201 = sadd.s32 %s2199, %s2200
      %s2202 = smul.addr %s2201, 4
      %s2203 = scalar_lea.vmem %s3, %s2202
      %s2204 = sadd.s32 %s23, %s22
      %p2205 = scmp.lt.s32.totalorder %s2204, 1
      %s2206 = scalar_select %p2205, %s2204, 1
      %p2207 = scmp.lt.s32.totalorder %s24, 0
      %s2208 = scalar_select %p2207, %s24, 0
      %s2209 = sadd.s32 %s2208, %s2206
      %s2210 = scalar_lea.vmem %s4, %s2209
      %s2211 = sadd.s32 %s23, %s22
      %p2212 = scmp.lt.s32.totalorder %s2211, 1
      %s2213 = scalar_select %p2212, %s2211, 1
      %p2214 = scmp.lt.s32.totalorder %s24, 0
      %s2215 = scalar_select %p2214, %s24, 0
      %s2216 = sadd.s32 %s2215, %s2213
      %s2217 = scalar_lea.vmem %s5, %s2216
      // Predicated region
      $region33: #{basic_conv_forward.2} parent=31 // pred_check
        %p2218 = pneg %p138
      $region34: #{basic_conv_forward.2} parent=31 // pred_check_branch
        %2220 = sbr.rel (%p2218) target = $region36
      $region35: #{basic_conv_forward.2} parent=31 // pred_region
        %s2221 = smul.u32 36, %s22
      $region36: #{basic_conv_forward.2} parent=31 // pred_fallthru
        _
      // Predicated region
      $region37: #{basic_conv_forward.2} parent=31 // pred_check
        %p2222 = pneg %p168
      $region38: #{basic_conv_forward.2} parent=31 // pred_check_branch
        %2224 = sbr.rel (%p2222) target = $region40
      $region39: #{basic_conv_forward.2} parent=31 // pred_region
        %s2225 = sadd.s32 %s23, %s22
      $region40: #{basic_conv_forward.2} parent=31 // pred_fallthru
        _
      // Predicated region
      $region41: #{basic_conv_forward.2} parent=31 // pred_check
        %p2226 = pneg %p198
      $region42: #{basic_conv_forward.2} parent=31 // pred_check_branch
        %2228 = sbr.rel (%p2226) target = $region44
      $region43: #{basic_conv_forward.2} parent=31 // pred_region
        %s2229 = sadd.s32 %s23, %s22
      $region44: #{basic_conv_forward.2} parent=31 // pred_fallthru
        _
    $region32: #{basic_conv_forward.2} parent=5 // pred_fallthru
      _
    %p2230 = scmp.le.s32.totalorder 2, %s12
    // Predicated region
    $region45: #{basic_conv_forward.2} parent=5 // pred_check
      %p2231 = pneg %p2230
    $region46: #{basic_conv_forward.2} parent=5 // pred_check_branch
      %2233 = sbr.rel (%p2231) target = $region48
    $region47: #{basic_conv_forward.2} parent=5 // pred_region
      %s2234 = ssub.s32 %s12, 2
      // Predicated region
      $region49: #{basic_conv_forward.2} parent=47 // pred_check
        %p2235 = pneg %p144
      $region50: #{basic_conv_forward.2} parent=47 // pred_check_branch
        %2237 = sbr.rel (%p2235) target = $region52
      $region51: #{basic_conv_forward.2} parent=47 // pred_region
        %s2238 = smul.u32 36, %s25
        %p2239 = scmp.lt.s32.totalorder %s26, 1
        %s2240 = scalar_select %p2239, %s26, 1
        %p2241 = scmp.lt.s32.totalorder %s2238, 35
        %s2242 = scalar_select %p2241, %s2238, 35
        %p2243 = scmp.lt.s32.totalorder %s27, 0
        %s2244 = scalar_select %p2243, %s27, 0
        %s2245 = sadd.s32 %s2244, %s2242
        %s2246 = smul.addr %s2240, 36
        %s2247 = sadd.s32 %s2245, %s2246
        %s2248 = smul.addr %s2247, 4
        %s2249 = scalar_lea.vmem %s3, %s2248
      $region52: #{basic_conv_forward.2} parent=47 // pred_fallthru
        _
      // Predicated region
      $region53: #{basic_conv_forward.2} parent=47 // pred_check
        %p2250 = pneg %p174
      $region54: #{basic_conv_forward.2} parent=47 // pred_check_branch
        %2252 = sbr.rel (%p2250) target = $region56
      $region55: #{basic_conv_forward.2} parent=47 // pred_region
        %s2253 = sadd.s32 %s26, %s25
        %p2254 = scmp.lt.s32.totalorder %s2253, 1
        %s2255 = scalar_select %p2254, %s2253, 1
        %p2256 = scmp.lt.s32.totalorder %s27, 0
        %s2257 = scalar_select %p2256, %s27, 0
        %s2258 = sadd.s32 %s2257, %s2255
        %s2259 = scalar_lea.vmem %s4, %s2258
      $region56: #{basic_conv_forward.2} parent=47 // pred_fallthru
        _
      // Predicated region
      $region57: #{basic_conv_forward.2} parent=47 // pred_check
        %p2260 = pneg %p204
      $region58: #{basic_conv_forward.2} parent=47 // pred_check_branch
        %2262 = sbr.rel (%p2260) target = $region60
      $region59: #{basic_conv_forward.2} parent=47 // pred_region
        %s2263 = sadd.s32 %s26, %s25
        %p2264 = scmp.lt.s32.totalorder %s2263, 1
        %s2265 = scalar_select %p2264, %s2263, 1
        %p2266 = scmp.lt.s32.totalorder %s27, 0
        %s2267 = scalar_select %p2266, %s27, 0
        %s2268 = sadd.s32 %s2267, %s2265
        %s2269 = scalar_lea.vmem %s5, %s2268
      $region60: #{basic_conv_forward.2} parent=47 // pred_fallthru
        _
    $region48: #{basic_conv_forward.2} parent=5 // pred_fallthru
      _
  $region6: #{basic_conv_forward.2} parent=0 // loop_footer
    %s16 = sadd.s32 1, %s12
  $region7: #{basic_conv_forward.2} parent=0 // loop_footer_branch
    %11 = sbr.rel target = $region3
  $region8: #{basic_conv_forward.2} parent=0 // loop_exit
    _

</llo_original>
